<compile_context>
chip_gen: v7x
topology: tpu7x:2x2x1
jax: 0.10.0
libtpu: 0.0.40
codegen_flags: <defaults>
</compile_context>

<pallas_src>
import functools

import jax
import jax.numpy as jnp
from jax.experimental import pallas as pl
from jax.experimental.pallas import tpu as pltpu

EPS = 1e-5                       # PyTorch BatchNorm2d default
LANE = 128                       # TPU lane width
_VMEM_LIMIT = 32 * 1024 * 1024   # far above the <1 MiB/block needed here


def _round_up(x, m):
    return (x + m - 1) // m * m


# ---------------------------------------------------------------------------
# Shared in-kernel helper: 3x3 "SAME" conv on one zero-halo padded image via a
# single wide-K MXU matmul, plus per-image BN partial statistics.
# ---------------------------------------------------------------------------
def _conv3x3_wideK_stats(src_ref, w_ref, out_ref, stats_ref, *, H, W, kpad):
    # src_ref:   (H+2, W+2, Cin)  bf16  spatially padded image (zero halo)
    # w_ref:     (kpad, Cpo)      bf16  taps stacked along K, (dx, dy, cin) order
    # out_ref:   (H*W, Cpo)       bf16  pre-BN conv rows for this image
    # stats_ref: (8, Cpo)         f32   row0 = sum, row1 = sum of squares
    cin = src_ref.shape[-1]
    cpo = w_ref.shape[-1]
    cols = []
    # dx is the sublane shift -> hoisted to the outer loop (3 shifted slice
    # materializations); dy slicing is a cheap outer-dim offset.
    for dx in range(3):
        xw = src_ref[:, dx:dx + W, :]                    # (H+2, W, Cin)
        for dy in range(3):
            cols.append(xw[dy:dy + H].reshape(H * W, cin))
    if kpad > 9 * cin:                                   # pad K to 128 multiple
        cols.append(jnp.zeros((H * W, kpad - 9 * cin), cols[0].dtype))
    patches = jnp.concatenate(cols, axis=-1)             # (H*W, kpad) bf16
    acc = jnp.dot(patches, w_ref[...], preferred_element_type=jnp.float32)
    out_ref[...] = acc.astype(out_ref.dtype)
    s1 = jnp.sum(acc, axis=0, keepdims=True)
    s2 = jnp.sum(acc * acc, axis=0, keepdims=True)
    # Single unmasked (8, Cpo) store instead of two masked (1, Cpo) stores.
    stats_ref[...] = jnp.concatenate(
        [s1, s2, jnp.zeros((6, cpo), jnp.float32)], axis=0)


# ---------------------------------------------------------------------------
# Kernel A1: conv1 + partial stats (input already spatially padded, bf16)
# ---------------------------------------------------------------------------
def _conv1_kernel(x_ref, w_ref, y_ref, stats_ref, *, H, W, kpad):
    _conv3x3_wideK_stats(x_ref, w_ref, y_ref, stats_ref, H=H, W=W, kpad=kpad)


def _conv1(xp, w, H, W, cpo, kpad):
    N, _, _, cin = xp.shape
    M = N * H * W
    kern = functools.partial(_conv1_kernel, H=H, W=W, kpad=kpad)
    return pl.pallas_call(
        kern,
        grid=(N,),
        in_specs=[
            # block last-two dims equal the full array dims -> exempt from the
            # (8,128) rule, so the tiny-Cin input is NOT channel-padded in HBM.
            pl.BlockSpec((None, H + 2, W + 2, cin), lambda n: (n, 0, 0, 0)),
            pl.BlockSpec((kpad, cpo), lambda n: (0, 0)),
        ],
        out_specs=[
            pl.BlockSpec((H * W, cpo), lambda n: (n, 0)),
            pl.BlockSpec((None, 8, cpo), lambda n: (n, 0, 0)),
        ],
        out_shape=[
            jax.ShapeDtypeStruct((M, cpo), jnp.bfloat16),
            jax.ShapeDtypeStruct((N, 8, cpo), jnp.float32),
        ],
        compiler_params=pltpu.CompilerParams(
            dimension_semantics=("parallel",),
            vmem_limit_bytes=_VMEM_LIMIT),
    )(xp, w)


# ---------------------------------------------------------------------------
# Kernel A2: fused BN1 + ReLU1 + conv2 + partial stats (no HBM trip for h1)
# ---------------------------------------------------------------------------
def _fused_bnrelu_conv2_kernel(y1_ref, scale_ref, shift_ref, w_ref,
                               y2_ref, stats_ref, hpad_ref, *, H, W, kpad):
    c = y1_ref.shape[-1]
    # Folded BatchNorm1 + ReLU1 in f32, stored bf16 for the MXU.
    h = jnp.maximum(
        y1_ref[...].astype(jnp.float32) * scale_ref[...] + shift_ref[...],
        0.0).astype(jnp.bfloat16)
    # Assemble the zero-halo padded activation image in VMEM scratch.
    hpad_ref[...] = jnp.zeros_like(hpad_ref)
    hpad_ref[1:H + 1, 1:W + 1, :] = h.reshape(H, W, c)
    _conv3x3_wideK_stats(hpad_ref, w_ref, y2_ref, stats_ref,
                         H=H, W=W, kpad=kpad)


def _conv2_fused(y1, scale, shift, w, N, H, W, cpo):
    c = y1.shape[-1]
    kpad = 9 * c
    M = N * H * W
    kern = functools.partial(_fused_bnrelu_conv2_kernel, H=H, W=W, kpad=kpad)
    return pl.pallas_call(
        kern,
        grid=(N,),
        in_specs=[
            pl.BlockSpec((H * W, c), lambda n: (n, 0)),
            pl.BlockSpec((1, c), lambda n: (0, 0)),
            pl.BlockSpec((1, c), lambda n: (0, 0)),
            pl.BlockSpec((kpad, cpo), lambda n: (0, 0)),
        ],
        out_specs=[
            pl.BlockSpec((H * W, cpo), lambda n: (n, 0)),
            pl.BlockSpec((None, 8, cpo), lambda n: (n, 0, 0)),
        ],
        out_shape=[
            jax.ShapeDtypeStruct((M, cpo), jnp.bfloat16),
            jax.ShapeDtypeStruct((N, 8, cpo), jnp.float32),
        ],
        scratch_shapes=[pltpu.VMEM((H + 2, W + 2, c), jnp.bfloat16)],
        compiler_params=pltpu.CompilerParams(
            dimension_semantics=("parallel",),
            vmem_limit_bytes=_VMEM_LIMIT),
    )(y1, scale.reshape(1, c), shift.reshape(1, c), w)


# ---------------------------------------------------------------------------
# Kernel B: final folded BN2 + ReLU2 on lane-dense tiles
# ---------------------------------------------------------------------------
def _bn_relu_kernel(y_ref, scale_ref, shift_ref, o_ref):
    o_ref[...] = jnp.maximum(
        y_ref[...].astype(jnp.float32) * scale_ref[...] + shift_ref[...], 0.0)


def _bn_relu(y2, scale, shift, N, HW, cpo):
    y3 = y2.reshape(N, HW, cpo)
    return pl.pallas_call(
        _bn_relu_kernel,
        grid=(N,),
        in_specs=[
            pl.BlockSpec((None, HW, cpo), lambda n: (n, 0, 0)),
            pl.BlockSpec((1, cpo), lambda n: (0, 0)),
            pl.BlockSpec((1, cpo), lambda n: (0, 0)),
        ],
        out_specs=pl.BlockSpec((None, HW, cpo), lambda n: (n, 0, 0)),
        out_shape=jax.ShapeDtypeStruct((N, HW, cpo), jnp.float32),
        compiler_params=pltpu.CompilerParams(
            dimension_semantics=("parallel",),
            vmem_limit_bytes=_VMEM_LIMIT),
    )(y3, scale.reshape(1, cpo), shift.reshape(1, cpo))


# ---------------------------------------------------------------------------
# Host-side helpers
# ---------------------------------------------------------------------------
def _prep_w(w_oihw, ci_pad, kpad, co_pad):
    """(O,I,3,3) -> (kpad, co_pad) bf16 with K rows in (dx, dy, cin) order."""
    o, i = w_oihw.shape[0], w_oihw.shape[1]
    w = jnp.transpose(w_oihw, (3, 2, 1, 0))                  # (kw, kh, I, O)
    w = jnp.pad(w, ((0, 0), (0, 0), (0, ci_pad - i), (0, co_pad - o)))
    w = w.reshape(9 * ci_pad, co_pad)
    w = jnp.pad(w, ((0, kpad - 9 * ci_pad), (0, 0)))
    return w.astype(jnp.bfloat16)


def _fold_bn(stats, gamma, beta, count, cpo):
    # NOTE: E[x^2]-E[x]^2 can cancel for |mean| >> std; fine at these scales.
    s = jnp.sum(stats, axis=0)                                # (8, cpo)
    mean = s[0] / count
    var = jnp.maximum(s[1] / count - mean * mean, 0.0)        # biased batch var
    g = jnp.pad(gamma, (0, cpo - gamma.shape[0]))
    b = jnp.pad(beta, (0, cpo - beta.shape[0]))
    scale = g * jax.lax.rsqrt(var + EPS)
    shift = b - mean * scale
    return scale, shift


# ---------------------------------------------------------------------------
# Forward pass (NCHW in / NCHW out, matching the PyTorch module)
# ---------------------------------------------------------------------------
def conv_block_forward(params, x_nchw):
    x = jnp.transpose(x_nchw, (0, 2, 3, 1))                   # NHWC
    N, H, W, in_c = x.shape
    out_c = params["w1"].shape[0]
    cpo = _round_up(out_c, LANE)
    M = N * H * W

    # ---- layer 1: conv (bf16 at the HBM boundary, pre-BN out + stats) ----
    xp = jnp.pad(x, ((0, 0), (1, 1), (1, 1), (0, 0))).astype(jnp.bfloat16)
    k1 = _round_up(9 * in_c, LANE)
    w1 = _prep_w(params["w1"], in_c, k1, cpo)
    y1, stats1 = _conv1(xp, w1, H, W, cpo, k1)
    scale1, shift1 = _fold_bn(stats1, params["g1"], params["be1"], M, cpo)

    # ---- layer 2: fused BN1+ReLU1 -> conv2 (no h1 HBM round-trip) ----
    k2 = 9 * cpo
    w2 = _prep_w(params["w2"], cpo, k2, cpo)
    y2, stats2 = _conv2_fused(y1, scale1, shift1, w2, N, H, W, cpo)
    scale2, shift2 = _fold_bn(stats2, params["g2"], params["be2"], M, cpo)

    # ---- final BN2 + ReLU2 ----
    out = _bn_relu(y2, scale2, shift2, N, H * W, cpo)
    out = out.reshape(N, H, W, cpo)[..., :out_c]
    return jnp.transpose(out, (0, 3, 1, 2))                   # NHWC -> NCHW


def init_params(key, in_c, out_c):
    ks = jax.random.split(key, 8)
    return {
        "w1": 0.1 * jax.random.normal(ks[0], (out_c, in_c, 3, 3), jnp.float32),
        "b1": 0.1 * jax.random.normal(ks[1], (out_c,), jnp.float32),
        "g1": 1.0 + 0.1 * jax.random.normal(ks[2], (out_c,), jnp.float32),
        "be1": 0.1 * jax.random.normal(ks[3], (out_c,), jnp.float32),
        "w2": 0.1 * jax.random.normal(ks[4], (out_c, out_c, 3, 3), jnp.float32),
        "b2": 0.1 * jax.random.normal(ks[5], (out_c,), jnp.float32),
        "g2": 1.0 + 0.1 * jax.random.normal(ks[6], (out_c,), jnp.float32),
        "be2": 0.1 * jax.random.normal(ks[7], (out_c,), jnp.float32),
    }


# ---------------------------------------------------------------------------
# Pure-JAX reference (NCHW, identical semantics to the PyTorch module)
# ---------------------------------------------------------------------------
def conv_block_ref(params, x):
    def conv(x, w, b):
        y = jax.lax.conv_general_dilated(
            x, w, (1, 1), "SAME",
            dimension_numbers=("NCHW", "OIHW", "NCHW"),
            precision=jax.lax.Precision.HIGHEST)
        return y + b[None, :, None, None]

    def bn(x, g, be):
        m = jnp.mean(x, axis=(0, 2, 3), keepdims=True)
        v = jnp.mean((x - m) ** 2, axis=(0, 2, 3), keepdims=True)
        return (x - m) * jax.lax.rsqrt(v + EPS) * g[None, :, None, None] + \
            be[None, :, None, None]

    x = jnp.maximum(bn(conv(x, params["w1"], params["b1"]),
                       params["g1"], params["be1"]), 0.0)
    x = jnp.maximum(bn(conv(x, params["w2"], params["b2"]),
                       params["g2"], params["be2"]), 0.0)
    return x


if __name__ == "__main__":
    key = jax.random.PRNGKey(0)
    kx, kp = jax.random.split(key)

    N, IN_C, OUT_C, HW = 2, 4, 8, 16
    x = jax.random.normal(kx, (N, IN_C, HW, HW), jnp.float32)
    params = init_params(kp, IN_C, OUT_C)

    out = jax.block_until_ready(jax.jit(conv_block_forward)(params, x))
    ref = jax.block_until_ready(jax.jit(conv_block_ref)(params, x))

    assert out.shape == (N, OUT_C, HW, HW)
    err = jnp.abs(out - ref)
    # bf16 MXU operands + bf16 pre-BN intermediates vs a pure-f32 HIGHEST
    # reference: agreement is at the bf16 level.
    assert float(jnp.max(err)) < 1e-1, f"max err {float(jnp.max(err))}"
    assert float(jnp.mean(err)) < 2e-2, f"mean err {float(jnp.mean(err))}"
    print("KERNEL_OK")
</pallas_src>

<mosaic_0001>
module attributes {stable_mosaic.version = 11 : i64} {
  func.func @_conv1_kernel(%arg0: i32, %arg1: memref<1x18x18x4xbf16, #tpu.memory_space<vmem>>, %arg2: memref<128x128xbf16, #tpu.memory_space<vmem>>, %arg3: memref<256x128xbf16, #tpu.memory_space<vmem>>, %arg4: memref<1x8x128xf32, #tpu.memory_space<vmem>>) attributes {dimension_semantics = [#tpu.dimension_semantics<parallel>], iteration_bounds = array<i64: 2>, scalar_prefetch = 0 : i64, scratch_operands = 0 : i64, tpu.core_type = #tpu.core_type<tc>, window_params = [{transform_indices = @transform_0, window_bounds = array<i64: 1, 18, 18, 4>}, {pipeline_mode = #tpu.pipeline_mode<synchronous>, transform_indices = @transform_1, window_bounds = array<i64: 128, 128>}, {transform_indices = @transform_2, window_bounds = array<i64: 256, 128>}, {transform_indices = @transform_3, window_bounds = array<i64: 1, 8, 128>}]} {
    %c0 = arith.constant 0 : index
    %c0_0 = arith.constant 0 : index
    %c0_1 = arith.constant 0 : index
    %c0_2 = arith.constant 0 : index
    %0 = vector.load %arg1[%c0, %c0_0, %c0_1, %c0_2] : memref<1x18x18x4xbf16, #tpu.memory_space<vmem>>, vector<1x18x16x4xbf16>
    %1 = vector.shape_cast %0 : vector<1x18x16x4xbf16> to vector<18x16x4xbf16>
    %2 = vector.extract_strided_slice %1 {offsets = [0, 0, 0], sizes = [16, 16, 4], strides = [1, 1, 1]} : vector<18x16x4xbf16> to vector<16x16x4xbf16>
    %3 = vector.shape_cast %2 : vector<16x16x4xbf16> to vector<256x4xbf16>
    %4 = vector.extract_strided_slice %1 {offsets = [1, 0, 0], sizes = [16, 16, 4], strides = [1, 1, 1]} : vector<18x16x4xbf16> to vector<16x16x4xbf16>
    %5 = vector.shape_cast %4 : vector<16x16x4xbf16> to vector<256x4xbf16>
    %6 = vector.extract_strided_slice %1 {offsets = [2, 0, 0], sizes = [16, 16, 4], strides = [1, 1, 1]} : vector<18x16x4xbf16> to vector<16x16x4xbf16>
    %7 = vector.shape_cast %6 : vector<16x16x4xbf16> to vector<256x4xbf16>
    %c0_3 = arith.constant 0 : index
    %c0_4 = arith.constant 0 : index
    %c1 = arith.constant 1 : index
    %c0_5 = arith.constant 0 : index
    %8 = vector.load %arg1[%c0_3, %c0_4, %c1, %c0_5] : memref<1x18x18x4xbf16, #tpu.memory_space<vmem>>, vector<1x18x16x4xbf16>
    %9 = vector.shape_cast %8 : vector<1x18x16x4xbf16> to vector<18x16x4xbf16>
    %10 = vector.extract_strided_slice %9 {offsets = [0, 0, 0], sizes = [16, 16, 4], strides = [1, 1, 1]} : vector<18x16x4xbf16> to vector<16x16x4xbf16>
    %11 = vector.shape_cast %10 : vector<16x16x4xbf16> to vector<256x4xbf16>
    %12 = vector.extract_strided_slice %9 {offsets = [1, 0, 0], sizes = [16, 16, 4], strides = [1, 1, 1]} : vector<18x16x4xbf16> to vector<16x16x4xbf16>
    %13 = vector.shape_cast %12 : vector<16x16x4xbf16> to vector<256x4xbf16>
    %14 = vector.extract_strided_slice %9 {offsets = [2, 0, 0], sizes = [16, 16, 4], strides = [1, 1, 1]} : vector<18x16x4xbf16> to vector<16x16x4xbf16>
    %15 = vector.shape_cast %14 : vector<16x16x4xbf16> to vector<256x4xbf16>
    %c0_6 = arith.constant 0 : index
    %c0_7 = arith.constant 0 : index
    %c2 = arith.constant 2 : index
    %c0_8 = arith.constant 0 : index
    %16 = vector.load %arg1[%c0_6, %c0_7, %c2, %c0_8] : memref<1x18x18x4xbf16, #tpu.memory_space<vmem>>, vector<1x18x16x4xbf16>
    %17 = vector.shape_cast %16 : vector<1x18x16x4xbf16> to vector<18x16x4xbf16>
    %18 = vector.extract_strided_slice %17 {offsets = [0, 0, 0], sizes = [16, 16, 4], strides = [1, 1, 1]} : vector<18x16x4xbf16> to vector<16x16x4xbf16>
    %19 = vector.shape_cast %18 : vector<16x16x4xbf16> to vector<256x4xbf16>
    %20 = vector.extract_strided_slice %17 {offsets = [1, 0, 0], sizes = [16, 16, 4], strides = [1, 1, 1]} : vector<18x16x4xbf16> to vector<16x16x4xbf16>
    %21 = vector.shape_cast %20 : vector<16x16x4xbf16> to vector<256x4xbf16>
    %22 = vector.extract_strided_slice %17 {offsets = [2, 0, 0], sizes = [16, 16, 4], strides = [1, 1, 1]} : vector<18x16x4xbf16> to vector<16x16x4xbf16>
    %23 = vector.shape_cast %22 : vector<16x16x4xbf16> to vector<256x4xbf16>
    %cst = arith.constant 0.000000e+00 : bf16
    %24 = vector.broadcast %cst : bf16 to vector<256x92xbf16>
    %25 = tpu.concatenate %3, %5, %7, %11, %13, %15, %19, %21, %23, %24 in 1 : vector<256x4xbf16>, vector<256x4xbf16>, vector<256x4xbf16>, vector<256x4xbf16>, vector<256x4xbf16>, vector<256x4xbf16>, vector<256x4xbf16>, vector<256x4xbf16>, vector<256x4xbf16>, vector<256x92xbf16> -> vector<256x128xbf16>
    %c0_9 = arith.constant 0 : index
    %c0_10 = arith.constant 0 : index
    %26 = vector.load %arg2[%c0_9, %c0_10] : memref<128x128xbf16, #tpu.memory_space<vmem>>, vector<128x128xbf16>
    %cst_11 = arith.constant dense<0.000000e+00> : vector<256x128xf32>
    %27 = tpu.matmul %25, %26, %cst_11 {dimension_numbers = #tpu.dot_dimension_numbers<[1], [0], [0], [1], [0, 0, 1, 1], [], []>} : vector<256x128xbf16>, vector<128x128xbf16>, vector<256x128xf32> -> vector<256x128xf32>
    %28 = arith.truncf %27 : vector<256x128xf32> to vector<256x128xbf16>
    %c0_12 = arith.constant 0 : index
    %c0_13 = arith.constant 0 : index
    %29 = vector.load %arg3[%c0_12, %c0_13] : memref<256x128xbf16, #tpu.memory_space<vmem>>, vector<256x128xbf16>
    tpu.vector_store %arg3[%c0_12, %c0_13], %28 {strides = array<i32>} : memref<256x128xbf16, #tpu.memory_space<vmem>>, vector<256x128xbf16>,
    %cst_14 = arith.constant dense<0.000000e+00> : vector<128xf32>
    %30 = vector.multi_reduction <add>, %27, %cst_14 [0] : vector<256x128xf32> to vector<128xf32>
    %31 = vector.shape_cast %30 : vector<128xf32> to vector<1x128xf32>
    %32 = arith.mulf %27, %27 : vector<256x128xf32>
    %cst_15 = arith.constant dense<0.000000e+00> : vector<128xf32>
    %33 = vector.multi_reduction <add>, %32, %cst_15 [0] : vector<256x128xf32> to vector<128xf32>
    %34 = vector.shape_cast %33 : vector<128xf32> to vector<1x128xf32>
    %cst_16 = arith.constant 0.000000e+00 : f32
    %35 = vector.broadcast %cst_16 : f32 to vector<6x128xf32>
    %36 = tpu.concatenate %31, %34, %35 in 0 : vector<1x128xf32>, vector<1x128xf32>, vector<6x128xf32> -> vector<8x128xf32>
    %c0_17 = arith.constant 0 : index
    %c0_18 = arith.constant 0 : index
    %c0_19 = arith.constant 0 : index
    %37 = vector.load %arg4[%c0_17, %c0_18, %c0_19] : memref<1x8x128xf32, #tpu.memory_space<vmem>>, vector<1x8x128xf32>
    %38 = vector.shape_cast %37 : vector<1x8x128xf32> to vector<8x128xf32>
    %39 = vector.shape_cast %36 : vector<8x128xf32> to vector<1x8x128xf32>
    tpu.vector_store %arg4[%c0_17, %c0_18, %c0_19], %39 {strides = array<i32>} : memref<1x8x128xf32, #tpu.memory_space<vmem>>, vector<1x8x128xf32>,
    return
  }
  func.func @transform_0(%arg0: i32) -> (i32, i32, i32, i32) {
    %c0_i32 = arith.constant 0 : i32
    %c0_i32_0 = arith.constant 0 : i32
    %c0_i32_1 = arith.constant 0 : i32
    %c0_i32_2 = arith.constant 0 : i32
    return %arg0, %c0_i32, %c0_i32_0, %c0_i32_1 : i32, i32, i32, i32
  }
  func.func @transform_1(%arg0: i32) -> (i32, i32) {
    %c0_i32 = arith.constant 0 : i32
    %c0_i32_0 = arith.constant 0 : i32
    %c0_i32_1 = arith.constant 0 : i32
    return %c0_i32, %c0_i32_0 : i32, i32
  }
  func.func @transform_2(%arg0: i32) -> (i32, i32) {
    %c0_i32 = arith.constant 0 : i32
    %c0_i32_0 = arith.constant 0 : i32
    return %arg0, %c0_i32 : i32, i32
  }
  func.func @transform_3(%arg0: i32) -> (i32, i32, i32) {
    %c0_i32 = arith.constant 0 : i32
    %c0_i32_0 = arith.constant 0 : i32
    %c0_i32_1 = arith.constant 0 : i32
    return %arg0, %c0_i32, %c0_i32_0 : i32, i32, i32
  }
}

module attributes {stable_mosaic.version = 11 : i64} {
  func.func @_fused_bnrelu_conv2_kernel(%arg0: i32, %arg1: memref<256x128xbf16, #tpu.memory_space<vmem>>, %arg2: memref<1x128xf32, #tpu.memory_space<vmem>>, %arg3: memref<1x128xf32, #tpu.memory_space<vmem>>, %arg4: memref<1152x128xbf16, #tpu.memory_space<vmem>>, %arg5: memref<256x128xbf16, #tpu.memory_space<vmem>>, %arg6: memref<1x8x128xf32, #tpu.memory_space<vmem>>, %arg7: memref<18x18x128xbf16, #tpu.memory_space<vmem>>) attributes {dimension_semantics = [#tpu.dimension_semantics<parallel>], iteration_bounds = array<i64: 2>, scalar_prefetch = 0 : i64, scratch_operands = 1 : i64, tpu.core_type = #tpu.core_type<tc>, window_params = [{transform_indices = @transform_0, window_bounds = array<i64: 256, 128>}, {pipeline_mode = #tpu.pipeline_mode<synchronous>, transform_indices = @transform_1, window_bounds = array<i64: 1, 128>}, {pipeline_mode = #tpu.pipeline_mode<synchronous>, transform_indices = @transform_2, window_bounds = array<i64: 1, 128>}, {pipeline_mode = #tpu.pipeline_mode<synchronous>, transform_indices = @transform_3, window_bounds = array<i64: 1152, 128>}, {transform_indices = @transform_4, window_bounds = array<i64: 256, 128>}, {transform_indices = @transform_5, window_bounds = array<i64: 1, 8, 128>}]} {
    %c0 = arith.constant 0 : index
    %c0_0 = arith.constant 0 : index
    %0 = vector.load %arg1[%c0, %c0_0] : memref<256x128xbf16, #tpu.memory_space<vmem>>, vector<256x128xbf16>
    %1 = arith.extf %0 : vector<256x128xbf16> to vector<256x128xf32>
    %c0_1 = arith.constant 0 : index
    %c0_2 = arith.constant 0 : index
    %2 = vector.load %arg2[%c0_1, %c0_2] : memref<1x128xf32, #tpu.memory_space<vmem>>, vector<1x128xf32>
    %3 = vector.broadcast %2 : vector<1x128xf32> to vector<256x128xf32>
    %4 = arith.mulf %1, %3 : vector<256x128xf32>
    %c0_3 = arith.constant 0 : index
    %c0_4 = arith.constant 0 : index
    %5 = vector.load %arg3[%c0_3, %c0_4] : memref<1x128xf32, #tpu.memory_space<vmem>>, vector<1x128xf32>
    %6 = vector.broadcast %5 : vector<1x128xf32> to vector<256x128xf32>
    %7 = arith.addf %4, %6 : vector<256x128xf32>
    %cst = arith.constant 0.000000e+00 : f32
    %8 = vector.broadcast %cst : f32 to vector<256x128xf32>
    %9 = arith.maximumf %7, %8 : vector<256x128xf32>
    %10 = arith.truncf %9 : vector<256x128xf32> to vector<256x128xbf16>
    %cst_5 = arith.constant 0.000000e+00 : bf16
    %11 = vector.broadcast %cst_5 : bf16 to vector<18x18x128xbf16>
    %c0_6 = arith.constant 0 : index
    %c0_7 = arith.constant 0 : index
    %c0_8 = arith.constant 0 : index
    %12 = vector.load %arg7[%c0_6, %c0_7, %c0_8] : memref<18x18x128xbf16, #tpu.memory_space<vmem>>, vector<18x18x128xbf16>
    tpu.vector_store %arg7[%c0_6, %c0_7, %c0_8], %11 {strides = array<i32>} : memref<18x18x128xbf16, #tpu.memory_space<vmem>>, vector<18x18x128xbf16>,
    %13 = vector.shape_cast %10 : vector<256x128xbf16> to vector<16x16x128xbf16>
    %c1 = arith.constant 1 : index
    %c1_9 = arith.constant 1 : index
    %c0_10 = arith.constant 0 : index
    %14 = vector.load %arg7[%c1, %c1_9, %c0_10] : memref<18x18x128xbf16, #tpu.memory_space<vmem>>, vector<16x16x128xbf16>
    tpu.vector_store %arg7[%c1, %c1_9, %c0_10], %13 {strides = array<i32>} : memref<18x18x128xbf16, #tpu.memory_space<vmem>>, vector<16x16x128xbf16>,
    %c0_11 = arith.constant 0 : index
    %c0_12 = arith.constant 0 : index
    %c0_13 = arith.constant 0 : index
    %15 = vector.load %arg7[%c0_11, %c0_12, %c0_13] : memref<18x18x128xbf16, #tpu.memory_space<vmem>>, vector<18x16x128xbf16>
    %16 = vector.extract_strided_slice %15 {offsets = [0, 0, 0], sizes = [16, 16, 128], strides = [1, 1, 1]} : vector<18x16x128xbf16> to vector<16x16x128xbf16>
    %17 = vector.shape_cast %16 : vector<16x16x128xbf16> to vector<256x128xbf16>
    %18 = vector.extract_strided_slice %15 {offsets = [1, 0, 0], sizes = [16, 16, 128], strides = [1, 1, 1]} : vector<18x16x128xbf16> to vector<16x16x128xbf16>
    %19 = vector.shape_cast %18 : vector<16x16x128xbf16> to vector<256x128xbf16>
    %20 = vector.extract_strided_slice %15 {offsets = [2, 0, 0], sizes = [16, 16, 128], strides = [1, 1, 1]} : vector<18x16x128xbf16> to vector<16x16x128xbf16>
    %21 = vector.shape_cast %20 : vector<16x16x128xbf16> to vector<256x128xbf16>
    %c0_14 = arith.constant 0 : index
    %c1_15 = arith.constant 1 : index
    %c0_16 = arith.constant 0 : index
    %22 = vector.load %arg7[%c0_14, %c1_15, %c0_16] : memref<18x18x128xbf16, #tpu.memory_space<vmem>>, vector<18x16x128xbf16>
    %23 = vector.extract_strided_slice %22 {offsets = [0, 0, 0], sizes = [16, 16, 128], strides = [1, 1, 1]} : vector<18x16x128xbf16> to vector<16x16x128xbf16>
    %24 = vector.shape_cast %23 : vector<16x16x128xbf16> to vector<256x128xbf16>
    %25 = vector.extract_strided_slice %22 {offsets = [1, 0, 0], sizes = [16, 16, 128], strides = [1, 1, 1]} : vector<18x16x128xbf16> to vector<16x16x128xbf16>
    %26 = vector.shape_cast %25 : vector<16x16x128xbf16> to vector<256x128xbf16>
    %27 = vector.extract_strided_slice %22 {offsets = [2, 0, 0], sizes = [16, 16, 128], strides = [1, 1, 1]} : vector<18x16x128xbf16> to vector<16x16x128xbf16>
    %28 = vector.shape_cast %27 : vector<16x16x128xbf16> to vector<256x128xbf16>
    %c0_17 = arith.constant 0 : index
    %c2 = arith.constant 2 : index
    %c0_18 = arith.constant 0 : index
    %29 = vector.load %arg7[%c0_17, %c2, %c0_18] : memref<18x18x128xbf16, #tpu.memory_space<vmem>>, vector<18x16x128xbf16>
    %30 = vector.extract_strided_slice %29 {offsets = [0, 0, 0], sizes = [16, 16, 128], strides = [1, 1, 1]} : vector<18x16x128xbf16> to vector<16x16x128xbf16>
    %31 = vector.shape_cast %30 : vector<16x16x128xbf16> to vector<256x128xbf16>
    %32 = vector.extract_strided_slice %29 {offsets = [1, 0, 0], sizes = [16, 16, 128], strides = [1, 1, 1]} : vector<18x16x128xbf16> to vector<16x16x128xbf16>
    %33 = vector.shape_cast %32 : vector<16x16x128xbf16> to vector<256x128xbf16>
    %34 = vector.extract_strided_slice %29 {offsets = [2, 0, 0], sizes = [16, 16, 128], strides = [1, 1, 1]} : vector<18x16x128xbf16> to vector<16x16x128xbf16>
    %35 = vector.shape_cast %34 : vector<16x16x128xbf16> to vector<256x128xbf16>
    %36 = tpu.concatenate %17, %19, %21, %24, %26, %28, %31, %33, %35 in 1 : vector<256x128xbf16>, vector<256x128xbf16>, vector<256x128xbf16>, vector<256x128xbf16>, vector<256x128xbf16>, vector<256x128xbf16>, vector<256x128xbf16>, vector<256x128xbf16>, vector<256x128xbf16> -> vector<256x1152xbf16>
    %c0_19 = arith.constant 0 : index
    %c0_20 = arith.constant 0 : index
    %37 = vector.load %arg4[%c0_19, %c0_20] : memref<1152x128xbf16, #tpu.memory_space<vmem>>, vector<1152x128xbf16>
    %cst_21 = arith.constant dense<0.000000e+00> : vector<256x128xf32>
    %38 = tpu.matmul %36, %37, %cst_21 {dimension_numbers = #tpu.dot_dimension_numbers<[1], [0], [0], [1], [0, 0, 1, 1], [], []>} : vector<256x1152xbf16>, vector<1152x128xbf16>, vector<256x128xf32> -> vector<256x128xf32>
    %39 = arith.truncf %38 : vector<256x128xf32> to vector<256x128xbf16>
    %c0_22 = arith.constant 0 : index
    %c0_23 = arith.constant 0 : index
    %40 = vector.load %arg5[%c0_22, %c0_23] : memref<256x128xbf16, #tpu.memory_space<vmem>>, vector<256x128xbf16>
    tpu.vector_store %arg5[%c0_22, %c0_23], %39 {strides = array<i32>} : memref<256x128xbf16, #tpu.memory_space<vmem>>, vector<256x128xbf16>,
    %cst_24 = arith.constant dense<0.000000e+00> : vector<128xf32>
    %41 = vector.multi_reduction <add>, %38, %cst_24 [0] : vector<256x128xf32> to vector<128xf32>
    %42 = vector.shape_cast %41 : vector<128xf32> to vector<1x128xf32>
    %43 = arith.mulf %38, %38 : vector<256x128xf32>
    %cst_25 = arith.constant dense<0.000000e+00> : vector<128xf32>
    %44 = vector.multi_reduction <add>, %43, %cst_25 [0] : vector<256x128xf32> to vector<128xf32>
    %45 = vector.shape_cast %44 : vector<128xf32> to vector<1x128xf32>
    %cst_26 = arith.constant 0.000000e+00 : f32
    %46 = vector.broadcast %cst_26 : f32 to vector<6x128xf32>
    %47 = tpu.concatenate %42, %45, %46 in 0 : vector<1x128xf32>, vector<1x128xf32>, vector<6x128xf32> -> vector<8x128xf32>
    %c0_27 = arith.constant 0 : index
    %c0_28 = arith.constant 0 : index
    %c0_29 = arith.constant 0 : index
    %48 = vector.load %arg6[%c0_27, %c0_28, %c0_29] : memref<1x8x128xf32, #tpu.memory_space<vmem>>, vector<1x8x128xf32>
    %49 = vector.shape_cast %48 : vector<1x8x128xf32> to vector<8x128xf32>
    %50 = vector.shape_cast %47 : vector<8x128xf32> to vector<1x8x128xf32>
    tpu.vector_store %arg6[%c0_27, %c0_28, %c0_29], %50 {strides = array<i32>} : memref<1x8x128xf32, #tpu.memory_space<vmem>>, vector<1x8x128xf32>,
    return
  }
  func.func @transform_0(%arg0: i32) -> (i32, i32) {
    %c0_i32 = arith.constant 0 : i32
    %c0_i32_0 = arith.constant 0 : i32
    return %arg0, %c0_i32 : i32, i32
  }
  func.func @transform_1(%arg0: i32) -> (i32, i32) {
    %c0_i32 = arith.constant 0 : i32
    %c0_i32_0 = arith.constant 0 : i32
    %c0_i32_1 = arith.constant 0 : i32
    return %c0_i32, %c0_i32_0 : i32, i32
  }
  func.func @transform_2(%arg0: i32) -> (i32, i32) {
    %c0_i32 = arith.constant 0 : i32
    %c0_i32_0 = arith.constant 0 : i32
    %c0_i32_1 = arith.constant 0 : i32
    return %c0_i32, %c0_i32_0 : i32, i32
  }
  func.func @transform_3(%arg0: i32) -> (i32, i32) {
    %c0_i32 = arith.constant 0 : i32
    %c0_i32_0 = arith.constant 0 : i32
    %c0_i32_1 = arith.constant 0 : i32
    return %c0_i32, %c0_i32_0 : i32, i32
  }
  func.func @transform_4(%arg0: i32) -> (i32, i32) {
    %c0_i32 = arith.constant 0 : i32
    %c0_i32_0 = arith.constant 0 : i32
    return %arg0, %c0_i32 : i32, i32
  }
  func.func @transform_5(%arg0: i32) -> (i32, i32, i32) {
    %c0_i32 = arith.constant 0 : i32
    %c0_i32_0 = arith.constant 0 : i32
    %c0_i32_1 = arith.constant 0 : i32
    return %arg0, %c0_i32, %c0_i32_0 : i32, i32, i32
  }
}

module attributes {stable_mosaic.version = 11 : i64} {
  func.func @_bn_relu_kernel(%arg0: i32, %arg1: memref<1x256x128xbf16, #tpu.memory_space<vmem>>, %arg2: memref<1x128xf32, #tpu.memory_space<vmem>>, %arg3: memref<1x128xf32, #tpu.memory_space<vmem>>, %arg4: memref<1x256x128xf32, #tpu.memory_space<vmem>>) attributes {dimension_semantics = [#tpu.dimension_semantics<parallel>], iteration_bounds = array<i64: 2>, scalar_prefetch = 0 : i64, scratch_operands = 0 : i64, tpu.core_type = #tpu.core_type<tc>, window_params = [{transform_indices = @transform_0, window_bounds = array<i64: 1, 256, 128>}, {pipeline_mode = #tpu.pipeline_mode<synchronous>, transform_indices = @transform_1, window_bounds = array<i64: 1, 128>}, {pipeline_mode = #tpu.pipeline_mode<synchronous>, transform_indices = @transform_2, window_bounds = array<i64: 1, 128>}, {transform_indices = @transform_3, window_bounds = array<i64: 1, 256, 128>}]} {
    %c0 = arith.constant 0 : index
    %c0_0 = arith.constant 0 : index
    %c0_1 = arith.constant 0 : index
    %0 = vector.load %arg1[%c0, %c0_0, %c0_1] : memref<1x256x128xbf16, #tpu.memory_space<vmem>>, vector<1x256x128xbf16>
    %1 = vector.shape_cast %0 : vector<1x256x128xbf16> to vector<256x128xbf16>
    %2 = arith.extf %1 : vector<256x128xbf16> to vector<256x128xf32>
    %c0_2 = arith.constant 0 : index
    %c0_3 = arith.constant 0 : index
    %3 = vector.load %arg2[%c0_2, %c0_3] : memref<1x128xf32, #tpu.memory_space<vmem>>, vector<1x128xf32>
    %4 = vector.broadcast %3 : vector<1x128xf32> to vector<256x128xf32>
    %5 = arith.mulf %2, %4 : vector<256x128xf32>
    %c0_4 = arith.constant 0 : index
    %c0_5 = arith.constant 0 : index
    %6 = vector.load %arg3[%c0_4, %c0_5] : memref<1x128xf32, #tpu.memory_space<vmem>>, vector<1x128xf32>
    %7 = vector.broadcast %6 : vector<1x128xf32> to vector<256x128xf32>
    %8 = arith.addf %5, %7 : vector<256x128xf32>
    %cst = arith.constant 0.000000e+00 : f32
    %9 = vector.broadcast %cst : f32 to vector<256x128xf32>
    %10 = arith.maximumf %8, %9 : vector<256x128xf32>
    %c0_6 = arith.constant 0 : index
    %c0_7 = arith.constant 0 : index
    %c0_8 = arith.constant 0 : index
    %11 = vector.load %arg4[%c0_6, %c0_7, %c0_8] : memref<1x256x128xf32, #tpu.memory_space<vmem>>, vector<1x256x128xf32>
    %12 = vector.shape_cast %11 : vector<1x256x128xf32> to vector<256x128xf32>
    %13 = vector.shape_cast %10 : vector<256x128xf32> to vector<1x256x128xf32>
    tpu.vector_store %arg4[%c0_6, %c0_7, %c0_8], %13 {strides = array<i32>} : memref<1x256x128xf32, #tpu.memory_space<vmem>>, vector<1x256x128xf32>,
    return
  }
  func.func @transform_0(%arg0: i32) -> (i32, i32, i32) {
    %c0_i32 = arith.constant 0 : i32
    %c0_i32_0 = arith.constant 0 : i32
    %c0_i32_1 = arith.constant 0 : i32
    return %arg0, %c0_i32, %c0_i32_0 : i32, i32, i32
  }
  func.func @transform_1(%arg0: i32) -> (i32, i32) {
    %c0_i32 = arith.constant 0 : i32
    %c0_i32_0 = arith.constant 0 : i32
    %c0_i32_1 = arith.constant 0 : i32
    return %c0_i32, %c0_i32_0 : i32, i32
  }
  func.func @transform_2(%arg0: i32) -> (i32, i32) {
    %c0_i32 = arith.constant 0 : i32
    %c0_i32_0 = arith.constant 0 : i32
    %c0_i32_1 = arith.constant 0 : i32
    return %c0_i32, %c0_i32_0 : i32, i32
  }
  func.func @transform_3(%arg0: i32) -> (i32, i32, i32) {
    %c0_i32 = arith.constant 0 : i32
    %c0_i32_0 = arith.constant 0 : i32
    %c0_i32_1 = arith.constant 0 : i32
    return %arg0, %c0_i32, %c0_i32_0 : i32, i32, i32
  }
}

</mosaic_0001>

<llo_original>
// kernel: conv_block_forward.5
$region0: #{conv_block_forward.5}
  #allocation0 [shape = 'u32[]', space=smem, size = 0x4, offset = 0x4, fixed_abs, tag = 'smem constant byte address 0x4 - core index']
  #allocation1 [shape = 'u32[144,128]{1,0:T(1,128)}', space=vmem, size = 0x12000, scoped, tag = 'internal scratch']
  %s0 = inlined_call_operand.vmem [shape: bf16[2,256,128], index: 0, kind: input, shape index: {}]
  %s1 = inlined_call_operand.vmem [shape: f32[1,128], index: 1, kind: input, shape index: {}]
  %s2 = inlined_call_operand.vmem [shape: f32[1,128], index: 2, kind: input, shape index: {}]
  %s3 = inlined_call_operand.vmem [shape: f32[2,256,128], index: 3, kind: output, shape index: {}]
  %s4 = sld [smem:[#allocation0]]
  $region45: #{conv_block_forward.5} parent=0
    _
  %s6 = ssub.s32 1, %s4
  %s7 = scalar_select 0, %s6, %s4
  loop: start=0, step=1, limit=4
  $region2: #{conv_block_forward.5} parent=0 // loop_pre_header
    _
  $region3: #{conv_block_forward.5} parent=0 // loop_header
    %s9 = sphi 0, %s13
    %p10 = scmp.ge.s32.totalorder %s9, 4
    %s19 = sphi 0, %s21
    %s22 = sphi 0, %s19
    %s23 = sphi 0, %s22
    %s39 = sphi 0, %s23
    %s43 = sphi 0, %s43
    %s45 = sphi 0, %s43
    %s46 = sphi 0, %s45
    %s60 = sphi 0, %s46
    %s64 = sphi 0, %s64
    %s66 = sphi 0, %s64
    %s67 = sphi 0, %s66
    %s81 = sphi 0, %s67
    %s87 = sphi 0, %s89
    %s90 = sphi 0, %s87
    %s91 = sphi 0, %s90
    %s107 = sphi 0, %s91
  $region4: #{conv_block_forward.5} parent=0 // loop_header_branch
    %12 = sbr.rel (%p10) target = $region8
  $region5: #{conv_block_forward.5} parent=0 // loop_body
    %s14 = ssub.s32 %s9, 1
    %s15 = ssub.s32 %s9, 2
    %s16 = sadd.s32 %s9, 1
    %s17 = ssub.s32 %s9, %s16
    %p18 = scmp.eq.s32.totalorder %s17, 0
    %s20 = sadd.s32 %s19, 1
    %s21 = scalar_select %p18, %s19, %s20
    %p24 = pneg %p18
    %p25 = scmp.eq.s32.totalorder %s9, 1
    %p26 = por %p24, %p25
    %p27 = scmp.ne.s32.totalorder %s19, %s22
    %p28 = scmp.eq.s32.totalorder %s9, 0
    %p29 = por %p27, %p28
    %p30 = scmp.ne.s32.totalorder %s19, %s22
    %p31 = scmp.eq.s32.totalorder %s14, 1
    %p32 = por %p30, %p31
    %p33 = scmp.ne.s32.totalorder %s22, %s23
    %p34 = scmp.eq.s32.totalorder %s14, 0
    %p35 = por %p33, %p34
    %p36 = scmp.ne.s32.totalorder %s22, %s23
    %p37 = scmp.eq.s32.totalorder %s15, 1
    %p38 = por %p36, %p37
    %p40 = scmp.ne.s32.totalorder %s23, %s39
    %p41 = scmp.eq.s32.totalorder %s15, 0
    %p42 = por %p40, %p41
    %s44 = sadd.s32 %s43, 1
    %p47 = scmp.eq.s32.totalorder %s9, 1
    %p48 = scmp.ne.s32.totalorder %s43, %s45
    %p49 = scmp.eq.s32.totalorder %s9, 0
    %p50 = por %p48, %p49
    %p51 = scmp.ne.s32.totalorder %s43, %s45
    %p52 = scmp.eq.s32.totalorder %s14, 1
    %p53 = por %p51, %p52
    %p54 = scmp.ne.s32.totalorder %s45, %s46
    %p55 = scmp.eq.s32.totalorder %s14, 0
    %p56 = por %p54, %p55
    %p57 = scmp.ne.s32.totalorder %s45, %s46
    %p58 = scmp.eq.s32.totalorder %s15, 1
    %p59 = por %p57, %p58
    %p61 = scmp.ne.s32.totalorder %s46, %s60
    %p62 = scmp.eq.s32.totalorder %s15, 0
    %p63 = por %p61, %p62
    %s65 = sadd.s32 %s64, 1
    %p68 = scmp.eq.s32.totalorder %s9, 1
    %p69 = scmp.ne.s32.totalorder %s64, %s66
    %p70 = scmp.eq.s32.totalorder %s9, 0
    %p71 = por %p69, %p70
    %p72 = scmp.ne.s32.totalorder %s64, %s66
    %p73 = scmp.eq.s32.totalorder %s14, 1
    %p74 = por %p72, %p73
    %p75 = scmp.ne.s32.totalorder %s66, %s67
    %p76 = scmp.eq.s32.totalorder %s14, 0
    %p77 = por %p75, %p76
    %p78 = scmp.ne.s32.totalorder %s66, %s67
    %p79 = scmp.eq.s32.totalorder %s15, 1
    %p80 = por %p78, %p79
    %p82 = scmp.ne.s32.totalorder %s67, %s81
    %p83 = scmp.eq.s32.totalorder %s15, 0
    %p84 = por %p82, %p83
    %s85 = ssub.s32 %s9, %s16
    %p86 = scmp.eq.s32.totalorder %s85, 0
    %s88 = sadd.s32 %s87, 1
    %s89 = scalar_select %p86, %s87, %s88
    %p92 = pneg %p86
    %p93 = scmp.eq.s32.totalorder %s9, 1
    %p94 = por %p92, %p93
    %p95 = scmp.ne.s32.totalorder %s87, %s90
    %p96 = scmp.eq.s32.totalorder %s9, 0
    %p97 = por %p95, %p96
    %p98 = scmp.ne.s32.totalorder %s87, %s90
    %p99 = scmp.eq.s32.totalorder %s14, 1
    %p100 = por %p98, %p99
    %p101 = scmp.ne.s32.totalorder %s90, %s91
    %p102 = scmp.eq.s32.totalorder %s14, 0
    %p103 = por %p101, %p102
    %p104 = scmp.ne.s32.totalorder %s90, %s91
    %p105 = scmp.eq.s32.totalorder %s15, 1
    %p106 = por %p104, %p105
    %p108 = scmp.ne.s32.totalorder %s91, %s107
    %p109 = scmp.eq.s32.totalorder %s15, 0
    %p110 = por %p108, %p109
    %p111 = scmp.le.s32.totalorder 1, %s9
    %p112 = scmp.lt.s32.totalorder %s9, 3
    %p113 = pnand %p111, %p112
    %p114 = pneg %p113
    // Predicated region
    $region9: #{conv_block_forward.5} parent=5 // pred_check
      _
    $region10: #{conv_block_forward.5} parent=5 // pred_check_branch
      %116 = sbr.rel (%p113) target = $region12
    $region11: #{conv_block_forward.5} parent=5 // pred_region
      %s117 = ssub.s32 %s9, 1
      // Predicated region
      $region13: #{conv_block_forward.5} parent=11 // pred_check
        %p118 = pneg %p56
      $region14: #{conv_block_forward.5} parent=11 // pred_check_branch
        %120 = sbr.rel (%p118) target = $region16
      $region15: #{conv_block_forward.5} parent=11 // pred_region
        _
      $region16: #{conv_block_forward.5} parent=11 // pred_fallthru
        _
      // Predicated region
      $region17: #{conv_block_forward.5} parent=11 // pred_check
        %p121 = pneg %p77
      $region18: #{conv_block_forward.5} parent=11 // pred_check_branch
        %123 = sbr.rel (%p121) target = $region20
      $region19: #{conv_block_forward.5} parent=11 // pred_region
        _
      $region20: #{conv_block_forward.5} parent=11 // pred_fallthru
        _
    $region12: #{conv_block_forward.5} parent=5 // pred_fallthru
      _
    %p124 = scmp.lt.s32.totalorder %s9, 2
    // Predicated region
    $region21: #{conv_block_forward.5} parent=5 // pred_check
      %p125 = pneg %p124
    $region22: #{conv_block_forward.5} parent=5 // pred_check_branch
      %127 = sbr.rel (%p125) target = $region24
    $region23: #{conv_block_forward.5} parent=5 // pred_region
      // Predicated region
      $region25: #{conv_block_forward.5} parent=23 // pred_check
        %p128 = pneg %p29
      $region26: #{conv_block_forward.5} parent=23 // pred_check_branch
        %130 = sbr.rel (%p128) target = $region28
      $region27: #{conv_block_forward.5} parent=23 // pred_region
        %p131 = scmp.lt.s32.totalorder %s9, 1
        %s132 = scalar_select %p131, %s9, 1
        %s133 = smul.addr %s132, 32
        %s134 = smul.addr %s133, 4
        %s135 = scalar_lea.vmem %s0, %s134
      $region28: #{conv_block_forward.5} parent=23 // pred_fallthru
        _
    $region24: #{conv_block_forward.5} parent=5 // pred_fallthru
      _
    %p136 = scmp.le.s32.totalorder 1, %s9
    %p137 = scmp.lt.s32.totalorder %s9, 3
    %p138 = pnand %p136, %p137
    %p139 = pneg %p138
    // Predicated region
    $region29: #{conv_block_forward.5} parent=5 // pred_check
      _
    $region30: #{conv_block_forward.5} parent=5 // pred_check_branch
      %141 = sbr.rel (%p138) target = $region32
    $region31: #{conv_block_forward.5} parent=5 // pred_region
      %s142 = ssub.s32 %s9, 1
      %p143 = scmp.lt.s32.totalorder %s14, 1
      %s144 = scalar_select %p143, %s14, 1
      %s145 = smul.addr %s144, 32
      %s146 = smul.addr %s145, 4
      %s147 = scalar_lea.vmem %s0, %s146
      %p148 = pneg %p35
      %p149 = pneg %p32
      %p150 = pneg %p56
      %p151 = pneg %p53
      %p152 = pneg %p77
      %p153 = pneg %p74
      %p154 = pneg %p103
      %p155 = pneg %p100
      %p156 = scmp.lt.s32.totalorder %s14, 1
      %s157 = scalar_select %p156, %s14, 1
      %s158 = smul.addr %s157, 32
      %s159 = smul.addr %s158, 8
      %s160 = scalar_lea.vmem %s3, %s159
      %p161 = scmp.lt.s32.totalorder %s14, 1
      %s162 = scalar_select %p161, %s14, 1
      %s163 = smul.addr %s162, 32
      %s164 = smul.addr %s163, 4
      %s165 = scalar_lea.vmem %s0, %s164
      %p166 = scmp.lt.s32.totalorder %s14, 1
      %s167 = scalar_select %p166, %s14, 1
      %s168 = smul.addr %s167, 32
      %s169 = smul.addr %s168, 8
      %s170 = scalar_lea.vmem %s3, %s169
      %v171 = vld [vmem:[%s165] sm:$0xf]
      %v172 = vld [vmem:[%s165 + $0x4] sm:$0xf]
      %v173 = vld [vmem:[%s165 + $0x8] sm:$0xf]
      %v174 = vld [vmem:[%s165 + $0xc] sm:$0xf]
      %v175 = vld [vmem:[%s165 + $0x10] sm:$0xf]
      %v176 = vld [vmem:[%s165 + $0x14] sm:$0xf]
      %v177 = vld [vmem:[%s165 + $0x18] sm:$0xf]
      %v178 = vld [vmem:[%s165 + $0x1c] sm:$0xf]
      %v179 = vld [vmem:[%s165 + $0x20] sm:$0xf]
      %v180 = vld [vmem:[%s165 + $0x24] sm:$0xf]
      %v181 = vld [vmem:[%s165 + $0x28] sm:$0xf]
      %v182 = vld [vmem:[%s165 + $0x2c] sm:$0xf]
      %v183 = vld [vmem:[%s165 + $0x30] sm:$0xf]
      %v184 = vld [vmem:[%s165 + $0x34] sm:$0xf]
      %v185 = vld [vmem:[%s165 + $0x38] sm:$0xf]
      %v186 = vld [vmem:[%s165 + $0x3c] sm:$0xf]
      %v187 = vld [vmem:[%s165 + $0x40] sm:$0xf]
      %v188 = vld [vmem:[%s165 + $0x44] sm:$0xf]
      %v189 = vld [vmem:[%s165 + $0x48] sm:$0xf]
      %v190 = vld [vmem:[%s165 + $0x4c] sm:$0xf]
      %v191 = vld [vmem:[%s165 + $0x50] sm:$0xf]
      %v192 = vld [vmem:[%s165 + $0x54] sm:$0xf]
      %v193 = vld [vmem:[%s165 + $0x58] sm:$0xf]
      %v194 = vld [vmem:[%s165 + $0x5c] sm:$0xf]
      %v195 = vld [vmem:[%s165 + $0x60] sm:$0xf]
      %v196 = vld [vmem:[%s165 + $0x64] sm:$0xf]
      %v197 = vld [vmem:[%s165 + $0x68] sm:$0xf]
      %v198 = vld [vmem:[%s165 + $0x6c] sm:$0xf]
      %v199 = vld [vmem:[%s165 + $0x70] sm:$0xf]
      %v200 = vld [vmem:[%s165 + $0x74] sm:$0xf]
      %v201 = vld [vmem:[%s165 + $0x78] sm:$0xf]
      %v202 = vld [vmem:[%s165 + $0x7c] sm:$0xf]
      %v203 = vunpack.c.l.bf16 %v171
      %v204 = vunpack.c.l.bf16 %v172
      %v205 = vunpack.c.l.bf16 %v173
      %v206 = vunpack.c.l.bf16 %v174
      %v207 = vunpack.c.l.bf16 %v175
      %v208 = vunpack.c.l.bf16 %v176
      %v209 = vunpack.c.l.bf16 %v177
      %v210 = vunpack.c.l.bf16 %v178
      %v211 = vunpack.c.l.bf16 %v179
      %v212 = vunpack.c.l.bf16 %v180
      %v213 = vunpack.c.l.bf16 %v181
      %v214 = vunpack.c.l.bf16 %v182
      %v215 = vunpack.c.l.bf16 %v183
      %v216 = vunpack.c.l.bf16 %v184
      %v217 = vunpack.c.l.bf16 %v185
      %v218 = vunpack.c.l.bf16 %v186
      %v219 = vunpack.c.l.bf16 %v187
      %v220 = vunpack.c.l.bf16 %v188
      %v221 = vunpack.c.l.bf16 %v189
      %v222 = vunpack.c.l.bf16 %v190
      %v223 = vunpack.c.l.bf16 %v191
      %v224 = vunpack.c.l.bf16 %v192
      %v225 = vunpack.c.l.bf16 %v193
      %v226 = vunpack.c.l.bf16 %v194
      %v227 = vunpack.c.l.bf16 %v195
      %v228 = vunpack.c.l.bf16 %v196
      %v229 = vunpack.c.l.bf16 %v197
      %v230 = vunpack.c.l.bf16 %v198
      %v231 = vunpack.c.l.bf16 %v199
      %v232 = vunpack.c.l.bf16 %v200
      %v233 = vunpack.c.l.bf16 %v201
      %v234 = vunpack.c.l.bf16 %v202
      %v235 = vld [vmem:[%s1] sm:$0x1]
      %v237 = vlaneseq
      %v238 = vshrl.u32 %v237, 7
      %v239 = vsub.s32 0, %v238
      %v240 = vrot.slane %v235, %v239
      %v242 = vmul.f32 %v203, %v240
      %v243 = vmul.f32 %v204, %v240
      %v244 = vmul.f32 %v205, %v240
      %v245 = vmul.f32 %v206, %v240
      %v246 = vmul.f32 %v207, %v240
      %v247 = vmul.f32 %v208, %v240
      %v248 = vmul.f32 %v209, %v240
      %v249 = vmul.f32 %v210, %v240
      %v250 = vmul.f32 %v211, %v240
      %v251 = vmul.f32 %v212, %v240
      %v252 = vmul.f32 %v213, %v240
      %v253 = vmul.f32 %v214, %v240
      %v254 = vmul.f32 %v215, %v240
      %v255 = vmul.f32 %v216, %v240
      %v256 = vmul.f32 %v217, %v240
      %v257 = vmul.f32 %v218, %v240
      %v258 = vmul.f32 %v219, %v240
      %v259 = vmul.f32 %v220, %v240
      %v260 = vmul.f32 %v221, %v240
      %v261 = vmul.f32 %v222, %v240
      %v262 = vmul.f32 %v223, %v240
      %v263 = vmul.f32 %v224, %v240
      %v264 = vmul.f32 %v225, %v240
      %v265 = vmul.f32 %v226, %v240
      %v266 = vmul.f32 %v227, %v240
      %v267 = vmul.f32 %v228, %v240
      %v268 = vmul.f32 %v229, %v240
      %v269 = vmul.f32 %v230, %v240
      %v270 = vmul.f32 %v231, %v240
      %v271 = vmul.f32 %v232, %v240
      %v272 = vmul.f32 %v233, %v240
      %v273 = vmul.f32 %v234, %v240
      %v274 = vld [vmem:[%s2] sm:$0x1]
      %v276 = vlaneseq
      %v277 = vshrl.u32 %v276, 7
      %v278 = vsub.s32 0, %v277
      %v279 = vrot.slane %v274, %v278
      %v281 = vadd.f32 %v242, %v279
      %v282 = vadd.f32 %v243, %v279
      %v283 = vadd.f32 %v244, %v279
      %v284 = vadd.f32 %v245, %v279
      %v285 = vadd.f32 %v246, %v279
      %v286 = vadd.f32 %v247, %v279
      %v287 = vadd.f32 %v248, %v279
      %v288 = vadd.f32 %v249, %v279
      %v289 = vadd.f32 %v250, %v279
      %v290 = vadd.f32 %v251, %v279
      %v291 = vadd.f32 %v252, %v279
      %v292 = vadd.f32 %v253, %v279
      %v293 = vadd.f32 %v254, %v279
      %v294 = vadd.f32 %v255, %v279
      %v295 = vadd.f32 %v256, %v279
      %v296 = vadd.f32 %v257, %v279
      %v297 = vadd.f32 %v258, %v279
      %v298 = vadd.f32 %v259, %v279
      %v299 = vadd.f32 %v260, %v279
      %v300 = vadd.f32 %v261, %v279
      %v301 = vadd.f32 %v262, %v279
      %v302 = vadd.f32 %v263, %v279
      %v303 = vadd.f32 %v264, %v279
      %v304 = vadd.f32 %v265, %v279
      %v305 = vadd.f32 %v266, %v279
      %v306 = vadd.f32 %v267, %v279
      %v307 = vadd.f32 %v268, %v279
      %v308 = vadd.f32 %v269, %v279
      %v309 = vadd.f32 %v270, %v279
      %v310 = vadd.f32 %v271, %v279
      %v311 = vadd.f32 %v272, %v279
      %v312 = vadd.f32 %v273, %v279
      %v313 = vmax.f32 %v281, 0.0
      %v314 = vmax.f32 %v282, 0.0
      %v315 = vmax.f32 %v283, 0.0
      %v316 = vmax.f32 %v284, 0.0
      %v317 = vmax.f32 %v285, 0.0
      %v318 = vmax.f32 %v286, 0.0
      %v319 = vmax.f32 %v287, 0.0
      %v320 = vmax.f32 %v288, 0.0
      %v321 = vmax.f32 %v289, 0.0
      %v322 = vmax.f32 %v290, 0.0
      %v323 = vmax.f32 %v291, 0.0
      %v324 = vmax.f32 %v292, 0.0
      %v325 = vmax.f32 %v293, 0.0
      %v326 = vmax.f32 %v294, 0.0
      %v327 = vmax.f32 %v295, 0.0
      %v328 = vmax.f32 %v296, 0.0
      %v329 = vmax.f32 %v297, 0.0
      %v330 = vmax.f32 %v298, 0.0
      %v331 = vmax.f32 %v299, 0.0
      %v332 = vmax.f32 %v300, 0.0
      %v333 = vmax.f32 %v301, 0.0
      %v334 = vmax.f32 %v302, 0.0
      %v335 = vmax.f32 %v303, 0.0
      %v336 = vmax.f32 %v304, 0.0
      %v337 = vmax.f32 %v305, 0.0
      %v338 = vmax.f32 %v306, 0.0
      %v339 = vmax.f32 %v307, 0.0
      %v340 = vmax.f32 %v308, 0.0
      %v341 = vmax.f32 %v309, 0.0
      %v342 = vmax.f32 %v310, 0.0
      %v343 = vmax.f32 %v311, 0.0
      %v344 = vmax.f32 %v312, 0.0
      %345 = vst [vmem:[%s170] sm:$0xff] %v313
      %346 = vst [vmem:[%s170 + $0x8] sm:$0xff] %v314
      %347 = vst [vmem:[%s170 + $0x10] sm:$0xff] %v315
      %348 = vst [vmem:[%s170 + $0x18] sm:$0xff] %v316
      %349 = vst [vmem:[%s170 + $0x20] sm:$0xff] %v317
      %350 = vst [vmem:[%s170 + $0x28] sm:$0xff] %v318
      %351 = vst [vmem:[%s170 + $0x30] sm:$0xff] %v319
      %352 = vst [vmem:[%s170 + $0x38] sm:$0xff] %v320
      %353 = vst [vmem:[%s170 + $0x40] sm:$0xff] %v321
      %354 = vst [vmem:[%s170 + $0x48] sm:$0xff] %v322
      %355 = vst [vmem:[%s170 + $0x50] sm:$0xff] %v323
      %356 = vst [vmem:[%s170 + $0x58] sm:$0xff] %v324
      %357 = vst [vmem:[%s170 + $0x60] sm:$0xff] %v325
      %358 = vst [vmem:[%s170 + $0x68] sm:$0xff] %v326
      %359 = vst [vmem:[%s170 + $0x70] sm:$0xff] %v327
      %360 = vst [vmem:[%s170 + $0x78] sm:$0xff] %v328
      %361 = vst [vmem:[%s170 + $0x80] sm:$0xff] %v329
      %362 = vst [vmem:[%s170 + $0x88] sm:$0xff] %v330
      %363 = vst [vmem:[%s170 + $0x90] sm:$0xff] %v331
      %364 = vst [vmem:[%s170 + $0x98] sm:$0xff] %v332
      %365 = vst [vmem:[%s170 + $0xa0] sm:$0xff] %v333
      %366 = vst [vmem:[%s170 + $0xa8] sm:$0xff] %v334
      %367 = vst [vmem:[%s170 + $0xb0] sm:$0xff] %v335
      %368 = vst [vmem:[%s170 + $0xb8] sm:$0xff] %v336
      %369 = vst [vmem:[%s170 + $0xc0] sm:$0xff] %v337
      %370 = vst [vmem:[%s170 + $0xc8] sm:$0xff] %v338
      %371 = vst [vmem:[%s170 + $0xd0] sm:$0xff] %v339
      %372 = vst [vmem:[%s170 + $0xd8] sm:$0xff] %v340
      %373 = vst [vmem:[%s170 + $0xe0] sm:$0xff] %v341
      %374 = vst [vmem:[%s170 + $0xe8] sm:$0xff] %v342
      %375 = vst [vmem:[%s170 + $0xf0] sm:$0xff] %v343
      %376 = vst [vmem:[%s170 + $0xf8] sm:$0xff] %v344
      %p377 = scmp.lt.s32.totalorder %s14, 1
      %s378 = scalar_select %p377, %s14, 1
      %s379 = smul.addr %s378, 32
      %s380 = smul.addr %s379, 8
      %s381 = scalar_lea.vmem %s3, %s380
      // Predicated region
      $region33: #{conv_block_forward.5} parent=31 // pred_check
        %p382 = pneg %p100
      $region34: #{conv_block_forward.5} parent=31 // pred_check_branch
        %384 = sbr.rel (%p382) target = $region36
      $region35: #{conv_block_forward.5} parent=31 // pred_region
        _
      $region36: #{conv_block_forward.5} parent=31 // pred_fallthru
        _
    $region32: #{conv_block_forward.5} parent=5 // pred_fallthru
      _
    %p385 = scmp.le.s32.totalorder 2, %s9
    // Predicated region
    $region37: #{conv_block_forward.5} parent=5 // pred_check
      %p386 = pneg %p385
    $region38: #{conv_block_forward.5} parent=5 // pred_check_branch
      %388 = sbr.rel (%p386) target = $region40
    $region39: #{conv_block_forward.5} parent=5 // pred_region
      %s389 = ssub.s32 %s9, 2
      // Predicated region
      $region41: #{conv_block_forward.5} parent=39 // pred_check
        %p390 = pneg %p106
      $region42: #{conv_block_forward.5} parent=39 // pred_check_branch
        %392 = sbr.rel (%p390) target = $region44
      $region43: #{conv_block_forward.5} parent=39 // pred_region
        %p393 = scmp.lt.s32.totalorder %s15, 1
        %s394 = scalar_select %p393, %s15, 1
        %s395 = smul.addr %s394, 32
        %s396 = smul.addr %s395, 8
        %s397 = scalar_lea.vmem %s3, %s396
      $region44: #{conv_block_forward.5} parent=39 // pred_fallthru
        _
    $region40: #{conv_block_forward.5} parent=5 // pred_fallthru
      _
  $region6: #{conv_block_forward.5} parent=0 // loop_footer
    %s13 = sadd.s32 1, %s9
  $region7: #{conv_block_forward.5} parent=0 // loop_footer_branch
    %8 = sbr.rel target = $region3
  $region8: #{conv_block_forward.5} parent=0 // loop_exit
    _

// kernel: conv_block_forward.3
$region0: #{conv_block_forward.3}
  #allocation0 [shape = 'u32[]', space=smem, size = 0x4, offset = 0x4, fixed_abs, tag = 'smem constant byte address 0x4 - core index']
  #allocation1 [shape = 'u32[144,128]{1,0:T(1,128)}', space=vmem, size = 0x12000, scoped, tag = 'internal scratch']
  %s0 = inlined_call_operand.vmem [shape: bf16[2,18,18,4], index: 0, kind: input, shape index: {}]
  %s1 = inlined_call_operand.vmem [shape: bf16[128,128], index: 1, kind: input, shape index: {}]
  %s2 = inlined_call_operand.vmem [shape: bf16[512,128], index: 2, kind: output, shape index: {0}]
  %s3 = inlined_call_operand.vmem [shape: f32[2,8,128], index: 3, kind: output, shape index: {1}]
  %4 = xla_tuple %s2, %s3
  %s5 = sld [smem:[#allocation0]]
  $region49: #{conv_block_forward.3} parent=0
    _
  %s7 = ssub.s32 1, %s5
  %s8 = scalar_select 0, %s7, %s5
  loop: start=0, step=1, limit=4
  $region2: #{conv_block_forward.3} parent=0 // loop_pre_header
    _
  $region3: #{conv_block_forward.3} parent=0 // loop_header
    %s10 = sphi 0, %s14
    %p11 = scmp.ge.s32.totalorder %s10, 4
    %s20 = sphi 0, %s22
    %s23 = sphi 0, %s20
    %s24 = sphi 0, %s23
    %s40 = sphi 0, %s24
    %s44 = sphi 0, %s44
    %s46 = sphi 0, %s44
    %s47 = sphi 0, %s46
    %s61 = sphi 0, %s47
    %s67 = sphi 0, %s69
    %s70 = sphi 0, %s67
    %s71 = sphi 0, %s70
    %s87 = sphi 0, %s71
    %s93 = sphi 0, %s95
    %s96 = sphi 0, %s93
    %s97 = sphi 0, %s96
    %s113 = sphi 0, %s97
  $region4: #{conv_block_forward.3} parent=0 // loop_header_branch
    %13 = sbr.rel (%p11) target = $region8
  $region5: #{conv_block_forward.3} parent=0 // loop_body
    %s15 = ssub.s32 %s10, 1
    %s16 = ssub.s32 %s10, 2
    %s17 = sadd.s32 %s10, 1
    %s18 = ssub.s32 %s10, %s17
    %p19 = scmp.eq.s32.totalorder %s18, 0
    %s21 = sadd.s32 %s20, 1
    %s22 = scalar_select %p19, %s20, %s21
    %p25 = pneg %p19
    %p26 = scmp.eq.s32.totalorder %s10, 1
    %p27 = por %p25, %p26
    %p28 = scmp.ne.s32.totalorder %s20, %s23
    %p29 = scmp.eq.s32.totalorder %s10, 0
    %p30 = por %p28, %p29
    %p31 = scmp.ne.s32.totalorder %s20, %s23
    %p32 = scmp.eq.s32.totalorder %s15, 1
    %p33 = por %p31, %p32
    %p34 = scmp.ne.s32.totalorder %s23, %s24
    %p35 = scmp.eq.s32.totalorder %s15, 0
    %p36 = por %p34, %p35
    %p37 = scmp.ne.s32.totalorder %s23, %s24
    %p38 = scmp.eq.s32.totalorder %s16, 1
    %p39 = por %p37, %p38
    %p41 = scmp.ne.s32.totalorder %s24, %s40
    %p42 = scmp.eq.s32.totalorder %s16, 0
    %p43 = por %p41, %p42
    %s45 = sadd.s32 %s44, 1
    %p48 = scmp.eq.s32.totalorder %s10, 1
    %p49 = scmp.ne.s32.totalorder %s44, %s46
    %p50 = scmp.eq.s32.totalorder %s10, 0
    %p51 = por %p49, %p50
    %p52 = scmp.ne.s32.totalorder %s44, %s46
    %p53 = scmp.eq.s32.totalorder %s15, 1
    %p54 = por %p52, %p53
    %p55 = scmp.ne.s32.totalorder %s46, %s47
    %p56 = scmp.eq.s32.totalorder %s15, 0
    %p57 = por %p55, %p56
    %p58 = scmp.ne.s32.totalorder %s46, %s47
    %p59 = scmp.eq.s32.totalorder %s16, 1
    %p60 = por %p58, %p59
    %p62 = scmp.ne.s32.totalorder %s47, %s61
    %p63 = scmp.eq.s32.totalorder %s16, 0
    %p64 = por %p62, %p63
    %s65 = ssub.s32 %s10, %s17
    %p66 = scmp.eq.s32.totalorder %s65, 0
    %s68 = sadd.s32 %s67, 1
    %s69 = scalar_select %p66, %s67, %s68
    %p72 = pneg %p66
    %p73 = scmp.eq.s32.totalorder %s10, 1
    %p74 = por %p72, %p73
    %p75 = scmp.ne.s32.totalorder %s67, %s70
    %p76 = scmp.eq.s32.totalorder %s10, 0
    %p77 = por %p75, %p76
    %p78 = scmp.ne.s32.totalorder %s67, %s70
    %p79 = scmp.eq.s32.totalorder %s15, 1
    %p80 = por %p78, %p79
    %p81 = scmp.ne.s32.totalorder %s70, %s71
    %p82 = scmp.eq.s32.totalorder %s15, 0
    %p83 = por %p81, %p82
    %p84 = scmp.ne.s32.totalorder %s70, %s71
    %p85 = scmp.eq.s32.totalorder %s16, 1
    %p86 = por %p84, %p85
    %p88 = scmp.ne.s32.totalorder %s71, %s87
    %p89 = scmp.eq.s32.totalorder %s16, 0
    %p90 = por %p88, %p89
    %s91 = ssub.s32 %s10, %s17
    %p92 = scmp.eq.s32.totalorder %s91, 0
    %s94 = sadd.s32 %s93, 1
    %s95 = scalar_select %p92, %s93, %s94
    %p98 = pneg %p92
    %p99 = scmp.eq.s32.totalorder %s10, 1
    %p100 = por %p98, %p99
    %p101 = scmp.ne.s32.totalorder %s93, %s96
    %p102 = scmp.eq.s32.totalorder %s10, 0
    %p103 = por %p101, %p102
    %p104 = scmp.ne.s32.totalorder %s93, %s96
    %p105 = scmp.eq.s32.totalorder %s15, 1
    %p106 = por %p104, %p105
    %p107 = scmp.ne.s32.totalorder %s96, %s97
    %p108 = scmp.eq.s32.totalorder %s15, 0
    %p109 = por %p107, %p108
    %p110 = scmp.ne.s32.totalorder %s96, %s97
    %p111 = scmp.eq.s32.totalorder %s16, 1
    %p112 = por %p110, %p111
    %p114 = scmp.ne.s32.totalorder %s97, %s113
    %p115 = scmp.eq.s32.totalorder %s16, 0
    %p116 = por %p114, %p115
    %p117 = scmp.le.s32.totalorder 1, %s10
    %p118 = scmp.lt.s32.totalorder %s10, 3
    %p119 = pnand %p117, %p118
    %p120 = pneg %p119
    // Predicated region
    $region9: #{conv_block_forward.3} parent=5 // pred_check
      _
    $region10: #{conv_block_forward.3} parent=5 // pred_check_branch
      %122 = sbr.rel (%p119) target = $region12
    $region11: #{conv_block_forward.3} parent=5 // pred_region
      %s123 = ssub.s32 %s10, 1
      // Predicated region
      $region13: #{conv_block_forward.3} parent=11 // pred_check
        %p124 = pneg %p57
      $region14: #{conv_block_forward.3} parent=11 // pred_check_branch
        %126 = sbr.rel (%p124) target = $region16
      $region15: #{conv_block_forward.3} parent=11 // pred_region
        _
      $region16: #{conv_block_forward.3} parent=11 // pred_fallthru
        _
    $region12: #{conv_block_forward.3} parent=5 // pred_fallthru
      _
    %p127 = scmp.lt.s32.totalorder %s10, 2
    // Predicated region
    $region17: #{conv_block_forward.3} parent=5 // pred_check
      %p128 = pneg %p127
    $region18: #{conv_block_forward.3} parent=5 // pred_check_branch
      %130 = sbr.rel (%p128) target = $region20
    $region19: #{conv_block_forward.3} parent=5 // pred_region
      // Predicated region
      $region21: #{conv_block_forward.3} parent=19 // pred_check
        %p131 = pneg %p30
      $region22: #{conv_block_forward.3} parent=19 // pred_check_branch
        %133 = sbr.rel (%p131) target = $region24
      $region23: #{conv_block_forward.3} parent=19 // pred_region
        %p134 = scmp.lt.s32.totalorder %s10, 1
        %s135 = scalar_select %p134, %s10, 1
        %s136 = smul.addr %s135, 54
        %s137 = smul.addr %s136, 4
        %s138 = scalar_lea.vmem %s0, %s137
      $region24: #{conv_block_forward.3} parent=19 // pred_fallthru
        _
    $region20: #{conv_block_forward.3} parent=5 // pred_fallthru
      _
    %p139 = scmp.le.s32.totalorder 1, %s10
    %p140 = scmp.lt.s32.totalorder %s10, 3
    %p141 = pnand %p139, %p140
    %p142 = pneg %p141
    // Predicated region
    $region25: #{conv_block_forward.3} parent=5 // pred_check
      _
    $region26: #{conv_block_forward.3} parent=5 // pred_check_branch
      %144 = sbr.rel (%p141) target = $region28
    $region27: #{conv_block_forward.3} parent=5 // pred_region
      %s145 = ssub.s32 %s10, 1
      %p146 = scmp.lt.s32.totalorder %s15, 1
      %s147 = scalar_select %p146, %s15, 1
      %s148 = smul.addr %s147, 54
      %s149 = smul.addr %s148, 4
      %s150 = scalar_lea.vmem %s0, %s149
      %p151 = pneg %p36
      %p152 = pneg %p33
      %p153 = pneg %p57
      %p154 = pneg %p54
      %p155 = pneg %p83
      %p156 = pneg %p80
      %s157 = smul.u32 32, %s15
      %p158 = scmp.lt.s32.totalorder %s157, 63
      %s159 = scalar_select %p158, %s157, 63
      %s160 = smul.addr %s159, 4
      %s161 = scalar_lea.vmem %s2, %s160
      %p162 = pneg %p109
      %p163 = pneg %p106
      %p164 = scmp.lt.s32.totalorder %s15, 1
      %s165 = scalar_select %p164, %s15, 1
      %s166 = smul.addr %s165, 8
      %s167 = scalar_lea.vmem %s3, %s166
      %p168 = scmp.lt.s32.totalorder %s15, 1
      %s169 = scalar_select %p168, %s15, 1
      %s170 = smul.addr %s169, 54
      %s171 = smul.addr %s170, 4
      %s172 = scalar_lea.vmem %s0, %s171
      %s173 = smul.u32 32, %s15
      %p174 = scmp.lt.s32.totalorder %s173, 63
      %s175 = scalar_select %p174, %s173, 63
      %s176 = smul.addr %s175, 4
      %s177 = scalar_lea.vmem %s2, %s176
      %s178 = smul.u32 32, %s15
      %p179 = scmp.lt.s32.totalorder %s15, 1
      %s180 = scalar_select %p179, %s15, 1
      %s181 = smul.addr %s180, 8
      %s182 = scalar_lea.vmem %s3, %s181
      %v184 = vld [vmem:[%s172] sm:$0xf]
      %v185 = vld [vmem:[%s172 + $0x4] sm:$0xf]
      %v186 = vld [vmem:[%s172 + $0xc] sm:$0xf]
      %v187 = vld [vmem:[%s172 + $0x10] sm:$0xf]
      %v188 = vld [vmem:[%s172 + $0x18] sm:$0xf]
      %v189 = vld [vmem:[%s172 + $0x1c] sm:$0xf]
      %v190 = vld [vmem:[%s172 + $0x24] sm:$0xf]
      %v191 = vld [vmem:[%s172 + $0x28] sm:$0xf]
      %v192 = vld [vmem:[%s172 + $0x30] sm:$0xf]
      %v193 = vld [vmem:[%s172 + $0x34] sm:$0xf]
      %v194 = vld [vmem:[%s172 + $0x3c] sm:$0xf]
      %v195 = vld [vmem:[%s172 + $0x40] sm:$0xf]
      %v196 = vld [vmem:[%s172 + $0x48] sm:$0xf]
      %v197 = vld [vmem:[%s172 + $0x4c] sm:$0xf]
      %v198 = vld [vmem:[%s172 + $0x54] sm:$0xf]
      %v199 = vld [vmem:[%s172 + $0x58] sm:$0xf]
      %v200 = vld [vmem:[%s172 + $0x60] sm:$0xf]
      %v201 = vld [vmem:[%s172 + $0x64] sm:$0xf]
      %v202 = vld [vmem:[%s172 + $0x6c] sm:$0xf]
      %v203 = vld [vmem:[%s172 + $0x70] sm:$0xf]
      %v204 = vld [vmem:[%s172 + $0x78] sm:$0xf]
      %v205 = vld [vmem:[%s172 + $0x7c] sm:$0xf]
      %v206 = vld [vmem:[%s172 + $0x84] sm:$0xf]
      %v207 = vld [vmem:[%s172 + $0x88] sm:$0xf]
      %v208 = vld [vmem:[%s172 + $0x90] sm:$0xf]
      %v209 = vld [vmem:[%s172 + $0x94] sm:$0xf]
      %v210 = vld [vmem:[%s172 + $0x9c] sm:$0xf]
      %v211 = vld [vmem:[%s172 + $0xa0] sm:$0xf]
      %v212 = vld [vmem:[%s172 + $0xa8] sm:$0xf]
      %v213 = vld [vmem:[%s172 + $0xac] sm:$0xf]
      %v214 = vld [vmem:[%s172 + $0xb4] sm:$0xf]
      %v215 = vld [vmem:[%s172 + $0xb8] sm:$0xf]
      %v216 = vld [vmem:[%s172 + $0xc0] sm:$0xf]
      %v217 = vld [vmem:[%s172 + $0xc4] sm:$0xf]
      %v218 = vld [vmem:[%s172 + $0xcc] sm:$0xf]
      %v219 = vld [vmem:[%s172 + $0xd0] sm:$0xf]
      %v220 = vld [vmem:[%s172 + $0x8] sm:$0x1]
      %v221 = vld [vmem:[%s172 + $0x14] sm:$0x1]
      %v222 = vld [vmem:[%s172 + $0x20] sm:$0x1]
      %v223 = vld [vmem:[%s172 + $0x2c] sm:$0x1]
      %v224 = vld [vmem:[%s172 + $0x38] sm:$0x1]
      %v225 = vld [vmem:[%s172 + $0x44] sm:$0x1]
      %v226 = vld [vmem:[%s172 + $0x50] sm:$0x1]
      %v227 = vld [vmem:[%s172 + $0x5c] sm:$0x1]
      %v228 = vld [vmem:[%s172 + $0x68] sm:$0x1]
      %v229 = vld [vmem:[%s172 + $0x74] sm:$0x1]
      %v230 = vld [vmem:[%s172 + $0x80] sm:$0x1]
      %v231 = vld [vmem:[%s172 + $0x8c] sm:$0x1]
      %v232 = vld [vmem:[%s172 + $0x98] sm:$0x1]
      %v233 = vld [vmem:[%s172 + $0xa4] sm:$0x1]
      %v234 = vld [vmem:[%s172 + $0xb0] sm:$0x1]
      %v235 = vld [vmem:[%s172 + $0xbc] sm:$0x1]
      %v236 = vld [vmem:[%s172 + $0xc8] sm:$0x1]
      %v237 = vld [vmem:[%s172 + $0xd4] sm:$0x1]
      %vm238 = vsmask.f32 3328
      %vm239 = vsmask.f32 7440
      %vm240 = vmor %vm238, %vm239
      %v242 = vshrl.u32 %v184, 16
      %v244 = vrot.slane %v242, 4
      %v245 = vshll.u32 %v184, 16
      %v247 = vrot.slane %v245, 5
      %v248 = vor.u32 %v244, %v247
      %v249 = vrot.slane %v248, 4
      %v251 = vshll.u32 %v185, 16
      %v253 = vrot.slane %v251, 5
      %v254 = vsel %vm240, %v249, %v253
      %v255 = vshrl.u32 %v185, 16
      %v257 = vrot.slane %v255, 4
      %v258 = vor.u32 %v257, %v253
      %v259 = vrot.slane %v258, 4
      %v261 = vshll.u32 %v220, 16
      %v263 = vrot.slane %v261, 5
      %v264 = vsel %vm240, %v259, %v263
      %v266 = vshrl.u32 %v186, 16
      %v268 = vrot.slane %v266, 4
      %v269 = vshll.u32 %v186, 16
      %v271 = vrot.slane %v269, 5
      %v272 = vor.u32 %v268, %v271
      %v273 = vrot.slane %v272, 4
      %v275 = vshll.u32 %v187, 16
      %v277 = vrot.slane %v275, 5
      %v278 = vsel %vm240, %v273, %v277
      %v279 = vshrl.u32 %v187, 16
      %v281 = vrot.slane %v279, 4
      %v282 = vor.u32 %v281, %v277
      %v283 = vrot.slane %v282, 4
      %v285 = vshll.u32 %v221, 16
      %v287 = vrot.slane %v285, 5
      %v288 = vsel %vm240, %v283, %v287
      %v290 = vshrl.u32 %v188, 16
      %v292 = vrot.slane %v290, 4
      %v293 = vshll.u32 %v188, 16
      %v295 = vrot.slane %v293, 5
      %v296 = vor.u32 %v292, %v295
      %v297 = vrot.slane %v296, 4
      %v299 = vshll.u32 %v189, 16
      %v301 = vrot.slane %v299, 5
      %v302 = vsel %vm240, %v297, %v301
      %v303 = vshrl.u32 %v189, 16
      %v305 = vrot.slane %v303, 4
      %v306 = vor.u32 %v305, %v301
      %v307 = vrot.slane %v306, 4
      %v309 = vshll.u32 %v222, 16
      %v311 = vrot.slane %v309, 5
      %v312 = vsel %vm240, %v307, %v311
      %v314 = vshrl.u32 %v190, 16
      %v316 = vrot.slane %v314, 4
      %v317 = vshll.u32 %v190, 16
      %v319 = vrot.slane %v317, 5
      %v320 = vor.u32 %v316, %v319
      %v321 = vrot.slane %v320, 4
      %v323 = vshll.u32 %v191, 16
      %v325 = vrot.slane %v323, 5
      %v326 = vsel %vm240, %v321, %v325
      %v327 = vshrl.u32 %v191, 16
      %v329 = vrot.slane %v327, 4
      %v330 = vor.u32 %v329, %v325
      %v331 = vrot.slane %v330, 4
      %v333 = vshll.u32 %v223, 16
      %v335 = vrot.slane %v333, 5
      %v336 = vsel %vm240, %v331, %v335
      %v338 = vshrl.u32 %v192, 16
      %v340 = vrot.slane %v338, 4
      %v341 = vshll.u32 %v192, 16
      %v343 = vrot.slane %v341, 5
      %v344 = vor.u32 %v340, %v343
      %v345 = vrot.slane %v344, 4
      %v347 = vshll.u32 %v193, 16
      %v349 = vrot.slane %v347, 5
      %v350 = vsel %vm240, %v345, %v349
      %v351 = vshrl.u32 %v193, 16
      %v353 = vrot.slane %v351, 4
      %v354 = vor.u32 %v353, %v349
      %v355 = vrot.slane %v354, 4
      %v357 = vshll.u32 %v224, 16
      %v359 = vrot.slane %v357, 5
      %v360 = vsel %vm240, %v355, %v359
      %v362 = vshrl.u32 %v194, 16
      %v364 = vrot.slane %v362, 4
      %v365 = vshll.u32 %v194, 16
      %v367 = vrot.slane %v365, 5
      %v368 = vor.u32 %v364, %v367
      %v369 = vrot.slane %v368, 4
      %v371 = vshll.u32 %v195, 16
      %v373 = vrot.slane %v371, 5
      %v374 = vsel %vm240, %v369, %v373
      %v375 = vshrl.u32 %v195, 16
      %v377 = vrot.slane %v375, 4
      %v378 = vor.u32 %v377, %v373
      %v379 = vrot.slane %v378, 4
      %v381 = vshll.u32 %v225, 16
      %v383 = vrot.slane %v381, 5
      %v384 = vsel %vm240, %v379, %v383
      %v386 = vshrl.u32 %v196, 16
      %v388 = vrot.slane %v386, 4
      %v389 = vshll.u32 %v196, 16
      %v391 = vrot.slane %v389, 5
      %v392 = vor.u32 %v388, %v391
      %v393 = vrot.slane %v392, 4
      %v395 = vshll.u32 %v197, 16
      %v397 = vrot.slane %v395, 5
      %v398 = vsel %vm240, %v393, %v397
      %v399 = vshrl.u32 %v197, 16
      %v401 = vrot.slane %v399, 4
      %v402 = vor.u32 %v401, %v397
      %v403 = vrot.slane %v402, 4
      %v405 = vshll.u32 %v226, 16
      %v407 = vrot.slane %v405, 5
      %v408 = vsel %vm240, %v403, %v407
      %v410 = vshrl.u32 %v198, 16
      %v412 = vrot.slane %v410, 4
      %v413 = vshll.u32 %v198, 16
      %v415 = vrot.slane %v413, 5
      %v416 = vor.u32 %v412, %v415
      %v417 = vrot.slane %v416, 4
      %v419 = vshll.u32 %v199, 16
      %v421 = vrot.slane %v419, 5
      %v422 = vsel %vm240, %v417, %v421
      %v423 = vshrl.u32 %v199, 16
      %v425 = vrot.slane %v423, 4
      %v426 = vor.u32 %v425, %v421
      %v427 = vrot.slane %v426, 4
      %v429 = vshll.u32 %v227, 16
      %v431 = vrot.slane %v429, 5
      %v432 = vsel %vm240, %v427, %v431
      %v434 = vshrl.u32 %v200, 16
      %v436 = vrot.slane %v434, 4
      %v437 = vshll.u32 %v200, 16
      %v439 = vrot.slane %v437, 5
      %v440 = vor.u32 %v436, %v439
      %v441 = vrot.slane %v440, 4
      %v443 = vshll.u32 %v201, 16
      %v445 = vrot.slane %v443, 5
      %v446 = vsel %vm240, %v441, %v445
      %v447 = vshrl.u32 %v201, 16
      %v449 = vrot.slane %v447, 4
      %v450 = vor.u32 %v449, %v445
      %v451 = vrot.slane %v450, 4
      %v453 = vshll.u32 %v228, 16
      %v455 = vrot.slane %v453, 5
      %v456 = vsel %vm240, %v451, %v455
      %v458 = vshrl.u32 %v202, 16
      %v460 = vrot.slane %v458, 4
      %v461 = vshll.u32 %v202, 16
      %v463 = vrot.slane %v461, 5
      %v464 = vor.u32 %v460, %v463
      %v465 = vrot.slane %v464, 4
      %v467 = vshll.u32 %v203, 16
      %v469 = vrot.slane %v467, 5
      %v470 = vsel %vm240, %v465, %v469
      %v471 = vshrl.u32 %v203, 16
      %v473 = vrot.slane %v471, 4
      %v474 = vor.u32 %v473, %v469
      %v475 = vrot.slane %v474, 4
      %v477 = vshll.u32 %v229, 16
      %v479 = vrot.slane %v477, 5
      %v480 = vsel %vm240, %v475, %v479
      %v482 = vshrl.u32 %v204, 16
      %v484 = vrot.slane %v482, 4
      %v485 = vshll.u32 %v204, 16
      %v487 = vrot.slane %v485, 5
      %v488 = vor.u32 %v484, %v487
      %v489 = vrot.slane %v488, 4
      %v491 = vshll.u32 %v205, 16
      %v493 = vrot.slane %v491, 5
      %v494 = vsel %vm240, %v489, %v493
      %v495 = vshrl.u32 %v205, 16
      %v497 = vrot.slane %v495, 4
      %v498 = vor.u32 %v497, %v493
      %v499 = vrot.slane %v498, 4
      %v501 = vshll.u32 %v230, 16
      %v503 = vrot.slane %v501, 5
      %v504 = vsel %vm240, %v499, %v503
      %v506 = vshrl.u32 %v206, 16
      %v508 = vrot.slane %v506, 4
      %v509 = vshll.u32 %v206, 16
      %v511 = vrot.slane %v509, 5
      %v512 = vor.u32 %v508, %v511
      %v513 = vrot.slane %v512, 4
      %v515 = vshll.u32 %v207, 16
      %v517 = vrot.slane %v515, 5
      %v518 = vsel %vm240, %v513, %v517
      %v519 = vshrl.u32 %v207, 16
      %v521 = vrot.slane %v519, 4
      %v522 = vor.u32 %v521, %v517
      %v523 = vrot.slane %v522, 4
      %v525 = vshll.u32 %v231, 16
      %v527 = vrot.slane %v525, 5
      %v528 = vsel %vm240, %v523, %v527
      %v530 = vshrl.u32 %v208, 16
      %v532 = vrot.slane %v530, 4
      %v533 = vshll.u32 %v208, 16
      %v535 = vrot.slane %v533, 5
      %v536 = vor.u32 %v532, %v535
      %v537 = vrot.slane %v536, 4
      %v539 = vshll.u32 %v209, 16
      %v541 = vrot.slane %v539, 5
      %v542 = vsel %vm240, %v537, %v541
      %v543 = vshrl.u32 %v209, 16
      %v545 = vrot.slane %v543, 4
      %v546 = vor.u32 %v545, %v541
      %v547 = vrot.slane %v546, 4
      %v549 = vshll.u32 %v232, 16
      %v551 = vrot.slane %v549, 5
      %v552 = vsel %vm240, %v547, %v551
      %v554 = vshrl.u32 %v210, 16
      %v556 = vrot.slane %v554, 4
      %v557 = vshll.u32 %v210, 16
      %v559 = vrot.slane %v557, 5
      %v560 = vor.u32 %v556, %v559
      %v561 = vrot.slane %v560, 4
      %v563 = vshll.u32 %v211, 16
      %v565 = vrot.slane %v563, 5
      %v566 = vsel %vm240, %v561, %v565
      %v567 = vshrl.u32 %v211, 16
      %v569 = vrot.slane %v567, 4
      %v570 = vor.u32 %v569, %v565
      %v571 = vrot.slane %v570, 4
      %v573 = vshll.u32 %v233, 16
      %v575 = vrot.slane %v573, 5
      %v576 = vsel %vm240, %v571, %v575
      %v578 = vshrl.u32 %v212, 16
      %v580 = vrot.slane %v578, 4
      %v581 = vshll.u32 %v212, 16
      %v583 = vrot.slane %v581, 5
      %v584 = vor.u32 %v580, %v583
      %v585 = vrot.slane %v584, 4
      %v587 = vshll.u32 %v213, 16
      %v589 = vrot.slane %v587, 5
      %v590 = vsel %vm240, %v585, %v589
      %v591 = vshrl.u32 %v213, 16
      %v593 = vrot.slane %v591, 4
      %v594 = vor.u32 %v593, %v589
      %v595 = vrot.slane %v594, 4
      %v597 = vshll.u32 %v234, 16
      %v599 = vrot.slane %v597, 5
      %v600 = vsel %vm240, %v595, %v599
      %v602 = vshrl.u32 %v214, 16
      %v604 = vrot.slane %v602, 4
      %v605 = vshll.u32 %v214, 16
      %v607 = vrot.slane %v605, 5
      %v608 = vor.u32 %v604, %v607
      %v609 = vrot.slane %v608, 4
      %v611 = vshll.u32 %v215, 16
      %v613 = vrot.slane %v611, 5
      %v614 = vsel %vm240, %v609, %v613
      %v615 = vshrl.u32 %v215, 16
      %v617 = vrot.slane %v615, 4
      %v618 = vor.u32 %v617, %v613
      %v619 = vrot.slane %v618, 4
      %v621 = vshll.u32 %v235, 16
      %v623 = vrot.slane %v621, 5
      %v624 = vsel %vm240, %v619, %v623
      %v626 = vshrl.u32 %v216, 16
      %v628 = vrot.slane %v626, 4
      %v629 = vshll.u32 %v216, 16
      %v631 = vrot.slane %v629, 5
      %v632 = vor.u32 %v628, %v631
      %v633 = vrot.slane %v632, 4
      %v635 = vshll.u32 %v217, 16
      %v637 = vrot.slane %v635, 5
      %v638 = vsel %vm240, %v633, %v637
      %v639 = vshrl.u32 %v217, 16
      %v641 = vrot.slane %v639, 4
      %v642 = vor.u32 %v641, %v637
      %v643 = vrot.slane %v642, 4
      %v645 = vshll.u32 %v236, 16
      %v647 = vrot.slane %v645, 5
      %v648 = vsel %vm240, %v643, %v647
      %v650 = vshrl.u32 %v218, 16
      %v652 = vrot.slane %v650, 4
      %v653 = vshll.u32 %v218, 16
      %v655 = vrot.slane %v653, 5
      %v656 = vor.u32 %v652, %v655
      %v657 = vrot.slane %v656, 4
      %v659 = vshll.u32 %v219, 16
      %v661 = vrot.slane %v659, 5
      %v662 = vsel %vm240, %v657, %v661
      %v663 = vshrl.u32 %v219, 16
      %v665 = vrot.slane %v663, 4
      %v666 = vor.u32 %v665, %v661
      %v667 = vrot.slane %v666, 4
      %v669 = vshll.u32 %v237, 16
      %v671 = vrot.slane %v669, 5
      %v672 = vsel %vm240, %v667, %v671
      %v673 = vld [vmem:[%s172] sm:$0xe]
      %v674 = vld [vmem:[%s172 + $0xc] sm:$0xe]
      %v675 = vld [vmem:[%s172 + $0x18] sm:$0xe]
      %v676 = vld [vmem:[%s172 + $0x24] sm:$0xe]
      %v677 = vld [vmem:[%s172 + $0x30] sm:$0xe]
      %v678 = vld [vmem:[%s172 + $0x3c] sm:$0xe]
      %v679 = vld [vmem:[%s172 + $0x48] sm:$0xe]
      %v680 = vld [vmem:[%s172 + $0x54] sm:$0xe]
      %v681 = vld [vmem:[%s172 + $0x60] sm:$0xe]
      %v682 = vld [vmem:[%s172 + $0x6c] sm:$0xe]
      %v683 = vld [vmem:[%s172 + $0x78] sm:$0xe]
      %v684 = vld [vmem:[%s172 + $0x84] sm:$0xe]
      %v685 = vld [vmem:[%s172 + $0x90] sm:$0xe]
      %v686 = vld [vmem:[%s172 + $0x9c] sm:$0xe]
      %v687 = vld [vmem:[%s172 + $0xa8] sm:$0xe]
      %v688 = vld [vmem:[%s172 + $0xb4] sm:$0xe]
      %v689 = vld [vmem:[%s172 + $0xc0] sm:$0xe]
      %v690 = vld [vmem:[%s172 + $0xcc] sm:$0xe]
      %vm739 = vcmask 1042432
      %vm740 = vcmask 1046532
      %vm741 = vmor %vm739, %vm740
      %v742 = vrot.slane %v673, 5
      %v743 = vrot.slane %v742, 4
      %v744 = vrot.slane %v185, 5
      %v745 = vsel %vm741, %v743, %v744
      %v746 = vrot.slane %v744, 4
      %v747 = vrot.slane %v220, 5
      %v748 = vsel %vm741, %v746, %v747
      %v749 = vrot.slane %v674, 5
      %v750 = vrot.slane %v749, 4
      %v751 = vrot.slane %v187, 5
      %v752 = vsel %vm741, %v750, %v751
      %v753 = vrot.slane %v751, 4
      %v754 = vrot.slane %v221, 5
      %v755 = vsel %vm741, %v753, %v754
      %v756 = vrot.slane %v675, 5
      %v757 = vrot.slane %v756, 4
      %v758 = vrot.slane %v189, 5
      %v759 = vsel %vm741, %v757, %v758
      %v760 = vrot.slane %v758, 4
      %v761 = vrot.slane %v222, 5
      %v762 = vsel %vm741, %v760, %v761
      %v763 = vrot.slane %v676, 5
      %v764 = vrot.slane %v763, 4
      %v765 = vrot.slane %v191, 5
      %v766 = vsel %vm741, %v764, %v765
      %v767 = vrot.slane %v765, 4
      %v768 = vrot.slane %v223, 5
      %v769 = vsel %vm741, %v767, %v768
      %v770 = vrot.slane %v677, 5
      %v771 = vrot.slane %v770, 4
      %v772 = vrot.slane %v193, 5
      %v773 = vsel %vm741, %v771, %v772
      %v774 = vrot.slane %v772, 4
      %v775 = vrot.slane %v224, 5
      %v776 = vsel %vm741, %v774, %v775
      %v777 = vrot.slane %v678, 5
      %v778 = vrot.slane %v777, 4
      %v779 = vrot.slane %v195, 5
      %v780 = vsel %vm741, %v778, %v779
      %v781 = vrot.slane %v779, 4
      %v782 = vrot.slane %v225, 5
      %v783 = vsel %vm741, %v781, %v782
      %v784 = vrot.slane %v679, 5
      %v785 = vrot.slane %v784, 4
      %v786 = vrot.slane %v197, 5
      %v787 = vsel %vm741, %v785, %v786
      %v788 = vrot.slane %v786, 4
      %v789 = vrot.slane %v226, 5
      %v790 = vsel %vm741, %v788, %v789
      %v791 = vrot.slane %v680, 5
      %v792 = vrot.slane %v791, 4
      %v793 = vrot.slane %v199, 5
      %v794 = vsel %vm741, %v792, %v793
      %v795 = vrot.slane %v793, 4
      %v796 = vrot.slane %v227, 5
      %v797 = vsel %vm741, %v795, %v796
      %v798 = vrot.slane %v681, 5
      %v799 = vrot.slane %v798, 4
      %v800 = vrot.slane %v201, 5
      %v801 = vsel %vm741, %v799, %v800
      %v802 = vrot.slane %v800, 4
      %v803 = vrot.slane %v228, 5
      %v804 = vsel %vm741, %v802, %v803
      %v805 = vrot.slane %v682, 5
      %v806 = vrot.slane %v805, 4
      %v807 = vrot.slane %v203, 5
      %v808 = vsel %vm741, %v806, %v807
      %v809 = vrot.slane %v807, 4
      %v810 = vrot.slane %v229, 5
      %v811 = vsel %vm741, %v809, %v810
      %v812 = vrot.slane %v683, 5
      %v813 = vrot.slane %v812, 4
      %v814 = vrot.slane %v205, 5
      %v815 = vsel %vm741, %v813, %v814
      %v816 = vrot.slane %v814, 4
      %v817 = vrot.slane %v230, 5
      %v818 = vsel %vm741, %v816, %v817
      %v819 = vrot.slane %v684, 5
      %v820 = vrot.slane %v819, 4
      %v821 = vrot.slane %v207, 5
      %v822 = vsel %vm741, %v820, %v821
      %v823 = vrot.slane %v821, 4
      %v824 = vrot.slane %v231, 5
      %v825 = vsel %vm741, %v823, %v824
      %v826 = vrot.slane %v685, 5
      %v827 = vrot.slane %v826, 4
      %v828 = vrot.slane %v209, 5
      %v829 = vsel %vm741, %v827, %v828
      %v830 = vrot.slane %v828, 4
      %v831 = vrot.slane %v232, 5
      %v832 = vsel %vm741, %v830, %v831
      %v833 = vrot.slane %v686, 5
      %v834 = vrot.slane %v833, 4
      %v835 = vrot.slane %v211, 5
      %v836 = vsel %vm741, %v834, %v835
      %v837 = vrot.slane %v835, 4
      %v838 = vrot.slane %v233, 5
      %v839 = vsel %vm741, %v837, %v838
      %v840 = vrot.slane %v687, 5
      %v841 = vrot.slane %v840, 4
      %v842 = vrot.slane %v213, 5
      %v843 = vsel %vm741, %v841, %v842
      %v844 = vrot.slane %v842, 4
      %v845 = vrot.slane %v234, 5
      %v846 = vsel %vm741, %v844, %v845
      %v847 = vrot.slane %v688, 5
      %v848 = vrot.slane %v847, 4
      %v849 = vrot.slane %v215, 5
      %v850 = vsel %vm741, %v848, %v849
      %v851 = vrot.slane %v849, 4
      %v852 = vrot.slane %v235, 5
      %v853 = vsel %vm741, %v851, %v852
      %v857 = vrot.slane %v689, 5
      %v858 = vrot.slane %v857, 4
      %v859 = vrot.slane %v217, 5
      %v860 = vsel %vm741, %v858, %v859
      %v861 = vrot.slane %v859, 4
      %v862 = vrot.slane %v236, 5
      %v863 = vsel %vm741, %v861, %v862
      %v867 = vrot.slane %v690, 5
      %v868 = vrot.slane %v867, 4
      %v869 = vrot.slane %v219, 5
      %v870 = vsel %vm741, %v868, %v869
      %v871 = vrot.slane %v869, 4
      %v872 = vrot.slane %v237, 5
      %v873 = vsel %vm741, %v871, %v872
      %v890 = vunpack.c.l.b16 %v184
      %v891 = vunpack.c.l.b16 %v185
      %v892 = vunpack.c.l.b16 %v186
      %v893 = vunpack.c.l.b16 %v187
      %v894 = vunpack.c.l.b16 %v188
      %v895 = vunpack.c.l.b16 %v189
      %v896 = vunpack.c.l.b16 %v190
      %v897 = vunpack.c.l.b16 %v191
      %v898 = vunpack.c.l.b16 %v192
      %v899 = vunpack.c.l.b16 %v193
      %v900 = vunpack.c.l.b16 %v194
      %v901 = vunpack.c.l.b16 %v195
      %v902 = vunpack.c.l.b16 %v196
      %v903 = vunpack.c.l.b16 %v197
      %v904 = vunpack.c.l.b16 %v198
      %v905 = vunpack.c.l.b16 %v199
      %v906 = vunpack.c.l.b16 %v200
      %v907 = vunpack.c.l.b16 %v201
      %v908 = vunpack.c.l.b16 %v202
      %v909 = vunpack.c.l.b16 %v203
      %v910 = vunpack.c.l.b16 %v204
      %v911 = vunpack.c.l.b16 %v205
      %v912 = vunpack.c.l.b16 %v206
      %v913 = vunpack.c.l.b16 %v207
      %v914 = vunpack.c.l.b16 %v208
      %v915 = vunpack.c.l.b16 %v209
      %v916 = vunpack.c.l.b16 %v210
      %v917 = vunpack.c.l.b16 %v211
      %v918 = vunpack.c.l.b16 %v212
      %v919 = vunpack.c.l.b16 %v213
      %v920 = vunpack.c.l.b16 %v214
      %v921 = vunpack.c.l.b16 %v215
      %v922 = vpack.c.b16 %v891, %v890
      %v923 = vpack.c.b16 %v893, %v892
      %v924 = vpack.c.b16 %v895, %v894
      %v925 = vpack.c.b16 %v897, %v896
      %v926 = vpack.c.b16 %v899, %v898
      %v927 = vpack.c.b16 %v901, %v900
      %v928 = vpack.c.b16 %v903, %v902
      %v929 = vpack.c.b16 %v905, %v904
      %v930 = vpack.c.b16 %v907, %v906
      %v931 = vpack.c.b16 %v909, %v908
      %v932 = vpack.c.b16 %v911, %v910
      %v933 = vpack.c.b16 %v913, %v912
      %v934 = vpack.c.b16 %v915, %v914
      %v935 = vpack.c.b16 %v917, %v916
      %v936 = vpack.c.b16 %v919, %v918
      %v937 = vpack.c.b16 %v921, %v920
      %v939 = vunpack.c.l.b16 %v216
      %v940 = vunpack.c.l.b16 %v217
      %v941 = vpack.c.b16 %v940, %v939
      %942 = vrot.lane.b32.xlu0 %v923, 4
      %v943 = vpop.permute.xlu0 %942
      %944 = vrot.lane.b32.xlu0 %v924, 4
      %v945 = vpop.permute.xlu0 %944
      %946 = vrot.lane.b32.xlu0 %v925, 4
      %v947 = vpop.permute.xlu0 %946
      %948 = vrot.lane.b32.xlu0 %v926, 4
      %v949 = vpop.permute.xlu0 %948
      %950 = vrot.lane.b32.xlu0 %v927, 4
      %v951 = vpop.permute.xlu0 %950
      %952 = vrot.lane.b32.xlu0 %v928, 4
      %v953 = vpop.permute.xlu0 %952
      %954 = vrot.lane.b32.xlu0 %v929, 4
      %v955 = vpop.permute.xlu0 %954
      %956 = vrot.lane.b32.xlu0 %v930, 4
      %v957 = vpop.permute.xlu0 %956
      %958 = vrot.lane.b32.xlu0 %v931, 4
      %v959 = vpop.permute.xlu0 %958
      %960 = vrot.lane.b32.xlu0 %v932, 4
      %v961 = vpop.permute.xlu0 %960
      %962 = vrot.lane.b32.xlu0 %v933, 4
      %v963 = vpop.permute.xlu0 %962
      %964 = vrot.lane.b32.xlu0 %v934, 4
      %v965 = vpop.permute.xlu0 %964
      %966 = vrot.lane.b32.xlu0 %v935, 4
      %v967 = vpop.permute.xlu0 %966
      %968 = vrot.lane.b32.xlu0 %v936, 4
      %v969 = vpop.permute.xlu0 %968
      %970 = vrot.lane.b32.xlu0 %v937, 4
      %v971 = vpop.permute.xlu0 %970
      %972 = vrot.lane.b32.xlu0 %v941, 4
      %v973 = vpop.permute.xlu0 %972
      %v975 = vunpack.c.l.b16 %v218
      %v976 = vunpack.c.l.b16 %v219
      %v977 = vpack.c.b16 %v976, %v975
      %978 = vrot.lane.b32.xlu0 %v924, 8
      %v979 = vpop.permute.xlu0 %978
      %980 = vrot.lane.b32.xlu0 %v925, 8
      %v981 = vpop.permute.xlu0 %980
      %982 = vrot.lane.b32.xlu0 %v926, 8
      %v983 = vpop.permute.xlu0 %982
      %984 = vrot.lane.b32.xlu0 %v927, 8
      %v985 = vpop.permute.xlu0 %984
      %986 = vrot.lane.b32.xlu0 %v928, 8
      %v987 = vpop.permute.xlu0 %986
      %988 = vrot.lane.b32.xlu0 %v929, 8
      %v989 = vpop.permute.xlu0 %988
      %990 = vrot.lane.b32.xlu0 %v930, 8
      %v991 = vpop.permute.xlu0 %990
      %992 = vrot.lane.b32.xlu0 %v931, 8
      %v993 = vpop.permute.xlu0 %992
      %994 = vrot.lane.b32.xlu0 %v932, 8
      %v995 = vpop.permute.xlu0 %994
      %996 = vrot.lane.b32.xlu0 %v933, 8
      %v997 = vpop.permute.xlu0 %996
      %998 = vrot.lane.b32.xlu0 %v934, 8
      %v999 = vpop.permute.xlu0 %998
      %1000 = vrot.lane.b32.xlu0 %v935, 8
      %v1001 = vpop.permute.xlu0 %1000
      %1002 = vrot.lane.b32.xlu0 %v936, 8
      %v1003 = vpop.permute.xlu0 %1002
      %1004 = vrot.lane.b32.xlu0 %v937, 8
      %v1005 = vpop.permute.xlu0 %1004
      %1006 = vrot.lane.b32.xlu0 %v941, 8
      %v1007 = vpop.permute.xlu0 %1006
      %1008 = vrot.lane.b32.xlu0 %v977, 8
      %v1009 = vpop.permute.xlu0 %1008
      %v1010 = vunpack.c.l.b16 %v254
      %v1011 = vunpack.c.l.b16 %v264
      %v1012 = vunpack.c.l.b16 %v278
      %v1013 = vunpack.c.l.b16 %v288
      %v1014 = vunpack.c.l.b16 %v302
      %v1015 = vunpack.c.l.b16 %v312
      %v1016 = vunpack.c.l.b16 %v326
      %v1017 = vunpack.c.l.b16 %v336
      %v1018 = vunpack.c.l.b16 %v350
      %v1019 = vunpack.c.l.b16 %v360
      %v1020 = vunpack.c.l.b16 %v374
      %v1021 = vunpack.c.l.b16 %v384
      %v1022 = vunpack.c.l.b16 %v398
      %v1023 = vunpack.c.l.b16 %v408
      %v1024 = vunpack.c.l.b16 %v422
      %v1025 = vunpack.c.l.b16 %v432
      %v1026 = vunpack.c.l.b16 %v446
      %v1027 = vunpack.c.l.b16 %v456
      %v1028 = vunpack.c.l.b16 %v470
      %v1029 = vunpack.c.l.b16 %v480
      %v1030 = vunpack.c.l.b16 %v494
      %v1031 = vunpack.c.l.b16 %v504
      %v1032 = vunpack.c.l.b16 %v518
      %v1033 = vunpack.c.l.b16 %v528
      %v1034 = vunpack.c.l.b16 %v542
      %v1035 = vunpack.c.l.b16 %v552
      %v1036 = vunpack.c.l.b16 %v566
      %v1037 = vunpack.c.l.b16 %v576
      %v1038 = vunpack.c.l.b16 %v590
      %v1039 = vunpack.c.l.b16 %v600
      %v1040 = vunpack.c.l.b16 %v614
      %v1041 = vunpack.c.l.b16 %v624
      %v1042 = vpack.c.b16 %v1011, %v1010
      %v1043 = vpack.c.b16 %v1013, %v1012
      %v1044 = vpack.c.b16 %v1015, %v1014
      %v1045 = vpack.c.b16 %v1017, %v1016
      %v1046 = vpack.c.b16 %v1019, %v1018
      %v1047 = vpack.c.b16 %v1021, %v1020
      %v1048 = vpack.c.b16 %v1023, %v1022
      %v1049 = vpack.c.b16 %v1025, %v1024
      %v1050 = vpack.c.b16 %v1027, %v1026
      %v1051 = vpack.c.b16 %v1029, %v1028
      %v1052 = vpack.c.b16 %v1031, %v1030
      %v1053 = vpack.c.b16 %v1033, %v1032
      %v1054 = vpack.c.b16 %v1035, %v1034
      %v1055 = vpack.c.b16 %v1037, %v1036
      %v1056 = vpack.c.b16 %v1039, %v1038
      %v1057 = vpack.c.b16 %v1041, %v1040
      %1058 = vrot.lane.b32.xlu0 %v1042, 12
      %v1059 = vpop.permute.xlu0 %1058
      %1060 = vrot.lane.b32.xlu0 %v1043, 12
      %v1061 = vpop.permute.xlu0 %1060
      %1062 = vrot.lane.b32.xlu0 %v1044, 12
      %v1063 = vpop.permute.xlu0 %1062
      %1064 = vrot.lane.b32.xlu0 %v1045, 12
      %v1065 = vpop.permute.xlu0 %1064
      %1066 = vrot.lane.b32.xlu0 %v1046, 12
      %v1067 = vpop.permute.xlu0 %1066
      %1068 = vrot.lane.b32.xlu0 %v1047, 12
      %v1069 = vpop.permute.xlu0 %1068
      %1070 = vrot.lane.b32.xlu0 %v1048, 12
      %v1071 = vpop.permute.xlu0 %1070
      %1072 = vrot.lane.b32.xlu0 %v1049, 12
      %v1073 = vpop.permute.xlu0 %1072
      %1074 = vrot.lane.b32.xlu0 %v1050, 12
      %v1075 = vpop.permute.xlu0 %1074
      %1076 = vrot.lane.b32.xlu0 %v1051, 12
      %v1077 = vpop.permute.xlu0 %1076
      %1078 = vrot.lane.b32.xlu0 %v1052, 12
      %v1079 = vpop.permute.xlu0 %1078
      %1080 = vrot.lane.b32.xlu0 %v1053, 12
      %v1081 = vpop.permute.xlu0 %1080
      %1082 = vrot.lane.b32.xlu0 %v1054, 12
      %v1083 = vpop.permute.xlu0 %1082
      %1084 = vrot.lane.b32.xlu0 %v1055, 12
      %v1085 = vpop.permute.xlu0 %1084
      %1086 = vrot.lane.b32.xlu0 %v1056, 12
      %v1087 = vpop.permute.xlu0 %1086
      %1088 = vrot.lane.b32.xlu0 %v1057, 12
      %v1089 = vpop.permute.xlu0 %1088
      %v1090 = vunpack.c.l.b16 %v638
      %v1091 = vunpack.c.l.b16 %v648
      %v1092 = vpack.c.b16 %v1091, %v1090
      %1093 = vrot.lane.b32.xlu0 %v1043, 16
      %v1094 = vpop.permute.xlu0 %1093
      %1095 = vrot.lane.b32.xlu0 %v1044, 16
      %v1096 = vpop.permute.xlu0 %1095
      %1097 = vrot.lane.b32.xlu0 %v1045, 16
      %v1098 = vpop.permute.xlu0 %1097
      %1099 = vrot.lane.b32.xlu0 %v1046, 16
      %v1100 = vpop.permute.xlu0 %1099
      %1101 = vrot.lane.b32.xlu0 %v1047, 16
      %v1102 = vpop.permute.xlu0 %1101
      %1103 = vrot.lane.b32.xlu0 %v1048, 16
      %v1104 = vpop.permute.xlu0 %1103
      %1105 = vrot.lane.b32.xlu0 %v1049, 16
      %v1106 = vpop.permute.xlu0 %1105
      %1107 = vrot.lane.b32.xlu0 %v1050, 16
      %v1108 = vpop.permute.xlu0 %1107
      %1109 = vrot.lane.b32.xlu0 %v1051, 16
      %v1110 = vpop.permute.xlu0 %1109
      %1111 = vrot.lane.b32.xlu0 %v1052, 16
      %v1112 = vpop.permute.xlu0 %1111
      %1113 = vrot.lane.b32.xlu0 %v1053, 16
      %v1114 = vpop.permute.xlu0 %1113
      %1115 = vrot.lane.b32.xlu0 %v1054, 16
      %v1116 = vpop.permute.xlu0 %1115
      %1117 = vrot.lane.b32.xlu0 %v1055, 16
      %v1118 = vpop.permute.xlu0 %1117
      %1119 = vrot.lane.b32.xlu0 %v1056, 16
      %v1120 = vpop.permute.xlu0 %1119
      %1121 = vrot.lane.b32.xlu0 %v1057, 16
      %v1122 = vpop.permute.xlu0 %1121
      %1123 = vrot.lane.b32.xlu0 %v1092, 16
      %v1124 = vpop.permute.xlu0 %1123
      %v1125 = vunpack.c.l.b16 %v662
      %v1126 = vunpack.c.l.b16 %v672
      %v1127 = vpack.c.b16 %v1126, %v1125
      %1128 = vrot.lane.b32.xlu0 %v1044, 20
      %v1129 = vpop.permute.xlu0 %1128
      %1130 = vrot.lane.b32.xlu0 %v1045, 20
      %v1131 = vpop.permute.xlu0 %1130
      %1132 = vrot.lane.b32.xlu0 %v1046, 20
      %v1133 = vpop.permute.xlu0 %1132
      %1134 = vrot.lane.b32.xlu0 %v1047, 20
      %v1135 = vpop.permute.xlu0 %1134
      %1136 = vrot.lane.b32.xlu0 %v1048, 20
      %v1137 = vpop.permute.xlu0 %1136
      %1138 = vrot.lane.b32.xlu0 %v1049, 20
      %v1139 = vpop.permute.xlu0 %1138
      %1140 = vrot.lane.b32.xlu0 %v1050, 20
      %v1141 = vpop.permute.xlu0 %1140
      %1142 = vrot.lane.b32.xlu0 %v1051, 20
      %v1143 = vpop.permute.xlu0 %1142
      %1144 = vrot.lane.b32.xlu0 %v1052, 20
      %v1145 = vpop.permute.xlu0 %1144
      %1146 = vrot.lane.b32.xlu0 %v1053, 20
      %v1147 = vpop.permute.xlu0 %1146
      %1148 = vrot.lane.b32.xlu0 %v1054, 20
      %v1149 = vpop.permute.xlu0 %1148
      %1150 = vrot.lane.b32.xlu0 %v1055, 20
      %v1151 = vpop.permute.xlu0 %1150
      %1152 = vrot.lane.b32.xlu0 %v1056, 20
      %v1153 = vpop.permute.xlu0 %1152
      %1154 = vrot.lane.b32.xlu0 %v1057, 20
      %v1155 = vpop.permute.xlu0 %1154
      %1156 = vrot.lane.b32.xlu0 %v1092, 20
      %v1157 = vpop.permute.xlu0 %1156
      %1158 = vrot.lane.b32.xlu0 %v1127, 20
      %v1159 = vpop.permute.xlu0 %1158
      %v1160 = vunpack.c.l.b16 %v745
      %v1161 = vunpack.c.l.b16 %v748
      %v1162 = vunpack.c.l.b16 %v752
      %v1163 = vunpack.c.l.b16 %v755
      %v1164 = vunpack.c.l.b16 %v759
      %v1165 = vunpack.c.l.b16 %v762
      %v1166 = vunpack.c.l.b16 %v766
      %v1167 = vunpack.c.l.b16 %v769
      %v1168 = vunpack.c.l.b16 %v773
      %v1169 = vunpack.c.l.b16 %v776
      %v1170 = vunpack.c.l.b16 %v780
      %v1171 = vunpack.c.l.b16 %v783
      %v1172 = vunpack.c.l.b16 %v787
      %v1173 = vunpack.c.l.b16 %v790
      %v1174 = vunpack.c.l.b16 %v794
      %v1175 = vunpack.c.l.b16 %v797
      %v1176 = vunpack.c.l.b16 %v801
      %v1177 = vunpack.c.l.b16 %v804
      %v1178 = vunpack.c.l.b16 %v808
      %v1179 = vunpack.c.l.b16 %v811
      %v1180 = vunpack.c.l.b16 %v815
      %v1181 = vunpack.c.l.b16 %v818
      %v1182 = vunpack.c.l.b16 %v822
      %v1183 = vunpack.c.l.b16 %v825
      %v1184 = vunpack.c.l.b16 %v829
      %v1185 = vunpack.c.l.b16 %v832
      %v1186 = vunpack.c.l.b16 %v836
      %v1187 = vunpack.c.l.b16 %v839
      %v1188 = vunpack.c.l.b16 %v843
      %v1189 = vunpack.c.l.b16 %v846
      %v1190 = vunpack.c.l.b16 %v850
      %v1191 = vunpack.c.l.b16 %v853
      %v1192 = vpack.c.b16 %v1161, %v1160
      %v1193 = vpack.c.b16 %v1163, %v1162
      %v1194 = vpack.c.b16 %v1165, %v1164
      %v1195 = vpack.c.b16 %v1167, %v1166
      %v1196 = vpack.c.b16 %v1169, %v1168
      %v1197 = vpack.c.b16 %v1171, %v1170
      %v1198 = vpack.c.b16 %v1173, %v1172
      %v1199 = vpack.c.b16 %v1175, %v1174
      %v1200 = vpack.c.b16 %v1177, %v1176
      %v1201 = vpack.c.b16 %v1179, %v1178
      %v1202 = vpack.c.b16 %v1181, %v1180
      %v1203 = vpack.c.b16 %v1183, %v1182
      %v1204 = vpack.c.b16 %v1185, %v1184
      %v1205 = vpack.c.b16 %v1187, %v1186
      %v1206 = vpack.c.b16 %v1189, %v1188
      %v1207 = vpack.c.b16 %v1191, %v1190
      %1208 = vrot.lane.b32.xlu0 %v1192, 24
      %v1209 = vpop.permute.xlu0 %1208
      %1210 = vrot.lane.b32.xlu0 %v1193, 24
      %v1211 = vpop.permute.xlu0 %1210
      %1212 = vrot.lane.b32.xlu0 %v1194, 24
      %v1213 = vpop.permute.xlu0 %1212
      %1214 = vrot.lane.b32.xlu0 %v1195, 24
      %v1215 = vpop.permute.xlu0 %1214
      %1216 = vrot.lane.b32.xlu0 %v1196, 24
      %v1217 = vpop.permute.xlu0 %1216
      %1218 = vrot.lane.b32.xlu0 %v1197, 24
      %v1219 = vpop.permute.xlu0 %1218
      %1220 = vrot.lane.b32.xlu0 %v1198, 24
      %v1221 = vpop.permute.xlu0 %1220
      %1222 = vrot.lane.b32.xlu0 %v1199, 24
      %v1223 = vpop.permute.xlu0 %1222
      %1224 = vrot.lane.b32.xlu0 %v1200, 24
      %v1225 = vpop.permute.xlu0 %1224
      %1226 = vrot.lane.b32.xlu0 %v1201, 24
      %v1227 = vpop.permute.xlu0 %1226
      %1228 = vrot.lane.b32.xlu0 %v1202, 24
      %v1229 = vpop.permute.xlu0 %1228
      %1230 = vrot.lane.b32.xlu0 %v1203, 24
      %v1231 = vpop.permute.xlu0 %1230
      %1232 = vrot.lane.b32.xlu0 %v1204, 24
      %v1233 = vpop.permute.xlu0 %1232
      %1234 = vrot.lane.b32.xlu0 %v1205, 24
      %v1235 = vpop.permute.xlu0 %1234
      %1236 = vrot.lane.b32.xlu0 %v1206, 24
      %v1237 = vpop.permute.xlu0 %1236
      %1238 = vrot.lane.b32.xlu0 %v1207, 24
      %v1239 = vpop.permute.xlu0 %1238
      %v1240 = vunpack.c.l.b16 %v860
      %v1241 = vunpack.c.l.b16 %v863
      %v1242 = vpack.c.b16 %v1241, %v1240
      %1243 = vrot.lane.b32.xlu0 %v1193, 28
      %v1244 = vpop.permute.xlu0 %1243
      %1245 = vrot.lane.b32.xlu0 %v1194, 28
      %v1246 = vpop.permute.xlu0 %1245
      %1247 = vrot.lane.b32.xlu0 %v1195, 28
      %v1248 = vpop.permute.xlu0 %1247
      %1249 = vrot.lane.b32.xlu0 %v1196, 28
      %v1250 = vpop.permute.xlu0 %1249
      %1251 = vrot.lane.b32.xlu0 %v1197, 28
      %v1252 = vpop.permute.xlu0 %1251
      %1253 = vrot.lane.b32.xlu0 %v1198, 28
      %v1254 = vpop.permute.xlu0 %1253
      %1255 = vrot.lane.b32.xlu0 %v1199, 28
      %v1256 = vpop.permute.xlu0 %1255
      %1257 = vrot.lane.b32.xlu0 %v1200, 28
      %v1258 = vpop.permute.xlu0 %1257
      %1259 = vrot.lane.b32.xlu0 %v1201, 28
      %v1260 = vpop.permute.xlu0 %1259
      %1261 = vrot.lane.b32.xlu0 %v1202, 28
      %v1262 = vpop.permute.xlu0 %1261
      %1263 = vrot.lane.b32.xlu0 %v1203, 28
      %v1264 = vpop.permute.xlu0 %1263
      %1265 = vrot.lane.b32.xlu0 %v1204, 28
      %v1266 = vpop.permute.xlu0 %1265
      %1267 = vrot.lane.b32.xlu0 %v1205, 28
      %v1268 = vpop.permute.xlu0 %1267
      %1269 = vrot.lane.b32.xlu0 %v1206, 28
      %v1270 = vpop.permute.xlu0 %1269
      %1271 = vrot.lane.b32.xlu0 %v1207, 28
      %v1272 = vpop.permute.xlu0 %1271
      %1273 = vrot.lane.b32.xlu0 %v1242, 28
      %v1274 = vpop.permute.xlu0 %1273
      %v1275 = vunpack.c.l.b16 %v870
      %v1276 = vunpack.c.l.b16 %v873
      %v1277 = vpack.c.b16 %v1276, %v1275
      %1278 = vrot.lane.b32.xlu0 %v1194, 32
      %v1279 = vpop.permute.xlu0 %1278
      %1280 = vrot.lane.b32.xlu0 %v1195, 32
      %v1281 = vpop.permute.xlu0 %1280
      %1282 = vrot.lane.b32.xlu0 %v1196, 32
      %v1283 = vpop.permute.xlu0 %1282
      %1284 = vrot.lane.b32.xlu0 %v1197, 32
      %v1285 = vpop.permute.xlu0 %1284
      %1286 = vrot.lane.b32.xlu0 %v1198, 32
      %v1287 = vpop.permute.xlu0 %1286
      %1288 = vrot.lane.b32.xlu0 %v1199, 32
      %v1289 = vpop.permute.xlu0 %1288
      %1290 = vrot.lane.b32.xlu0 %v1200, 32
      %v1291 = vpop.permute.xlu0 %1290
      %1292 = vrot.lane.b32.xlu0 %v1201, 32
      %v1293 = vpop.permute.xlu0 %1292
      %1294 = vrot.lane.b32.xlu0 %v1202, 32
      %v1295 = vpop.permute.xlu0 %1294
      %1296 = vrot.lane.b32.xlu0 %v1203, 32
      %v1297 = vpop.permute.xlu0 %1296
      %1298 = vrot.lane.b32.xlu0 %v1204, 32
      %v1299 = vpop.permute.xlu0 %1298
      %1300 = vrot.lane.b32.xlu0 %v1205, 32
      %v1301 = vpop.permute.xlu0 %1300
      %1302 = vrot.lane.b32.xlu0 %v1206, 32
      %v1303 = vpop.permute.xlu0 %1302
      %1304 = vrot.lane.b32.xlu0 %v1207, 32
      %v1305 = vpop.permute.xlu0 %1304
      %1306 = vrot.lane.b32.xlu0 %v1242, 32
      %v1307 = vpop.permute.xlu0 %1306
      %1308 = vrot.lane.b32.xlu0 %v1277, 32
      %v1309 = vpop.permute.xlu0 %1308
      %vm1310 = vcmask 31744
      %v1313 = vsel %vm1310, %v922, %v943
      %v1316 = vsel %vm1310, %v923, %v945
      %v1319 = vsel %vm1310, %v924, %v947
      %v1322 = vsel %vm1310, %v925, %v949
      %v1325 = vsel %vm1310, %v926, %v951
      %v1328 = vsel %vm1310, %v927, %v953
      %v1331 = vsel %vm1310, %v928, %v955
      %v1334 = vsel %vm1310, %v929, %v957
      %v1337 = vsel %vm1310, %v930, %v959
      %v1340 = vsel %vm1310, %v931, %v961
      %v1343 = vsel %vm1310, %v932, %v963
      %v1346 = vsel %vm1310, %v933, %v965
      %v1349 = vsel %vm1310, %v934, %v967
      %v1352 = vsel %vm1310, %v935, %v969
      %v1355 = vsel %vm1310, %v936, %v971
      %v1358 = vsel %vm1310, %v937, %v973
      %vm1359 = vcmask 64512
      %v1361 = vsel %vm1359, %v1313, %v979
      %v1363 = vsel %vm1359, %v1316, %v981
      %v1365 = vsel %vm1359, %v1319, %v983
      %v1367 = vsel %vm1359, %v1322, %v985
      %v1369 = vsel %vm1359, %v1325, %v987
      %v1371 = vsel %vm1359, %v1328, %v989
      %v1373 = vsel %vm1359, %v1331, %v991
      %v1375 = vsel %vm1359, %v1334, %v993
      %v1377 = vsel %vm1359, %v1337, %v995
      %v1379 = vsel %vm1359, %v1340, %v997
      %v1381 = vsel %vm1359, %v1343, %v999
      %v1383 = vsel %vm1359, %v1346, %v1001
      %v1385 = vsel %vm1359, %v1349, %v1003
      %v1387 = vsel %vm1359, %v1352, %v1005
      %v1389 = vsel %vm1359, %v1355, %v1007
      %v1391 = vsel %vm1359, %v1358, %v1009
      %vm1392 = vcmask 97280
      %v1394 = vsel %vm1392, %v1361, %v1059
      %v1396 = vsel %vm1392, %v1363, %v1061
      %v1398 = vsel %vm1392, %v1365, %v1063
      %v1400 = vsel %vm1392, %v1367, %v1065
      %v1402 = vsel %vm1392, %v1369, %v1067
      %v1404 = vsel %vm1392, %v1371, %v1069
      %v1406 = vsel %vm1392, %v1373, %v1071
      %v1408 = vsel %vm1392, %v1375, %v1073
      %v1410 = vsel %vm1392, %v1377, %v1075
      %v1412 = vsel %vm1392, %v1379, %v1077
      %v1414 = vsel %vm1392, %v1381, %v1079
      %v1416 = vsel %vm1392, %v1383, %v1081
      %v1418 = vsel %vm1392, %v1385, %v1083
      %v1420 = vsel %vm1392, %v1387, %v1085
      %v1422 = vsel %vm1392, %v1389, %v1087
      %v1424 = vsel %vm1392, %v1391, %v1089
      %vm1425 = vcmask 130048
      %v1427 = vsel %vm1425, %v1394, %v1094
      %v1429 = vsel %vm1425, %v1396, %v1096
      %v1431 = vsel %vm1425, %v1398, %v1098
      %v1433 = vsel %vm1425, %v1400, %v1100
      %v1435 = vsel %vm1425, %v1402, %v1102
      %v1437 = vsel %vm1425, %v1404, %v1104
      %v1439 = vsel %vm1425, %v1406, %v1106
      %v1441 = vsel %vm1425, %v1408, %v1108
      %v1443 = vsel %vm1425, %v1410, %v1110
      %v1445 = vsel %vm1425, %v1412, %v1112
      %v1447 = vsel %vm1425, %v1414, %v1114
      %v1449 = vsel %vm1425, %v1416, %v1116
      %v1451 = vsel %vm1425, %v1418, %v1118
      %v1453 = vsel %vm1425, %v1420, %v1120
      %v1455 = vsel %vm1425, %v1422, %v1122
      %v1457 = vsel %vm1425, %v1424, %v1124
      %vm1458 = vcmask 162816
      %v1460 = vsel %vm1458, %v1427, %v1129
      %v1462 = vsel %vm1458, %v1429, %v1131
      %v1464 = vsel %vm1458, %v1431, %v1133
      %v1466 = vsel %vm1458, %v1433, %v1135
      %v1468 = vsel %vm1458, %v1435, %v1137
      %v1470 = vsel %vm1458, %v1437, %v1139
      %v1472 = vsel %vm1458, %v1439, %v1141
      %v1474 = vsel %vm1458, %v1441, %v1143
      %v1476 = vsel %vm1458, %v1443, %v1145
      %v1478 = vsel %vm1458, %v1445, %v1147
      %v1480 = vsel %vm1458, %v1447, %v1149
      %v1482 = vsel %vm1458, %v1449, %v1151
      %v1484 = vsel %vm1458, %v1451, %v1153
      %v1486 = vsel %vm1458, %v1453, %v1155
      %v1488 = vsel %vm1458, %v1455, %v1157
      %v1490 = vsel %vm1458, %v1457, %v1159
      %vm1491 = vcmask 195584
      %v1493 = vsel %vm1491, %v1460, %v1209
      %v1495 = vsel %vm1491, %v1462, %v1211
      %v1497 = vsel %vm1491, %v1464, %v1213
      %v1499 = vsel %vm1491, %v1466, %v1215
      %v1501 = vsel %vm1491, %v1468, %v1217
      %v1503 = vsel %vm1491, %v1470, %v1219
      %v1505 = vsel %vm1491, %v1472, %v1221
      %v1507 = vsel %vm1491, %v1474, %v1223
      %v1509 = vsel %vm1491, %v1476, %v1225
      %v1511 = vsel %vm1491, %v1478, %v1227
      %v1513 = vsel %vm1491, %v1480, %v1229
      %v1515 = vsel %vm1491, %v1482, %v1231
      %v1517 = vsel %vm1491, %v1484, %v1233
      %v1519 = vsel %vm1491, %v1486, %v1235
      %v1521 = vsel %vm1491, %v1488, %v1237
      %v1523 = vsel %vm1491, %v1490, %v1239
      %vm1524 = vcmask 228352
      %v1526 = vsel %vm1524, %v1493, %v1244
      %v1528 = vsel %vm1524, %v1495, %v1246
      %v1530 = vsel %vm1524, %v1497, %v1248
      %v1532 = vsel %vm1524, %v1499, %v1250
      %v1534 = vsel %vm1524, %v1501, %v1252
      %v1536 = vsel %vm1524, %v1503, %v1254
      %v1538 = vsel %vm1524, %v1505, %v1256
      %v1540 = vsel %vm1524, %v1507, %v1258
      %v1542 = vsel %vm1524, %v1509, %v1260
      %v1544 = vsel %vm1524, %v1511, %v1262
      %v1546 = vsel %vm1524, %v1513, %v1264
      %v1548 = vsel %vm1524, %v1515, %v1266
      %v1550 = vsel %vm1524, %v1517, %v1268
      %v1552 = vsel %vm1524, %v1519, %v1270
      %v1554 = vsel %vm1524, %v1521, %v1272
      %v1556 = vsel %vm1524, %v1523, %v1274
      %vm1557 = vcmask 261120
      %v1559 = vsel %vm1557, %v1526, %v1279
      %v1561 = vsel %vm1557, %v1528, %v1281
      %v1563 = vsel %vm1557, %v1530, %v1283
      %v1565 = vsel %vm1557, %v1532, %v1285
      %v1567 = vsel %vm1557, %v1534, %v1287
      %v1569 = vsel %vm1557, %v1536, %v1289
      %v1571 = vsel %vm1557, %v1538, %v1291
      %v1573 = vsel %vm1557, %v1540, %v1293
      %v1575 = vsel %vm1557, %v1542, %v1295
      %v1577 = vsel %vm1557, %v1544, %v1297
      %v1579 = vsel %vm1557, %v1546, %v1299
      %v1581 = vsel %vm1557, %v1548, %v1301
      %v1583 = vsel %vm1557, %v1550, %v1303
      %v1585 = vsel %vm1557, %v1552, %v1305
      %v1587 = vsel %vm1557, %v1554, %v1307
      %v1589 = vsel %vm1557, %v1556, %v1309
      %vm1590 = vcmask 293888
      %v1592 = vsel %vm1590, %v1559, 0
      %v1594 = vsel %vm1590, %v1561, 0
      %v1596 = vsel %vm1590, %v1563, 0
      %v1598 = vsel %vm1590, %v1565, 0
      %v1600 = vsel %vm1590, %v1567, 0
      %v1602 = vsel %vm1590, %v1569, 0
      %v1604 = vsel %vm1590, %v1571, 0
      %v1606 = vsel %vm1590, %v1573, 0
      %v1608 = vsel %vm1590, %v1575, 0
      %v1610 = vsel %vm1590, %v1577, 0
      %v1612 = vsel %vm1590, %v1579, 0
      %v1614 = vsel %vm1590, %v1581, 0
      %v1616 = vsel %vm1590, %v1583, 0
      %v1618 = vsel %vm1590, %v1585, 0
      %v1620 = vsel %vm1590, %v1587, 0
      %v1622 = vsel %vm1590, %v1589, 0
      %v1624 = vld [vmem:[%s1] sm:$0xf]
      %v1625 = vld [vmem:[%s1 + $0x4] sm:$0xf]
      %v1626 = vld [vmem:[%s1 + $0x8] sm:$0xf]
      %v1627 = vld [vmem:[%s1 + $0xc] sm:$0xf]
      %v1628 = vld [vmem:[%s1 + $0x10] sm:$0xf]
      %v1629 = vld [vmem:[%s1 + $0x14] sm:$0xf]
      %v1630 = vld [vmem:[%s1 + $0x18] sm:$0xf]
      %v1631 = vld [vmem:[%s1 + $0x1c] sm:$0xf]
      %v1632 = vld [vmem:[%s1 + $0x20] sm:$0xf]
      %v1633 = vld [vmem:[%s1 + $0x24] sm:$0xf]
      %v1634 = vld [vmem:[%s1 + $0x28] sm:$0xf]
      %v1635 = vld [vmem:[%s1 + $0x2c] sm:$0xf]
      %v1636 = vld [vmem:[%s1 + $0x30] sm:$0xf]
      %v1637 = vld [vmem:[%s1 + $0x34] sm:$0xf]
      %v1638 = vld [vmem:[%s1 + $0x38] sm:$0xf]
      %v1639 = vld [vmem:[%s1 + $0x3c] sm:$0xf]
      %v1656 = vunpack.c.l.b16 %v1624
      %v1657 = vunpack.c.l.b16 %v1625
      %v1658 = vunpack.c.l.b16 %v1626
      %v1659 = vunpack.c.l.b16 %v1627
      %v1660 = vunpack.c.l.b16 %v1628
      %v1661 = vunpack.c.l.b16 %v1629
      %v1662 = vunpack.c.l.b16 %v1630
      %v1663 = vunpack.c.l.b16 %v1631
      %v1664 = vunpack.c.l.b16 %v1632
      %v1665 = vunpack.c.l.b16 %v1633
      %v1666 = vunpack.c.l.b16 %v1634
      %v1667 = vunpack.c.l.b16 %v1635
      %v1668 = vunpack.c.l.b16 %v1636
      %v1669 = vunpack.c.l.b16 %v1637
      %v1670 = vunpack.c.l.b16 %v1638
      %v1671 = vunpack.c.l.b16 %v1639
      %v1672 = vpack.c.b16 %v1657, %v1656
      %v1673 = vpack.c.b16 %v1659, %v1658
      %v1674 = vpack.c.b16 %v1661, %v1660
      %v1675 = vpack.c.b16 %v1663, %v1662
      %v1676 = vpack.c.b16 %v1665, %v1664
      %v1677 = vpack.c.b16 %v1667, %v1666
      %v1678 = vpack.c.b16 %v1669, %v1668
      %v1679 = vpack.c.b16 %v1671, %v1670
      %1688 = vmatprep.subr.bf16.mxu0 0
      %1689 = vmatpush1.bf16.msra.mxu0 %v1672
      %1690 = vmatprep.subr.bf16.mxu0 0
      %1691 = vmatpush1.bf16.msra.mxu0 %v1673
      %1692 = vmatprep.subr.bf16.mxu0 0
      %1693 = vmatpush1.bf16.msra.mxu0 %v1674
      %1694 = vmatprep.subr.bf16.mxu0 0
      %1695 = vmatpush1.bf16.msra.mxu0 %v1675
      %1696 = vmatprep.subr.bf16.mxu0 0
      %1697 = vmatpush1.bf16.msra.mxu0 %v1676
      %1698 = vmatprep.subr.bf16.mxu0 0
      %1699 = vmatpush1.bf16.msra.mxu0 %v1677
      %1700 = vmatprep.subr.bf16.mxu0 0
      %1701 = vmatpush1.bf16.msra.mxu0 %v1678
      %1702 = vmatprep.subr.bf16.mxu0 0
      %1703 = vmatpush1.bf16.msra.mxu0 %v1679
      %1704 = vmatprep.subr.bf16.mxu0 0
      %1705 = vmatpush1.bf16.msra.mxu0 0
      %1706 = vmatprep.subr.bf16.mxu0 0
      %1707 = vmatpush1.bf16.msra.mxu0 0
      %1708 = vmatprep.subr.bf16.mxu0 0
      %1709 = vmatpush1.bf16.msra.mxu0 0
      %1710 = vmatprep.subr.bf16.mxu0 0
      %1711 = vmatpush1.bf16.msra.mxu0 0
      %1712 = vmatprep.subr.bf16.mxu0 0
      %1713 = vmatpush1.bf16.msra.mxu0 0
      %1714 = vmatprep.subr.bf16.mxu0 0
      %1715 = vmatpush1.bf16.msra.mxu0 0
      %1716 = vmatprep.subr.bf16.mxu0 0
      %1717 = vmatpush1.bf16.msra.mxu0 0
      %1718 = vmatprep.subr.bf16.mxu0 0
      %1719 = vmatpush1.bf16.msra.mxu0 0
      %1720 = vmatprep.mubr.bf16.mxu0 0
      %1721 = vmatmul.mubr.bf16.gmra.mrb[0].mxu0 %v1592
      %v1722 = vpop.f32.mrb[0].mxu0
      %v1723 = vadd.f32 0.0, %v1722
      %v1724 = vpop.f32.mrb[0].mxu0
      %v1725 = vpop.f32.mrb[0].mxu0
      %v1726 = vadd.f32 0.0, %v1725
      %v1727 = vpop.f32.mrb[0].mxu0
      %1728 = vmatprep.mubr.bf16.mxu0 0
      %1729 = vmatmul.mubr.bf16.gmra.mrb[0].mxu0 %v1594
      %v1730 = vpop.f32.mrb[0].mxu0
      %v1731 = vadd.f32 0.0, %v1730
      %v1732 = vpop.f32.mrb[0].mxu0
      %v1733 = vpop.f32.mrb[0].mxu0
      %v1734 = vadd.f32 0.0, %v1733
      %v1735 = vpop.f32.mrb[0].mxu0
      %1736 = vmatprep.mubr.bf16.mxu0 0
      %1737 = vmatmul.mubr.bf16.gmra.mrb[0].mxu0 %v1596
      %v1738 = vpop.f32.mrb[0].mxu0
      %v1739 = vadd.f32 0.0, %v1738
      %v1740 = vpop.f32.mrb[0].mxu0
      %v1741 = vpop.f32.mrb[0].mxu0
      %v1742 = vadd.f32 0.0, %v1741
      %v1743 = vpop.f32.mrb[0].mxu0
      %1744 = vmatprep.mubr.bf16.mxu0 0
      %1745 = vmatmul.mubr.bf16.gmra.mrb[0].mxu0 %v1598
      %v1746 = vpop.f32.mrb[0].mxu0
      %v1747 = vadd.f32 0.0, %v1746
      %v1748 = vpop.f32.mrb[0].mxu0
      %v1749 = vpop.f32.mrb[0].mxu0
      %v1750 = vadd.f32 0.0, %v1749
      %v1751 = vpop.f32.mrb[0].mxu0
      %1752 = vmatprep.mubr.bf16.mxu0 0
      %1753 = vmatmul.mubr.bf16.gmra.mrb[0].mxu0 %v1600
      %v1754 = vpop.f32.mrb[0].mxu0
      %v1755 = vadd.f32 0.0, %v1754
      %v1756 = vpop.f32.mrb[0].mxu0
      %v1757 = vpop.f32.mrb[0].mxu0
      %v1758 = vadd.f32 0.0, %v1757
      %v1759 = vpop.f32.mrb[0].mxu0
      %1760 = vmatprep.mubr.bf16.mxu0 0
      %1761 = vmatmul.mubr.bf16.gmra.mrb[0].mxu0 %v1602
      %v1762 = vpop.f32.mrb[0].mxu0
      %v1763 = vadd.f32 0.0, %v1762
      %v1764 = vpop.f32.mrb[0].mxu0
      %v1765 = vpop.f32.mrb[0].mxu0
      %v1766 = vadd.f32 0.0, %v1765
      %v1767 = vpop.f32.mrb[0].mxu0
      %1768 = vmatprep.mubr.bf16.mxu0 0
      %1769 = vmatmul.mubr.bf16.gmra.mrb[0].mxu0 %v1604
      %v1770 = vpop.f32.mrb[0].mxu0
      %v1771 = vadd.f32 0.0, %v1770
      %v1772 = vpop.f32.mrb[0].mxu0
      %v1773 = vpop.f32.mrb[0].mxu0
      %v1774 = vadd.f32 0.0, %v1773
      %v1775 = vpop.f32.mrb[0].mxu0
      %1776 = vmatprep.mubr.bf16.mxu0 0
      %1777 = vmatmul.mubr.bf16.gmra.mrb[0].mxu0 %v1606
      %v1778 = vpop.f32.mrb[0].mxu0
      %v1779 = vadd.f32 0.0, %v1778
      %v1780 = vpop.f32.mrb[0].mxu0
      %v1781 = vpop.f32.mrb[0].mxu0
      %v1782 = vadd.f32 0.0, %v1781
      %v1783 = vpop.f32.mrb[0].mxu0
      %1784 = vmatprep.mubr.bf16.mxu0 0
      %1785 = vmatmul.mubr.bf16.gmra.mrb[0].mxu0 %v1608
      %v1786 = vpop.f32.mrb[0].mxu0
      %v1787 = vadd.f32 0.0, %v1786
      %v1788 = vpop.f32.mrb[0].mxu0
      %v1789 = vpop.f32.mrb[0].mxu0
      %v1790 = vadd.f32 0.0, %v1789
      %v1791 = vpop.f32.mrb[0].mxu0
      %1792 = vmatprep.mubr.bf16.mxu0 0
      %1793 = vmatmul.mubr.bf16.gmra.mrb[0].mxu0 %v1610
      %v1794 = vpop.f32.mrb[0].mxu0
      %v1795 = vadd.f32 0.0, %v1794
      %v1796 = vpop.f32.mrb[0].mxu0
      %v1797 = vpop.f32.mrb[0].mxu0
      %v1798 = vadd.f32 0.0, %v1797
      %v1799 = vpop.f32.mrb[0].mxu0
      %1800 = vmatprep.mubr.bf16.mxu0 0
      %1801 = vmatmul.mubr.bf16.gmra.mrb[0].mxu0 %v1612
      %v1802 = vpop.f32.mrb[0].mxu0
      %v1803 = vadd.f32 0.0, %v1802
      %v1804 = vpop.f32.mrb[0].mxu0
      %v1805 = vpop.f32.mrb[0].mxu0
      %v1806 = vadd.f32 0.0, %v1805
      %v1807 = vpop.f32.mrb[0].mxu0
      %1808 = vmatprep.mubr.bf16.mxu0 0
      %1809 = vmatmul.mubr.bf16.gmra.mrb[0].mxu0 %v1614
      %v1810 = vpop.f32.mrb[0].mxu0
      %v1811 = vadd.f32 0.0, %v1810
      %v1812 = vpop.f32.mrb[0].mxu0
      %v1813 = vpop.f32.mrb[0].mxu0
      %v1814 = vadd.f32 0.0, %v1813
      %v1815 = vpop.f32.mrb[0].mxu0
      %1816 = vmatprep.mubr.bf16.mxu0 0
      %1817 = vmatmul.mubr.bf16.gmra.mrb[0].mxu0 %v1616
      %v1818 = vpop.f32.mrb[0].mxu0
      %v1819 = vadd.f32 0.0, %v1818
      %v1820 = vpop.f32.mrb[0].mxu0
      %v1821 = vpop.f32.mrb[0].mxu0
      %v1822 = vadd.f32 0.0, %v1821
      %v1823 = vpop.f32.mrb[0].mxu0
      %1824 = vmatprep.mubr.bf16.mxu0 0
      %1825 = vmatmul.mubr.bf16.gmra.mrb[0].mxu0 %v1618
      %v1826 = vpop.f32.mrb[0].mxu0
      %v1827 = vadd.f32 0.0, %v1826
      %v1828 = vpop.f32.mrb[0].mxu0
      %v1829 = vpop.f32.mrb[0].mxu0
      %v1830 = vadd.f32 0.0, %v1829
      %v1831 = vpop.f32.mrb[0].mxu0
      %1832 = vmatprep.mubr.bf16.mxu0 0
      %1833 = vmatmul.mubr.bf16.gmra.mrb[0].mxu0 %v1620
      %v1834 = vpop.f32.mrb[0].mxu0
      %v1835 = vadd.f32 0.0, %v1834
      %v1836 = vpop.f32.mrb[0].mxu0
      %v1837 = vpop.f32.mrb[0].mxu0
      %v1838 = vadd.f32 0.0, %v1837
      %v1839 = vpop.f32.mrb[0].mxu0
      %1840 = vmatprep.mubr.bf16.mxu0 0
      %1841 = vmatmul.mubr.bf16.gmra.mrb[0].mxu0 %v1622
      %v1842 = vpop.f32.mrb[0].mxu0
      %v1843 = vadd.f32 0.0, %v1842
      %v1844 = vpop.f32.mrb[0].mxu0
      %v1845 = vpop.f32.mrb[0].mxu0
      %v1846 = vadd.f32 0.0, %v1845
      %v1847 = vpop.f32.mrb[0].mxu0
      %1848 = vdwg.mxu0
      %v1849 = vpack.c.bf16 %v1726, %v1723
      %v1850 = vpack.c.bf16 %v1734, %v1731
      %v1851 = vpack.c.bf16 %v1742, %v1739
      %v1852 = vpack.c.bf16 %v1750, %v1747
      %v1853 = vpack.c.bf16 %v1758, %v1755
      %v1854 = vpack.c.bf16 %v1766, %v1763
      %v1855 = vpack.c.bf16 %v1774, %v1771
      %v1856 = vpack.c.bf16 %v1782, %v1779
      %v1857 = vpack.c.bf16 %v1790, %v1787
      %v1858 = vpack.c.bf16 %v1798, %v1795
      %v1859 = vpack.c.bf16 %v1806, %v1803
      %v1860 = vpack.c.bf16 %v1814, %v1811
      %v1861 = vpack.c.bf16 %v1822, %v1819
      %v1862 = vpack.c.bf16 %v1830, %v1827
      %v1863 = vpack.c.bf16 %v1838, %v1835
      %v1864 = vpack.c.bf16 %v1846, %v1843
      %v1881 = vunpack.c.l.b16 %v1849
      %v1882 = vunpack.c.h.b16 %v1849
      %v1883 = vunpack.c.l.b16 %v1850
      %v1884 = vunpack.c.h.b16 %v1850
      %v1885 = vunpack.c.l.b16 %v1851
      %v1886 = vunpack.c.h.b16 %v1851
      %v1887 = vunpack.c.l.b16 %v1852
      %v1888 = vunpack.c.h.b16 %v1852
      %v1889 = vunpack.c.l.b16 %v1853
      %v1890 = vunpack.c.h.b16 %v1853
      %v1891 = vunpack.c.l.b16 %v1854
      %v1892 = vunpack.c.h.b16 %v1854
      %v1893 = vunpack.c.l.b16 %v1855
      %v1894 = vunpack.c.h.b16 %v1855
      %v1895 = vunpack.c.l.b16 %v1856
      %v1896 = vunpack.c.h.b16 %v1856
      %v1897 = vunpack.c.l.b16 %v1857
      %v1898 = vunpack.c.h.b16 %v1857
      %v1899 = vunpack.c.l.b16 %v1858
      %v1900 = vunpack.c.h.b16 %v1858
      %v1901 = vunpack.c.l.b16 %v1859
      %v1902 = vunpack.c.h.b16 %v1859
      %v1903 = vunpack.c.l.b16 %v1860
      %v1904 = vunpack.c.h.b16 %v1860
      %v1905 = vunpack.c.l.b16 %v1861
      %v1906 = vunpack.c.h.b16 %v1861
      %v1907 = vunpack.c.l.b16 %v1862
      %v1908 = vunpack.c.h.b16 %v1862
      %v1909 = vunpack.c.l.b16 %v1863
      %v1910 = vunpack.c.h.b16 %v1863
      %v1911 = vunpack.c.l.b16 %v1864
      %v1912 = vunpack.c.h.b16 %v1864
      %v1913 = vpack.c.b16 %v1881, %v1881
      %v1914 = vpack.c.b16 %v1882, %v1882
      %v1915 = vpack.c.b16 %v1883, %v1883
      %v1916 = vpack.c.b16 %v1884, %v1884
      %v1917 = vpack.c.b16 %v1885, %v1885
      %v1918 = vpack.c.b16 %v1886, %v1886
      %v1919 = vpack.c.b16 %v1887, %v1887
      %v1920 = vpack.c.b16 %v1888, %v1888
      %v1921 = vpack.c.b16 %v1889, %v1889
      %v1922 = vpack.c.b16 %v1890, %v1890
      %v1923 = vpack.c.b16 %v1891, %v1891
      %v1924 = vpack.c.b16 %v1892, %v1892
      %v1925 = vpack.c.b16 %v1893, %v1893
      %v1926 = vpack.c.b16 %v1894, %v1894
      %v1927 = vpack.c.b16 %v1895, %v1895
      %v1928 = vpack.c.b16 %v1896, %v1896
      %v1929 = vpack.c.b16 %v1897, %v1897
      %v1930 = vpack.c.b16 %v1898, %v1898
      %v1931 = vpack.c.b16 %v1899, %v1899
      %v1932 = vpack.c.b16 %v1900, %v1900
      %v1933 = vpack.c.b16 %v1901, %v1901
      %v1934 = vpack.c.b16 %v1902, %v1902
      %v1935 = vpack.c.b16 %v1903, %v1903
      %v1936 = vpack.c.b16 %v1904, %v1904
      %v1937 = vpack.c.b16 %v1905, %v1905
      %v1938 = vpack.c.b16 %v1906, %v1906
      %v1939 = vpack.c.b16 %v1907, %v1907
      %v1940 = vpack.c.b16 %v1908, %v1908
      %v1941 = vpack.c.b16 %v1909, %v1909
      %v1942 = vpack.c.b16 %v1910, %v1910
      %v1943 = vpack.c.b16 %v1911, %v1911
      %v1944 = vpack.c.b16 %v1912, %v1912
      %1977 = vst [vmem:[%s177] sm:$0xf] %v1913
      %1978 = vst [vmem:[%s177 + $0x4] sm:$0xf] %v1914
      %1979 = vst [vmem:[%s177 + $0x8] sm:$0xf] %v1915
      %1980 = vst [vmem:[%s177 + $0xc] sm:$0xf] %v1916
      %1981 = vst [vmem:[%s177 + $0x10] sm:$0xf] %v1917
      %1982 = vst [vmem:[%s177 + $0x14] sm:$0xf] %v1918
      %1983 = vst [vmem:[%s177 + $0x18] sm:$0xf] %v1919
      %1984 = vst [vmem:[%s177 + $0x1c] sm:$0xf] %v1920
      %1985 = vst [vmem:[%s177 + $0x20] sm:$0xf] %v1921
      %1986 = vst [vmem:[%s177 + $0x24] sm:$0xf] %v1922
      %1987 = vst [vmem:[%s177 + $0x28] sm:$0xf] %v1923
      %1988 = vst [vmem:[%s177 + $0x2c] sm:$0xf] %v1924
      %1989 = vst [vmem:[%s177 + $0x30] sm:$0xf] %v1925
      %1990 = vst [vmem:[%s177 + $0x34] sm:$0xf] %v1926
      %1991 = vst [vmem:[%s177 + $0x38] sm:$0xf] %v1927
      %1992 = vst [vmem:[%s177 + $0x3c] sm:$0xf] %v1928
      %1993 = vst [vmem:[%s177 + $0x40] sm:$0xf] %v1929
      %1994 = vst [vmem:[%s177 + $0x44] sm:$0xf] %v1930
      %1995 = vst [vmem:[%s177 + $0x48] sm:$0xf] %v1931
      %1996 = vst [vmem:[%s177 + $0x4c] sm:$0xf] %v1932
      %1997 = vst [vmem:[%s177 + $0x50] sm:$0xf] %v1933
      %1998 = vst [vmem:[%s177 + $0x54] sm:$0xf] %v1934
      %1999 = vst [vmem:[%s177 + $0x58] sm:$0xf] %v1935
      %2000 = vst [vmem:[%s177 + $0x5c] sm:$0xf] %v1936
      %2001 = vst [vmem:[%s177 + $0x60] sm:$0xf] %v1937
      %2002 = vst [vmem:[%s177 + $0x64] sm:$0xf] %v1938
      %2003 = vst [vmem:[%s177 + $0x68] sm:$0xf] %v1939
      %2004 = vst [vmem:[%s177 + $0x6c] sm:$0xf] %v1940
      %2005 = vst [vmem:[%s177 + $0x70] sm:$0xf] %v1941
      %2006 = vst [vmem:[%s177 + $0x74] sm:$0xf] %v1942
      %2007 = vst [vmem:[%s177 + $0x78] sm:$0xf] %v1943
      %2008 = vst [vmem:[%s177 + $0x7c] sm:$0xf] %v1944
      %v2009 = vadd.f32 %v1723, %v1726
      %v2010 = vadd.f32 %v2009, %v1731
      %v2011 = vadd.f32 %v2010, %v1734
      %v2012 = vadd.f32 %v2011, %v1739
      %v2013 = vadd.f32 %v2012, %v1742
      %v2014 = vadd.f32 %v2013, %v1747
      %v2015 = vadd.f32 %v2014, %v1750
      %v2016 = vadd.f32 %v2015, %v1755
      %v2017 = vadd.f32 %v2016, %v1758
      %v2018 = vadd.f32 %v2017, %v1763
      %v2019 = vadd.f32 %v2018, %v1766
      %v2020 = vadd.f32 %v2019, %v1771
      %v2021 = vadd.f32 %v2020, %v1774
      %v2022 = vadd.f32 %v2021, %v1779
      %v2023 = vadd.f32 %v2022, %v1782
      %v2024 = vadd.f32 %v2023, %v1787
      %v2025 = vadd.f32 %v2024, %v1790
      %v2026 = vadd.f32 %v2025, %v1795
      %v2027 = vadd.f32 %v2026, %v1798
      %v2028 = vadd.f32 %v2027, %v1803
      %v2029 = vadd.f32 %v2028, %v1806
      %v2030 = vadd.f32 %v2029, %v1811
      %v2031 = vadd.f32 %v2030, %v1814
      %v2032 = vadd.f32 %v2031, %v1819
      %v2033 = vadd.f32 %v2032, %v1822
      %v2034 = vadd.f32 %v2033, %v1827
      %v2035 = vadd.f32 %v2034, %v1830
      %v2036 = vadd.f32 %v2035, %v1835
      %v2037 = vadd.f32 %v2036, %v1838
      %v2038 = vadd.f32 %v2037, %v1843
      %v2039 = vadd.f32 %v2038, %v1846
      %v2040 = vrot.slane %v2039, 4
      %v2041 = vadd.f32 %v2039, %v2040
      %v2042 = vrot.slane %v2041, 2
      %v2043 = vadd.f32 %v2041, %v2042
      %v2044 = vrot.slane %v2043, 1
      %v2045 = vadd.f32 %v2043, %v2044
      %v2046 = vmul.f32 %v1723, %v1723
      %v2047 = vmul.f32 %v1726, %v1726
      %v2048 = vmul.f32 %v1731, %v1731
      %v2049 = vmul.f32 %v1734, %v1734
      %v2050 = vmul.f32 %v1739, %v1739
      %v2051 = vmul.f32 %v1742, %v1742
      %v2052 = vmul.f32 %v1747, %v1747
      %v2053 = vmul.f32 %v1750, %v1750
      %v2054 = vmul.f32 %v1755, %v1755
      %v2055 = vmul.f32 %v1758, %v1758
      %v2056 = vmul.f32 %v1763, %v1763
      %v2057 = vmul.f32 %v1766, %v1766
      %v2058 = vmul.f32 %v1771, %v1771
      %v2059 = vmul.f32 %v1774, %v1774
      %v2060 = vmul.f32 %v1779, %v1779
      %v2061 = vmul.f32 %v1782, %v1782
      %v2062 = vmul.f32 %v1787, %v1787
      %v2063 = vmul.f32 %v1790, %v1790
      %v2064 = vmul.f32 %v1795, %v1795
      %v2065 = vmul.f32 %v1798, %v1798
      %v2066 = vmul.f32 %v1803, %v1803
      %v2067 = vmul.f32 %v1806, %v1806
      %v2068 = vmul.f32 %v1811, %v1811
      %v2069 = vmul.f32 %v1814, %v1814
      %v2070 = vmul.f32 %v1819, %v1819
      %v2071 = vmul.f32 %v1822, %v1822
      %v2072 = vmul.f32 %v1827, %v1827
      %v2073 = vmul.f32 %v1830, %v1830
      %v2074 = vmul.f32 %v1835, %v1835
      %v2075 = vmul.f32 %v1838, %v1838
      %v2076 = vmul.f32 %v1843, %v1843
      %v2077 = vmul.f32 %v1846, %v1846
      %v2078 = vadd.f32 %v2046, %v2047
      %v2079 = vadd.f32 %v2078, %v2048
      %v2080 = vadd.f32 %v2079, %v2049
      %v2081 = vadd.f32 %v2080, %v2050
      %v2082 = vadd.f32 %v2081, %v2051
      %v2083 = vadd.f32 %v2082, %v2052
      %v2084 = vadd.f32 %v2083, %v2053
      %v2085 = vadd.f32 %v2084, %v2054
      %v2086 = vadd.f32 %v2085, %v2055
      %v2087 = vadd.f32 %v2086, %v2056
      %v2088 = vadd.f32 %v2087, %v2057
      %v2089 = vadd.f32 %v2088, %v2058
      %v2090 = vadd.f32 %v2089, %v2059
      %v2091 = vadd.f32 %v2090, %v2060
      %v2092 = vadd.f32 %v2091, %v2061
      %v2093 = vadd.f32 %v2092, %v2062
      %v2094 = vadd.f32 %v2093, %v2063
      %v2095 = vadd.f32 %v2094, %v2064
      %v2096 = vadd.f32 %v2095, %v2065
      %v2097 = vadd.f32 %v2096, %v2066
      %v2098 = vadd.f32 %v2097, %v2067
      %v2099 = vadd.f32 %v2098, %v2068
      %v2100 = vadd.f32 %v2099, %v2069
      %v2101 = vadd.f32 %v2100, %v2070
      %v2102 = vadd.f32 %v2101, %v2071
      %v2103 = vadd.f32 %v2102, %v2072
      %v2104 = vadd.f32 %v2103, %v2073
      %v2105 = vadd.f32 %v2104, %v2074
      %v2106 = vadd.f32 %v2105, %v2075
      %v2107 = vadd.f32 %v2106, %v2076
      %v2108 = vadd.f32 %v2107, %v2077
      %v2109 = vrot.slane %v2108, 4
      %v2110 = vadd.f32 %v2108, %v2109
      %v2111 = vrot.slane %v2110, 2
      %v2112 = vadd.f32 %v2110, %v2111
      %v2113 = vrot.slane %v2112, 1
      %v2114 = vadd.f32 %v2112, %v2113
      %vm2115 = vcmask 1040384
      %v2116 = vsel %vm2115, %v2045, %v2114
      %vm2117 = vcmask 1041408
      %v2118 = vsel %vm2117, %v2116, 0.0
      %2119 = vst [vmem:[%s182] sm:$0xff] %v2118
      %s2120 = smul.u32 32, %s15
      %p2121 = scmp.lt.s32.totalorder %s2120, 63
      %s2122 = scalar_select %p2121, %s2120, 63
      %s2123 = smul.addr %s2122, 4
      %s2124 = scalar_lea.vmem %s2, %s2123
      %p2125 = scmp.lt.s32.totalorder %s15, 1
      %s2126 = scalar_select %p2125, %s15, 1
      %s2127 = smul.addr %s2126, 8
      %s2128 = scalar_lea.vmem %s3, %s2127
      // Predicated region
      $region29: #{conv_block_forward.3} parent=27 // pred_check
        %p2129 = pneg %p80
      $region30: #{conv_block_forward.3} parent=27 // pred_check_branch
        %2131 = sbr.rel (%p2129) target = $region32
      $region31: #{conv_block_forward.3} parent=27 // pred_region
        %s2132 = smul.u32 32, %s15
      $region32: #{conv_block_forward.3} parent=27 // pred_fallthru
        _
      // Predicated region
      $region33: #{conv_block_forward.3} parent=27 // pred_check
        %p2133 = pneg %p106
      $region34: #{conv_block_forward.3} parent=27 // pred_check_branch
        %2135 = sbr.rel (%p2133) target = $region36
      $region35: #{conv_block_forward.3} parent=27 // pred_region
        _
      $region36: #{conv_block_forward.3} parent=27 // pred_fallthru
        _
    $region28: #{conv_block_forward.3} parent=5 // pred_fallthru
      _
    %p2136 = scmp.le.s32.totalorder 2, %s10
    // Predicated region
    $region37: #{conv_block_forward.3} parent=5 // pred_check
      %p2137 = pneg %p2136
    $region38: #{conv_block_forward.3} parent=5 // pred_check_branch
      %2139 = sbr.rel (%p2137) target = $region40
    $region39: #{conv_block_forward.3} parent=5 // pred_region
      %s2140 = ssub.s32 %s10, 2
      // Predicated region
      $region41: #{conv_block_forward.3} parent=39 // pred_check
        %p2141 = pneg %p86
      $region42: #{conv_block_forward.3} parent=39 // pred_check_branch
        %2143 = sbr.rel (%p2141) target = $region44
      $region43: #{conv_block_forward.3} parent=39 // pred_region
        %s2144 = smul.u32 32, %s16
        %p2145 = scmp.lt.s32.totalorder %s2144, 63
        %s2146 = scalar_select %p2145, %s2144, 63
        %s2147 = smul.addr %s2146, 4
        %s2148 = scalar_lea.vmem %s2, %s2147
      $region44: #{conv_block_forward.3} parent=39 // pred_fallthru
        _
      // Predicated region
      $region45: #{conv_block_forward.3} parent=39 // pred_check
        %p2149 = pneg %p112
      $region46: #{conv_block_forward.3} parent=39 // pred_check_branch
        %2151 = sbr.rel (%p2149) target = $region48
      $region47: #{conv_block_forward.3} parent=39 // pred_region
        %p2152 = scmp.lt.s32.totalorder %s16, 1
        %s2153 = scalar_select %p2152, %s16, 1
        %s2154 = smul.addr %s2153, 8
        %s2155 = scalar_lea.vmem %s3, %s2154
      $region48: #{conv_block_forward.3} parent=39 // pred_fallthru
        _
    $region40: #{conv_block_forward.3} parent=5 // pred_fallthru
      _
  $region6: #{conv_block_forward.3} parent=0 // loop_footer
    %s14 = sadd.s32 1, %s10
  $region7: #{conv_block_forward.3} parent=0 // loop_footer_branch
    %9 = sbr.rel target = $region3
  $region8: #{conv_block_forward.3} parent=0 // loop_exit
    _

// kernel: conv_block_forward.4
$region0: #{conv_block_forward.4}
  #allocation0 [shape = 'u32[]', space=smem, size = 0x4, offset = 0x4, fixed_abs, tag = 'smem constant byte address 0x4 - core index']
  #allocation1 [shape = 'u32[144,128]{1,0:T(1,128)}', space=vmem, size = 0x12000, scoped, tag = 'internal scratch']
  #allocation2 [shape = 'bf16[18,18,128]{2,1,0:T(8,128)(2,1)}', space=vmem, size = 0x1b000, scoped, tag = 'scratch operand']
  %s0 = inlined_call_operand.vmem [shape: bf16[512,128], index: 0, kind: input, shape index: {}]
  %s1 = inlined_call_operand.vmem [shape: f32[1,128], index: 1, kind: input, shape index: {}]
  %s2 = inlined_call_operand.vmem [shape: f32[1,128], index: 2, kind: input, shape index: {}]
  %s3 = inlined_call_operand.vmem [shape: bf16[1152,128], index: 3, kind: input, shape index: {}]
  %s4 = inlined_call_operand.vmem [shape: bf16[512,128], index: 4, kind: output, shape index: {0}]
  %s5 = inlined_call_operand.vmem [shape: f32[2,8,128], index: 5, kind: output, shape index: {1}]
  %6 = xla_tuple %s4, %s5
  %s7 = sld [smem:[#allocation0]]
  $region57: #{conv_block_forward.4} parent=0
    _
  %s9 = ssub.s32 1, %s7
  %s10 = scalar_select 0, %s9, %s7
  loop: start=0, step=1, limit=4
  $region2: #{conv_block_forward.4} parent=0 // loop_pre_header
    _
  $region3: #{conv_block_forward.4} parent=0 // loop_header
    %s12 = sphi 0, %s16
    %p13 = scmp.ge.s32.totalorder %s12, 4
    %s22 = sphi 0, %s24
    %s25 = sphi 0, %s22
    %s26 = sphi 0, %s25
    %s42 = sphi 0, %s26
    %s46 = sphi 0, %s46
    %s48 = sphi 0, %s46
    %s49 = sphi 0, %s48
    %s63 = sphi 0, %s49
    %s67 = sphi 0, %s67
    %s69 = sphi 0, %s67
    %s70 = sphi 0, %s69
    %s84 = sphi 0, %s70
    %s88 = sphi 0, %s88
    %s90 = sphi 0, %s88
    %s91 = sphi 0, %s90
    %s105 = sphi 0, %s91
    %s111 = sphi 0, %s113
    %s114 = sphi 0, %s111
    %s115 = sphi 0, %s114
    %s131 = sphi 0, %s115
    %s137 = sphi 0, %s139
    %s140 = sphi 0, %s137
    %s141 = sphi 0, %s140
    %s157 = sphi 0, %s141
  $region4: #{conv_block_forward.4} parent=0 // loop_header_branch
    %15 = sbr.rel (%p13) target = $region8
  $region5: #{conv_block_forward.4} parent=0 // loop_body
    %s17 = ssub.s32 %s12, 1
    %s18 = ssub.s32 %s12, 2
    %s19 = sadd.s32 %s12, 1
    %s20 = ssub.s32 %s12, %s19
    %p21 = scmp.eq.s32.totalorder %s20, 0
    %s23 = sadd.s32 %s22, 1
    %s24 = scalar_select %p21, %s22, %s23
    %p27 = pneg %p21
    %p28 = scmp.eq.s32.totalorder %s12, 1
    %p29 = por %p27, %p28
    %p30 = scmp.ne.s32.totalorder %s22, %s25
    %p31 = scmp.eq.s32.totalorder %s12, 0
    %p32 = por %p30, %p31
    %p33 = scmp.ne.s32.totalorder %s22, %s25
    %p34 = scmp.eq.s32.totalorder %s17, 1
    %p35 = por %p33, %p34
    %p36 = scmp.ne.s32.totalorder %s25, %s26
    %p37 = scmp.eq.s32.totalorder %s17, 0
    %p38 = por %p36, %p37
    %p39 = scmp.ne.s32.totalorder %s25, %s26
    %p40 = scmp.eq.s32.totalorder %s18, 1
    %p41 = por %p39, %p40
    %p43 = scmp.ne.s32.totalorder %s26, %s42
    %p44 = scmp.eq.s32.totalorder %s18, 0
    %p45 = por %p43, %p44
    %s47 = sadd.s32 %s46, 1
    %p50 = scmp.eq.s32.totalorder %s12, 1
    %p51 = scmp.ne.s32.totalorder %s46, %s48
    %p52 = scmp.eq.s32.totalorder %s12, 0
    %p53 = por %p51, %p52
    %p54 = scmp.ne.s32.totalorder %s46, %s48
    %p55 = scmp.eq.s32.totalorder %s17, 1
    %p56 = por %p54, %p55
    %p57 = scmp.ne.s32.totalorder %s48, %s49
    %p58 = scmp.eq.s32.totalorder %s17, 0
    %p59 = por %p57, %p58
    %p60 = scmp.ne.s32.totalorder %s48, %s49
    %p61 = scmp.eq.s32.totalorder %s18, 1
    %p62 = por %p60, %p61
    %p64 = scmp.ne.s32.totalorder %s49, %s63
    %p65 = scmp.eq.s32.totalorder %s18, 0
    %p66 = por %p64, %p65
    %s68 = sadd.s32 %s67, 1
    %p71 = scmp.eq.s32.totalorder %s12, 1
    %p72 = scmp.ne.s32.totalorder %s67, %s69
    %p73 = scmp.eq.s32.totalorder %s12, 0
    %p74 = por %p72, %p73
    %p75 = scmp.ne.s32.totalorder %s67, %s69
    %p76 = scmp.eq.s32.totalorder %s17, 1
    %p77 = por %p75, %p76
    %p78 = scmp.ne.s32.totalorder %s69, %s70
    %p79 = scmp.eq.s32.totalorder %s17, 0
    %p80 = por %p78, %p79
    %p81 = scmp.ne.s32.totalorder %s69, %s70
    %p82 = scmp.eq.s32.totalorder %s18, 1
    %p83 = por %p81, %p82
    %p85 = scmp.ne.s32.totalorder %s70, %s84
    %p86 = scmp.eq.s32.totalorder %s18, 0
    %p87 = por %p85, %p86
    %s89 = sadd.s32 %s88, 1
    %p92 = scmp.eq.s32.totalorder %s12, 1
    %p93 = scmp.ne.s32.totalorder %s88, %s90
    %p94 = scmp.eq.s32.totalorder %s12, 0
    %p95 = por %p93, %p94
    %p96 = scmp.ne.s32.totalorder %s88, %s90
    %p97 = scmp.eq.s32.totalorder %s17, 1
    %p98 = por %p96, %p97
    %p99 = scmp.ne.s32.totalorder %s90, %s91
    %p100 = scmp.eq.s32.totalorder %s17, 0
    %p101 = por %p99, %p100
    %p102 = scmp.ne.s32.totalorder %s90, %s91
    %p103 = scmp.eq.s32.totalorder %s18, 1
    %p104 = por %p102, %p103
    %p106 = scmp.ne.s32.totalorder %s91, %s105
    %p107 = scmp.eq.s32.totalorder %s18, 0
    %p108 = por %p106, %p107
    %s109 = ssub.s32 %s12, %s19
    %p110 = scmp.eq.s32.totalorder %s109, 0
    %s112 = sadd.s32 %s111, 1
    %s113 = scalar_select %p110, %s111, %s112
    %p116 = pneg %p110
    %p117 = scmp.eq.s32.totalorder %s12, 1
    %p118 = por %p116, %p117
    %p119 = scmp.ne.s32.totalorder %s111, %s114
    %p120 = scmp.eq.s32.totalorder %s12, 0
    %p121 = por %p119, %p120
    %p122 = scmp.ne.s32.totalorder %s111, %s114
    %p123 = scmp.eq.s32.totalorder %s17, 1
    %p124 = por %p122, %p123
    %p125 = scmp.ne.s32.totalorder %s114, %s115
    %p126 = scmp.eq.s32.totalorder %s17, 0
    %p127 = por %p125, %p126
    %p128 = scmp.ne.s32.totalorder %s114, %s115
    %p129 = scmp.eq.s32.totalorder %s18, 1
    %p130 = por %p128, %p129
    %p132 = scmp.ne.s32.totalorder %s115, %s131
    %p133 = scmp.eq.s32.totalorder %s18, 0
    %p134 = por %p132, %p133
    %s135 = ssub.s32 %s12, %s19
    %p136 = scmp.eq.s32.totalorder %s135, 0
    %s138 = sadd.s32 %s137, 1
    %s139 = scalar_select %p136, %s137, %s138
    %p142 = pneg %p136
    %p143 = scmp.eq.s32.totalorder %s12, 1
    %p144 = por %p142, %p143
    %p145 = scmp.ne.s32.totalorder %s137, %s140
    %p146 = scmp.eq.s32.totalorder %s12, 0
    %p147 = por %p145, %p146
    %p148 = scmp.ne.s32.totalorder %s137, %s140
    %p149 = scmp.eq.s32.totalorder %s17, 1
    %p150 = por %p148, %p149
    %p151 = scmp.ne.s32.totalorder %s140, %s141
    %p152 = scmp.eq.s32.totalorder %s17, 0
    %p153 = por %p151, %p152
    %p154 = scmp.ne.s32.totalorder %s140, %s141
    %p155 = scmp.eq.s32.totalorder %s18, 1
    %p156 = por %p154, %p155
    %p158 = scmp.ne.s32.totalorder %s141, %s157
    %p159 = scmp.eq.s32.totalorder %s18, 0
    %p160 = por %p158, %p159
    %p161 = scmp.le.s32.totalorder 1, %s12
    %p162 = scmp.lt.s32.totalorder %s12, 3
    %p163 = pnand %p161, %p162
    %p164 = pneg %p163
    // Predicated region
    $region9: #{conv_block_forward.4} parent=5 // pred_check
      _
    $region10: #{conv_block_forward.4} parent=5 // pred_check_branch
      %166 = sbr.rel (%p163) target = $region12
    $region11: #{conv_block_forward.4} parent=5 // pred_region
      %s167 = ssub.s32 %s12, 1
      // Predicated region
      $region13: #{conv_block_forward.4} parent=11 // pred_check
        %p168 = pneg %p59
      $region14: #{conv_block_forward.4} parent=11 // pred_check_branch
        %170 = sbr.rel (%p168) target = $region16
      $region15: #{conv_block_forward.4} parent=11 // pred_region
        _
      $region16: #{conv_block_forward.4} parent=11 // pred_fallthru
        _
      // Predicated region
      $region17: #{conv_block_forward.4} parent=11 // pred_check
        %p171 = pneg %p80
      $region18: #{conv_block_forward.4} parent=11 // pred_check_branch
        %173 = sbr.rel (%p171) target = $region20
      $region19: #{conv_block_forward.4} parent=11 // pred_region
        _
      $region20: #{conv_block_forward.4} parent=11 // pred_fallthru
        _
      // Predicated region
      $region21: #{conv_block_forward.4} parent=11 // pred_check
        %p174 = pneg %p101
      $region22: #{conv_block_forward.4} parent=11 // pred_check_branch
        %176 = sbr.rel (%p174) target = $region24
      $region23: #{conv_block_forward.4} parent=11 // pred_region
        _
      $region24: #{conv_block_forward.4} parent=11 // pred_fallthru
        _
    $region12: #{conv_block_forward.4} parent=5 // pred_fallthru
      _
    %p177 = scmp.lt.s32.totalorder %s12, 2
    // Predicated region
    $region25: #{conv_block_forward.4} parent=5 // pred_check
      %p178 = pneg %p177
    $region26: #{conv_block_forward.4} parent=5 // pred_check_branch
      %180 = sbr.rel (%p178) target = $region28
    $region27: #{conv_block_forward.4} parent=5 // pred_region
      // Predicated region
      $region29: #{conv_block_forward.4} parent=27 // pred_check
        %p181 = pneg %p32
      $region30: #{conv_block_forward.4} parent=27 // pred_check_branch
        %183 = sbr.rel (%p181) target = $region32
      $region31: #{conv_block_forward.4} parent=27 // pred_region
        %s184 = smul.u32 32, %s12
        %p185 = scmp.lt.s32.totalorder %s184, 63
        %s186 = scalar_select %p185, %s184, 63
        %s187 = smul.addr %s186, 4
        %s188 = scalar_lea.vmem %s0, %s187
        %s189 = smul.u32 32, %s12
      $region32: #{conv_block_forward.4} parent=27 // pred_fallthru
        _
    $region28: #{conv_block_forward.4} parent=5 // pred_fallthru
      _
    %p190 = scmp.le.s32.totalorder 1, %s12
    %p191 = scmp.lt.s32.totalorder %s12, 3
    %p192 = pnand %p190, %p191
    %p193 = pneg %p192
    // Predicated region
    $region33: #{conv_block_forward.4} parent=5 // pred_check
      _
    $region34: #{conv_block_forward.4} parent=5 // pred_check_branch
      %195 = sbr.rel (%p192) target = $region36
    $region35: #{conv_block_forward.4} parent=5 // pred_region
      %s196 = ssub.s32 %s12, 1
      %s197 = smul.u32 32, %s17
      %p198 = scmp.lt.s32.totalorder %s197, 63
      %s199 = scalar_select %p198, %s197, 63
      %s200 = smul.addr %s199, 4
      %s201 = scalar_lea.vmem %s0, %s200
      %p202 = pneg %p38
      %p203 = pneg %p35
      %p204 = pneg %p59
      %p205 = pneg %p56
      %p206 = pneg %p80
      %p207 = pneg %p77
      %p208 = pneg %p101
      %p209 = pneg %p98
      %p210 = pneg %p127
      %p211 = pneg %p124
      %s212 = smul.u32 32, %s17
      %p213 = scmp.lt.s32.totalorder %s212, 63
      %s214 = scalar_select %p213, %s212, 63
      %s215 = smul.addr %s214, 4
      %s216 = scalar_lea.vmem %s4, %s215
      %p217 = pneg %p153
      %p218 = pneg %p150
      %p219 = scmp.lt.s32.totalorder %s17, 1
      %s220 = scalar_select %p219, %s17, 1
      %s221 = smul.addr %s220, 8
      %s222 = scalar_lea.vmem %s5, %s221
      %s223 = smul.u32 32, %s17
      %p224 = scmp.lt.s32.totalorder %s223, 63
      %s225 = scalar_select %p224, %s223, 63
      %s226 = smul.addr %s225, 4
      %s227 = scalar_lea.vmem %s0, %s226
      %s228 = smul.u32 32, %s17
      %s229 = smul.u32 32, %s17
      %p230 = scmp.lt.s32.totalorder %s229, 63
      %s231 = scalar_select %p230, %s229, 63
      %s232 = smul.addr %s231, 4
      %s233 = scalar_lea.vmem %s4, %s232
      %s234 = smul.u32 32, %s17
      %p235 = scmp.lt.s32.totalorder %s17, 1
      %s236 = scalar_select %p235, %s17, 1
      %s237 = smul.addr %s236, 8
      %s238 = scalar_lea.vmem %s5, %s237
      %v240 = vld [vmem:[%s227] sm:$0xf]
      %v241 = vld [vmem:[%s227 + $0x4] sm:$0xf]
      %v242 = vld [vmem:[%s227 + $0x8] sm:$0xf]
      %v243 = vld [vmem:[%s227 + $0xc] sm:$0xf]
      %v244 = vld [vmem:[%s227 + $0x10] sm:$0xf]
      %v245 = vld [vmem:[%s227 + $0x14] sm:$0xf]
      %v246 = vld [vmem:[%s227 + $0x18] sm:$0xf]
      %v247 = vld [vmem:[%s227 + $0x1c] sm:$0xf]
      %v248 = vld [vmem:[%s227 + $0x20] sm:$0xf]
      %v249 = vld [vmem:[%s227 + $0x24] sm:$0xf]
      %v250 = vld [vmem:[%s227 + $0x28] sm:$0xf]
      %v251 = vld [vmem:[%s227 + $0x2c] sm:$0xf]
      %v252 = vld [vmem:[%s227 + $0x30] sm:$0xf]
      %v253 = vld [vmem:[%s227 + $0x34] sm:$0xf]
      %v254 = vld [vmem:[%s227 + $0x38] sm:$0xf]
      %v255 = vld [vmem:[%s227 + $0x3c] sm:$0xf]
      %v256 = vld [vmem:[%s227 + $0x40] sm:$0xf]
      %v257 = vld [vmem:[%s227 + $0x44] sm:$0xf]
      %v258 = vld [vmem:[%s227 + $0x48] sm:$0xf]
      %v259 = vld [vmem:[%s227 + $0x4c] sm:$0xf]
      %v260 = vld [vmem:[%s227 + $0x50] sm:$0xf]
      %v261 = vld [vmem:[%s227 + $0x54] sm:$0xf]
      %v262 = vld [vmem:[%s227 + $0x58] sm:$0xf]
      %v263 = vld [vmem:[%s227 + $0x5c] sm:$0xf]
      %v264 = vld [vmem:[%s227 + $0x60] sm:$0xf]
      %v265 = vld [vmem:[%s227 + $0x64] sm:$0xf]
      %v266 = vld [vmem:[%s227 + $0x68] sm:$0xf]
      %v267 = vld [vmem:[%s227 + $0x6c] sm:$0xf]
      %v268 = vld [vmem:[%s227 + $0x70] sm:$0xf]
      %v269 = vld [vmem:[%s227 + $0x74] sm:$0xf]
      %v270 = vld [vmem:[%s227 + $0x78] sm:$0xf]
      %v271 = vld [vmem:[%s227 + $0x7c] sm:$0xf]
      %v272 = vunpack.c.l.bf16 %v240
      %v273 = vunpack.c.l.bf16 %v241
      %v274 = vunpack.c.l.bf16 %v242
      %v275 = vunpack.c.l.bf16 %v243
      %v276 = vunpack.c.l.bf16 %v244
      %v277 = vunpack.c.l.bf16 %v245
      %v278 = vunpack.c.l.bf16 %v246
      %v279 = vunpack.c.l.bf16 %v247
      %v280 = vunpack.c.l.bf16 %v248
      %v281 = vunpack.c.l.bf16 %v249
      %v282 = vunpack.c.l.bf16 %v250
      %v283 = vunpack.c.l.bf16 %v251
      %v284 = vunpack.c.l.bf16 %v252
      %v285 = vunpack.c.l.bf16 %v253
      %v286 = vunpack.c.l.bf16 %v254
      %v287 = vunpack.c.l.bf16 %v255
      %v288 = vunpack.c.l.bf16 %v256
      %v289 = vunpack.c.l.bf16 %v257
      %v290 = vunpack.c.l.bf16 %v258
      %v291 = vunpack.c.l.bf16 %v259
      %v292 = vunpack.c.l.bf16 %v260
      %v293 = vunpack.c.l.bf16 %v261
      %v294 = vunpack.c.l.bf16 %v262
      %v295 = vunpack.c.l.bf16 %v263
      %v296 = vunpack.c.l.bf16 %v264
      %v297 = vunpack.c.l.bf16 %v265
      %v298 = vunpack.c.l.bf16 %v266
      %v299 = vunpack.c.l.bf16 %v267
      %v300 = vunpack.c.l.bf16 %v268
      %v301 = vunpack.c.l.bf16 %v269
      %v302 = vunpack.c.l.bf16 %v270
      %v303 = vunpack.c.l.bf16 %v271
      %v304 = vld [vmem:[%s1] sm:$0x1]
      %v306 = vlaneseq
      %v307 = vshrl.u32 %v306, 7
      %v308 = vsub.s32 0, %v307
      %v309 = vrot.slane %v304, %v308
      %v311 = vmul.f32 %v272, %v309
      %v312 = vmul.f32 %v273, %v309
      %v313 = vmul.f32 %v274, %v309
      %v314 = vmul.f32 %v275, %v309
      %v315 = vmul.f32 %v276, %v309
      %v316 = vmul.f32 %v277, %v309
      %v317 = vmul.f32 %v278, %v309
      %v318 = vmul.f32 %v279, %v309
      %v319 = vmul.f32 %v280, %v309
      %v320 = vmul.f32 %v281, %v309
      %v321 = vmul.f32 %v282, %v309
      %v322 = vmul.f32 %v283, %v309
      %v323 = vmul.f32 %v284, %v309
      %v324 = vmul.f32 %v285, %v309
      %v325 = vmul.f32 %v286, %v309
      %v326 = vmul.f32 %v287, %v309
      %v327 = vmul.f32 %v288, %v309
      %v328 = vmul.f32 %v289, %v309
      %v329 = vmul.f32 %v290, %v309
      %v330 = vmul.f32 %v291, %v309
      %v331 = vmul.f32 %v292, %v309
      %v332 = vmul.f32 %v293, %v309
      %v333 = vmul.f32 %v294, %v309
      %v334 = vmul.f32 %v295, %v309
      %v335 = vmul.f32 %v296, %v309
      %v336 = vmul.f32 %v297, %v309
      %v337 = vmul.f32 %v298, %v309
      %v338 = vmul.f32 %v299, %v309
      %v339 = vmul.f32 %v300, %v309
      %v340 = vmul.f32 %v301, %v309
      %v341 = vmul.f32 %v302, %v309
      %v342 = vmul.f32 %v303, %v309
      %v343 = vld [vmem:[%s2] sm:$0x1]
      %v345 = vlaneseq
      %v346 = vshrl.u32 %v345, 7
      %v347 = vsub.s32 0, %v346
      %v348 = vrot.slane %v343, %v347
      %v350 = vadd.f32 %v311, %v348
      %v351 = vadd.f32 %v312, %v348
      %v352 = vadd.f32 %v313, %v348
      %v353 = vadd.f32 %v314, %v348
      %v354 = vadd.f32 %v315, %v348
      %v355 = vadd.f32 %v316, %v348
      %v356 = vadd.f32 %v317, %v348
      %v357 = vadd.f32 %v318, %v348
      %v358 = vadd.f32 %v319, %v348
      %v359 = vadd.f32 %v320, %v348
      %v360 = vadd.f32 %v321, %v348
      %v361 = vadd.f32 %v322, %v348
      %v362 = vadd.f32 %v323, %v348
      %v363 = vadd.f32 %v324, %v348
      %v364 = vadd.f32 %v325, %v348
      %v365 = vadd.f32 %v326, %v348
      %v366 = vadd.f32 %v327, %v348
      %v367 = vadd.f32 %v328, %v348
      %v368 = vadd.f32 %v329, %v348
      %v369 = vadd.f32 %v330, %v348
      %v370 = vadd.f32 %v331, %v348
      %v371 = vadd.f32 %v332, %v348
      %v372 = vadd.f32 %v333, %v348
      %v373 = vadd.f32 %v334, %v348
      %v374 = vadd.f32 %v335, %v348
      %v375 = vadd.f32 %v336, %v348
      %v376 = vadd.f32 %v337, %v348
      %v377 = vadd.f32 %v338, %v348
      %v378 = vadd.f32 %v339, %v348
      %v379 = vadd.f32 %v340, %v348
      %v380 = vadd.f32 %v341, %v348
      %v381 = vadd.f32 %v342, %v348
      %v382 = vmax.f32 %v350, 0.0
      %v383 = vmax.f32 %v351, 0.0
      %v384 = vmax.f32 %v352, 0.0
      %v385 = vmax.f32 %v353, 0.0
      %v386 = vmax.f32 %v354, 0.0
      %v387 = vmax.f32 %v355, 0.0
      %v388 = vmax.f32 %v356, 0.0
      %v389 = vmax.f32 %v357, 0.0
      %v390 = vmax.f32 %v358, 0.0
      %v391 = vmax.f32 %v359, 0.0
      %v392 = vmax.f32 %v360, 0.0
      %v393 = vmax.f32 %v361, 0.0
      %v394 = vmax.f32 %v362, 0.0
      %v395 = vmax.f32 %v363, 0.0
      %v396 = vmax.f32 %v364, 0.0
      %v397 = vmax.f32 %v365, 0.0
      %v398 = vmax.f32 %v366, 0.0
      %v399 = vmax.f32 %v367, 0.0
      %v400 = vmax.f32 %v368, 0.0
      %v401 = vmax.f32 %v369, 0.0
      %v402 = vmax.f32 %v370, 0.0
      %v403 = vmax.f32 %v371, 0.0
      %v404 = vmax.f32 %v372, 0.0
      %v405 = vmax.f32 %v373, 0.0
      %v406 = vmax.f32 %v374, 0.0
      %v407 = vmax.f32 %v375, 0.0
      %v408 = vmax.f32 %v376, 0.0
      %v409 = vmax.f32 %v377, 0.0
      %v410 = vmax.f32 %v378, 0.0
      %v411 = vmax.f32 %v379, 0.0
      %v412 = vmax.f32 %v380, 0.0
      %v413 = vmax.f32 %v381, 0.0
      %v414 = vpack.c.bf16 %v383, %v382
      %v415 = vpack.c.bf16 %v385, %v384
      %v416 = vpack.c.bf16 %v387, %v386
      %v417 = vpack.c.bf16 %v389, %v388
      %v418 = vpack.c.bf16 %v391, %v390
      %v419 = vpack.c.bf16 %v393, %v392
      %v420 = vpack.c.bf16 %v395, %v394
      %v421 = vpack.c.bf16 %v397, %v396
      %v422 = vpack.c.bf16 %v399, %v398
      %v423 = vpack.c.bf16 %v401, %v400
      %v424 = vpack.c.bf16 %v403, %v402
      %v425 = vpack.c.bf16 %v405, %v404
      %v426 = vpack.c.bf16 %v407, %v406
      %v427 = vpack.c.bf16 %v409, %v408
      %v428 = vpack.c.bf16 %v411, %v410
      %v429 = vpack.c.bf16 %v413, %v412
      %430 = vst [vmem:[#allocation2] sm:$0xf] 0
      %431 = vst [vmem:[#allocation2 + $0x4] sm:$0xf] 0
      %432 = vst [vmem:[#allocation2 + $0x8] sm:$0x1] 0
      %433 = vst [vmem:[#allocation2 + $0xc] sm:$0xf] 0
      %434 = vst [vmem:[#allocation2 + $0x10] sm:$0xf] 0
      %435 = vst [vmem:[#allocation2 + $0x14] sm:$0x1] 0
      %436 = vst [vmem:[#allocation2 + $0x18] sm:$0xf] 0
      %437 = vst [vmem:[#allocation2 + $0x1c] sm:$0xf] 0
      %438 = vst [vmem:[#allocation2 + $0x20] sm:$0x1] 0
      %439 = vst [vmem:[#allocation2 + $0x24] sm:$0xf] 0
      %440 = vst [vmem:[#allocation2 + $0x28] sm:$0xf] 0
      %441 = vst [vmem:[#allocation2 + $0x2c] sm:$0x1] 0
      %442 = vst [vmem:[#allocation2 + $0x30] sm:$0xf] 0
      %443 = vst [vmem:[#allocation2 + $0x34] sm:$0xf] 0
      %444 = vst [vmem:[#allocation2 + $0x38] sm:$0x1] 0
      %445 = vst [vmem:[#allocation2 + $0x3c] sm:$0xf] 0
      %446 = vst [vmem:[#allocation2 + $0x40] sm:$0xf] 0
      %447 = vst [vmem:[#allocation2 + $0x44] sm:$0x1] 0
      %448 = vst [vmem:[#allocation2 + $0x48] sm:$0xf] 0
      %449 = vst [vmem:[#allocation2 + $0x4c] sm:$0xf] 0
      %450 = vst [vmem:[#allocation2 + $0x50] sm:$0x1] 0
      %451 = vst [vmem:[#allocation2 + $0x54] sm:$0xf] 0
      %452 = vst [vmem:[#allocation2 + $0x58] sm:$0xf] 0
      %453 = vst [vmem:[#allocation2 + $0x5c] sm:$0x1] 0
      %454 = vst [vmem:[#allocation2 + $0x60] sm:$0xf] 0
      %455 = vst [vmem:[#allocation2 + $0x64] sm:$0xf] 0
      %456 = vst [vmem:[#allocation2 + $0x68] sm:$0x1] 0
      %457 = vst [vmem:[#allocation2 + $0x6c] sm:$0xf] 0
      %458 = vst [vmem:[#allocation2 + $0x70] sm:$0xf] 0
      %459 = vst [vmem:[#allocation2 + $0x74] sm:$0x1] 0
      %460 = vst [vmem:[#allocation2 + $0x78] sm:$0xf] 0
      %461 = vst [vmem:[#allocation2 + $0x7c] sm:$0xf] 0
      %462 = vst [vmem:[#allocation2 + $0x80] sm:$0x1] 0
      %463 = vst [vmem:[#allocation2 + $0x84] sm:$0xf] 0
      %464 = vst [vmem:[#allocation2 + $0x88] sm:$0xf] 0
      %465 = vst [vmem:[#allocation2 + $0x8c] sm:$0x1] 0
      %466 = vst [vmem:[#allocation2 + $0x90] sm:$0xf] 0
      %467 = vst [vmem:[#allocation2 + $0x94] sm:$0xf] 0
      %468 = vst [vmem:[#allocation2 + $0x98] sm:$0x1] 0
      %469 = vst [vmem:[#allocation2 + $0x9c] sm:$0xf] 0
      %470 = vst [vmem:[#allocation2 + $0xa0] sm:$0xf] 0
      %471 = vst [vmem:[#allocation2 + $0xa4] sm:$0x1] 0
      %472 = vst [vmem:[#allocation2 + $0xa8] sm:$0xf] 0
      %473 = vst [vmem:[#allocation2 + $0xac] sm:$0xf] 0
      %474 = vst [vmem:[#allocation2 + $0xb0] sm:$0x1] 0
      %475 = vst [vmem:[#allocation2 + $0xb4] sm:$0xf] 0
      %476 = vst [vmem:[#allocation2 + $0xb8] sm:$0xf] 0
      %477 = vst [vmem:[#allocation2 + $0xbc] sm:$0x1] 0
      %478 = vst [vmem:[#allocation2 + $0xc0] sm:$0xf] 0
      %479 = vst [vmem:[#allocation2 + $0xc4] sm:$0xf] 0
      %480 = vst [vmem:[#allocation2 + $0xc8] sm:$0x1] 0
      %481 = vst [vmem:[#allocation2 + $0xcc] sm:$0xf] 0
      %482 = vst [vmem:[#allocation2 + $0xd0] sm:$0xf] 0
      %483 = vst [vmem:[#allocation2 + $0xd4] sm:$0x1] 0
      %v500 = vunpack.c.l.b16 %v414
      %v501 = vunpack.c.h.b16 %v414
      %v502 = vunpack.c.l.b16 %v415
      %v503 = vunpack.c.h.b16 %v415
      %v504 = vunpack.c.l.b16 %v416
      %v505 = vunpack.c.h.b16 %v416
      %v506 = vunpack.c.l.b16 %v417
      %v507 = vunpack.c.h.b16 %v417
      %v508 = vunpack.c.l.b16 %v418
      %v509 = vunpack.c.h.b16 %v418
      %v510 = vunpack.c.l.b16 %v419
      %v511 = vunpack.c.h.b16 %v419
      %v512 = vunpack.c.l.b16 %v420
      %v513 = vunpack.c.h.b16 %v420
      %v514 = vunpack.c.l.b16 %v421
      %v515 = vunpack.c.h.b16 %v421
      %v516 = vunpack.c.l.b16 %v422
      %v517 = vunpack.c.h.b16 %v422
      %v518 = vunpack.c.l.b16 %v423
      %v519 = vunpack.c.h.b16 %v423
      %v520 = vunpack.c.l.b16 %v424
      %v521 = vunpack.c.h.b16 %v424
      %v522 = vunpack.c.l.b16 %v425
      %v523 = vunpack.c.h.b16 %v425
      %v524 = vunpack.c.l.b16 %v426
      %v525 = vunpack.c.h.b16 %v426
      %v526 = vunpack.c.l.b16 %v427
      %v527 = vunpack.c.h.b16 %v427
      %v528 = vunpack.c.l.b16 %v428
      %v529 = vunpack.c.h.b16 %v428
      %v530 = vunpack.c.l.b16 %v429
      %v531 = vunpack.c.h.b16 %v429
      %v532 = vpack.c.b16 %v500, %v500
      %v533 = vpack.c.b16 %v501, %v501
      %v534 = vpack.c.b16 %v502, %v502
      %v535 = vpack.c.b16 %v503, %v503
      %v536 = vpack.c.b16 %v504, %v504
      %v537 = vpack.c.b16 %v505, %v505
      %v538 = vpack.c.b16 %v506, %v506
      %v539 = vpack.c.b16 %v507, %v507
      %v540 = vpack.c.b16 %v508, %v508
      %v541 = vpack.c.b16 %v509, %v509
      %v542 = vpack.c.b16 %v510, %v510
      %v543 = vpack.c.b16 %v511, %v511
      %v544 = vpack.c.b16 %v512, %v512
      %v545 = vpack.c.b16 %v513, %v513
      %v546 = vpack.c.b16 %v514, %v514
      %v547 = vpack.c.b16 %v515, %v515
      %v548 = vpack.c.b16 %v516, %v516
      %v549 = vpack.c.b16 %v517, %v517
      %v550 = vpack.c.b16 %v518, %v518
      %v551 = vpack.c.b16 %v519, %v519
      %v552 = vpack.c.b16 %v520, %v520
      %v553 = vpack.c.b16 %v521, %v521
      %v554 = vpack.c.b16 %v522, %v522
      %v555 = vpack.c.b16 %v523, %v523
      %v556 = vpack.c.b16 %v524, %v524
      %v557 = vpack.c.b16 %v525, %v525
      %v558 = vpack.c.b16 %v526, %v526
      %v559 = vpack.c.b16 %v527, %v527
      %v560 = vpack.c.b16 %v528, %v528
      %v561 = vpack.c.b16 %v529, %v529
      %v562 = vpack.c.b16 %v530, %v530
      %v563 = vpack.c.b16 %v531, %v531
      %vm564 = vsmask.f32 256
      %vm565 = vsmask.f32 4368
      %vm566 = vmor %vm564, %vm565
      %v568 = vshrl.u32 %v532, 16
      %v570 = vrot.slane %v568, 7
      %v571 = vshll.u32 %v532, 16
      %v573 = vor.u32 %v570, %v571
      %v574 = vrot.slane %v570, 4
      %v576 = vshrl.u32 %v533, 16
      %v578 = vrot.slane %v576, 7
      %v579 = vshll.u32 %v533, 16
      %v581 = vor.u32 %v578, %v579
      %v582 = vsel %vm566, %v574, %v581
      %v583 = vrot.slane %v578, 4
      %v585 = vshrl.u32 %v534, 16
      %v587 = vrot.slane %v585, 7
      %v588 = vshll.u32 %v534, 16
      %v590 = vor.u32 %v587, %v588
      %v591 = vrot.slane %v587, 4
      %v593 = vshrl.u32 %v535, 16
      %v595 = vrot.slane %v593, 7
      %v596 = vshll.u32 %v535, 16
      %v598 = vor.u32 %v595, %v596
      %v599 = vsel %vm566, %v591, %v598
      %v600 = vrot.slane %v595, 4
      %v602 = vshrl.u32 %v536, 16
      %v604 = vrot.slane %v602, 7
      %v605 = vshll.u32 %v536, 16
      %v607 = vor.u32 %v604, %v605
      %v608 = vrot.slane %v604, 4
      %v610 = vshrl.u32 %v537, 16
      %v612 = vrot.slane %v610, 7
      %v613 = vshll.u32 %v537, 16
      %v615 = vor.u32 %v612, %v613
      %v616 = vsel %vm566, %v608, %v615
      %v617 = vrot.slane %v612, 4
      %v619 = vshrl.u32 %v538, 16
      %v621 = vrot.slane %v619, 7
      %v622 = vshll.u32 %v538, 16
      %v624 = vor.u32 %v621, %v622
      %v625 = vrot.slane %v621, 4
      %v627 = vshrl.u32 %v539, 16
      %v629 = vrot.slane %v627, 7
      %v630 = vshll.u32 %v539, 16
      %v632 = vor.u32 %v629, %v630
      %v633 = vsel %vm566, %v625, %v632
      %v634 = vrot.slane %v629, 4
      %v636 = vshrl.u32 %v540, 16
      %v638 = vrot.slane %v636, 7
      %v639 = vshll.u32 %v540, 16
      %v641 = vor.u32 %v638, %v639
      %v642 = vrot.slane %v638, 4
      %v644 = vshrl.u32 %v541, 16
      %v646 = vrot.slane %v644, 7
      %v647 = vshll.u32 %v541, 16
      %v649 = vor.u32 %v646, %v647
      %v650 = vsel %vm566, %v642, %v649
      %v651 = vrot.slane %v646, 4
      %v653 = vshrl.u32 %v542, 16
      %v655 = vrot.slane %v653, 7
      %v656 = vshll.u32 %v542, 16
      %v658 = vor.u32 %v655, %v656
      %v659 = vrot.slane %v655, 4
      %v661 = vshrl.u32 %v543, 16
      %v663 = vrot.slane %v661, 7
      %v664 = vshll.u32 %v543, 16
      %v666 = vor.u32 %v663, %v664
      %v667 = vsel %vm566, %v659, %v666
      %v668 = vrot.slane %v663, 4
      %v670 = vshrl.u32 %v544, 16
      %v672 = vrot.slane %v670, 7
      %v673 = vshll.u32 %v544, 16
      %v675 = vor.u32 %v672, %v673
      %v676 = vrot.slane %v672, 4
      %v678 = vshrl.u32 %v545, 16
      %v680 = vrot.slane %v678, 7
      %v681 = vshll.u32 %v545, 16
      %v683 = vor.u32 %v680, %v681
      %v684 = vsel %vm566, %v676, %v683
      %v685 = vrot.slane %v680, 4
      %v687 = vshrl.u32 %v546, 16
      %v689 = vrot.slane %v687, 7
      %v690 = vshll.u32 %v546, 16
      %v692 = vor.u32 %v689, %v690
      %v693 = vrot.slane %v689, 4
      %v695 = vshrl.u32 %v547, 16
      %v697 = vrot.slane %v695, 7
      %v698 = vshll.u32 %v547, 16
      %v700 = vor.u32 %v697, %v698
      %v701 = vsel %vm566, %v693, %v700
      %v702 = vrot.slane %v697, 4
      %v704 = vshrl.u32 %v548, 16
      %v706 = vrot.slane %v704, 7
      %v707 = vshll.u32 %v548, 16
      %v709 = vor.u32 %v706, %v707
      %v710 = vrot.slane %v706, 4
      %v712 = vshrl.u32 %v549, 16
      %v714 = vrot.slane %v712, 7
      %v715 = vshll.u32 %v549, 16
      %v717 = vor.u32 %v714, %v715
      %v718 = vsel %vm566, %v710, %v717
      %v719 = vrot.slane %v714, 4
      %v721 = vshrl.u32 %v550, 16
      %v723 = vrot.slane %v721, 7
      %v724 = vshll.u32 %v550, 16
      %v726 = vor.u32 %v723, %v724
      %v727 = vrot.slane %v723, 4
      %v729 = vshrl.u32 %v551, 16
      %v731 = vrot.slane %v729, 7
      %v732 = vshll.u32 %v551, 16
      %v734 = vor.u32 %v731, %v732
      %v735 = vsel %vm566, %v727, %v734
      %v736 = vrot.slane %v731, 4
      %v738 = vshrl.u32 %v552, 16
      %v740 = vrot.slane %v738, 7
      %v741 = vshll.u32 %v552, 16
      %v743 = vor.u32 %v740, %v741
      %v744 = vrot.slane %v740, 4
      %v746 = vshrl.u32 %v553, 16
      %v748 = vrot.slane %v746, 7
      %v749 = vshll.u32 %v553, 16
      %v751 = vor.u32 %v748, %v749
      %v752 = vsel %vm566, %v744, %v751
      %v753 = vrot.slane %v748, 4
      %v755 = vshrl.u32 %v554, 16
      %v757 = vrot.slane %v755, 7
      %v758 = vshll.u32 %v554, 16
      %v760 = vor.u32 %v757, %v758
      %v761 = vrot.slane %v757, 4
      %v763 = vshrl.u32 %v555, 16
      %v765 = vrot.slane %v763, 7
      %v766 = vshll.u32 %v555, 16
      %v768 = vor.u32 %v765, %v766
      %v769 = vsel %vm566, %v761, %v768
      %v770 = vrot.slane %v765, 4
      %v772 = vshrl.u32 %v556, 16
      %v774 = vrot.slane %v772, 7
      %v775 = vshll.u32 %v556, 16
      %v777 = vor.u32 %v774, %v775
      %v778 = vrot.slane %v774, 4
      %v780 = vshrl.u32 %v557, 16
      %v782 = vrot.slane %v780, 7
      %v783 = vshll.u32 %v557, 16
      %v785 = vor.u32 %v782, %v783
      %v786 = vsel %vm566, %v778, %v785
      %v787 = vrot.slane %v782, 4
      %v789 = vshrl.u32 %v558, 16
      %v791 = vrot.slane %v789, 7
      %v792 = vshll.u32 %v558, 16
      %v794 = vor.u32 %v791, %v792
      %v795 = vrot.slane %v791, 4
      %v797 = vshrl.u32 %v559, 16
      %v799 = vrot.slane %v797, 7
      %v800 = vshll.u32 %v559, 16
      %v802 = vor.u32 %v799, %v800
      %v803 = vsel %vm566, %v795, %v802
      %v804 = vrot.slane %v799, 4
      %v806 = vshrl.u32 %v560, 16
      %v808 = vrot.slane %v806, 7
      %v809 = vshll.u32 %v560, 16
      %v811 = vor.u32 %v808, %v809
      %v812 = vrot.slane %v808, 4
      %v814 = vshrl.u32 %v561, 16
      %v816 = vrot.slane %v814, 7
      %v817 = vshll.u32 %v561, 16
      %v819 = vor.u32 %v816, %v817
      %v820 = vsel %vm566, %v812, %v819
      %v821 = vrot.slane %v816, 4
      %v823 = vshrl.u32 %v562, 16
      %v825 = vrot.slane %v823, 7
      %v826 = vshll.u32 %v562, 16
      %v828 = vor.u32 %v825, %v826
      %v829 = vrot.slane %v825, 4
      %v831 = vshrl.u32 %v563, 16
      %v833 = vrot.slane %v831, 7
      %v834 = vshll.u32 %v563, 16
      %v836 = vor.u32 %v833, %v834
      %v837 = vsel %vm566, %v829, %v836
      %v838 = vrot.slane %v833, 4
      %s887 = scalar_lea.vmem [#allocation2], 12
      %vm888 = vcmask 1043456
      %vm889 = vsmask.f32 7938
      %vm890 = vmand %vm888, %vm889
      %v891 = vld [vmem:[%s887] sm:$0xf]
      %v892 = vsel %vm890, %v573, %v891
      %893 = vst [vmem:[%s887] sm:$0xf] %v892
      %894 = vst [vmem:[%s887 + $0x4] sm:$0xf] %v582
      %vm895 = vcmask 1040384
      %vm896 = vmand %vm895, %vm564
      %v897 = vld [vmem:[%s887 + $0x8] sm:$0x1]
      %v898 = vsel %vm896, %v583, %v897
      %899 = vst [vmem:[%s887 + $0x8] sm:$0x1] %v898
      %v900 = vld [vmem:[%s887 + $0xc] sm:$0xf]
      %v901 = vsel %vm890, %v590, %v900
      %902 = vst [vmem:[%s887 + $0xc] sm:$0xf] %v901
      %903 = vst [vmem:[%s887 + $0x10] sm:$0xf] %v599
      %v904 = vld [vmem:[%s887 + $0x14] sm:$0x1]
      %v905 = vsel %vm896, %v600, %v904
      %906 = vst [vmem:[%s887 + $0x14] sm:$0x1] %v905
      %v907 = vld [vmem:[%s887 + $0x18] sm:$0xf]
      %v908 = vsel %vm890, %v607, %v907
      %909 = vst [vmem:[%s887 + $0x18] sm:$0xf] %v908
      %910 = vst [vmem:[%s887 + $0x1c] sm:$0xf] %v616
      %v911 = vld [vmem:[%s887 + $0x20] sm:$0x1]
      %v912 = vsel %vm896, %v617, %v911
      %913 = vst [vmem:[%s887 + $0x20] sm:$0x1] %v912
      %v914 = vld [vmem:[%s887 + $0x24] sm:$0xf]
      %v915 = vsel %vm890, %v624, %v914
      %916 = vst [vmem:[%s887 + $0x24] sm:$0xf] %v915
      %917 = vst [vmem:[%s887 + $0x28] sm:$0xf] %v633
      %v918 = vld [vmem:[%s887 + $0x2c] sm:$0x1]
      %v919 = vsel %vm896, %v634, %v918
      %920 = vst [vmem:[%s887 + $0x2c] sm:$0x1] %v919
      %v921 = vld [vmem:[%s887 + $0x30] sm:$0xf]
      %v922 = vsel %vm890, %v641, %v921
      %923 = vst [vmem:[%s887 + $0x30] sm:$0xf] %v922
      %924 = vst [vmem:[%s887 + $0x34] sm:$0xf] %v650
      %v925 = vld [vmem:[%s887 + $0x38] sm:$0x1]
      %v926 = vsel %vm896, %v651, %v925
      %927 = vst [vmem:[%s887 + $0x38] sm:$0x1] %v926
      %v928 = vld [vmem:[%s887 + $0x3c] sm:$0xf]
      %v929 = vsel %vm890, %v658, %v928
      %930 = vst [vmem:[%s887 + $0x3c] sm:$0xf] %v929
      %931 = vst [vmem:[%s887 + $0x40] sm:$0xf] %v667
      %v932 = vld [vmem:[%s887 + $0x44] sm:$0x1]
      %v933 = vsel %vm896, %v668, %v932
      %934 = vst [vmem:[%s887 + $0x44] sm:$0x1] %v933
      %v935 = vld [vmem:[%s887 + $0x48] sm:$0xf]
      %v936 = vsel %vm890, %v675, %v935
      %937 = vst [vmem:[%s887 + $0x48] sm:$0xf] %v936
      %938 = vst [vmem:[%s887 + $0x4c] sm:$0xf] %v684
      %v939 = vld [vmem:[%s887 + $0x50] sm:$0x1]
      %v940 = vsel %vm896, %v685, %v939
      %941 = vst [vmem:[%s887 + $0x50] sm:$0x1] %v940
      %v942 = vld [vmem:[%s887 + $0x54] sm:$0xf]
      %v943 = vsel %vm890, %v692, %v942
      %944 = vst [vmem:[%s887 + $0x54] sm:$0xf] %v943
      %945 = vst [vmem:[%s887 + $0x58] sm:$0xf] %v701
      %v946 = vld [vmem:[%s887 + $0x5c] sm:$0x1]
      %v947 = vsel %vm896, %v702, %v946
      %948 = vst [vmem:[%s887 + $0x5c] sm:$0x1] %v947
      %v949 = vld [vmem:[%s887 + $0x60] sm:$0xf]
      %v950 = vsel %vm890, %v709, %v949
      %951 = vst [vmem:[%s887 + $0x60] sm:$0xf] %v950
      %952 = vst [vmem:[%s887 + $0x64] sm:$0xf] %v718
      %v953 = vld [vmem:[%s887 + $0x68] sm:$0x1]
      %v954 = vsel %vm896, %v719, %v953
      %955 = vst [vmem:[%s887 + $0x68] sm:$0x1] %v954
      %v956 = vld [vmem:[%s887 + $0x6c] sm:$0xf]
      %v957 = vsel %vm890, %v726, %v956
      %958 = vst [vmem:[%s887 + $0x6c] sm:$0xf] %v957
      %959 = vst [vmem:[%s887 + $0x70] sm:$0xf] %v735
      %v960 = vld [vmem:[%s887 + $0x74] sm:$0x1]
      %v961 = vsel %vm896, %v736, %v960
      %962 = vst [vmem:[%s887 + $0x74] sm:$0x1] %v961
      %v963 = vld [vmem:[%s887 + $0x78] sm:$0xf]
      %v964 = vsel %vm890, %v743, %v963
      %965 = vst [vmem:[%s887 + $0x78] sm:$0xf] %v964
      %966 = vst [vmem:[%s887 + $0x7c] sm:$0xf] %v752
      %v967 = vld [vmem:[%s887 + $0x80] sm:$0x1]
      %v968 = vsel %vm896, %v753, %v967
      %969 = vst [vmem:[%s887 + $0x80] sm:$0x1] %v968
      %v970 = vld [vmem:[%s887 + $0x84] sm:$0xf]
      %v971 = vsel %vm890, %v760, %v970
      %972 = vst [vmem:[%s887 + $0x84] sm:$0xf] %v971
      %973 = vst [vmem:[%s887 + $0x88] sm:$0xf] %v769
      %v974 = vld [vmem:[%s887 + $0x8c] sm:$0x1]
      %v975 = vsel %vm896, %v770, %v974
      %976 = vst [vmem:[%s887 + $0x8c] sm:$0x1] %v975
      %v977 = vld [vmem:[%s887 + $0x90] sm:$0xf]
      %v978 = vsel %vm890, %v777, %v977
      %979 = vst [vmem:[%s887 + $0x90] sm:$0xf] %v978
      %980 = vst [vmem:[%s887 + $0x94] sm:$0xf] %v786
      %v981 = vld [vmem:[%s887 + $0x98] sm:$0x1]
      %v982 = vsel %vm896, %v787, %v981
      %983 = vst [vmem:[%s887 + $0x98] sm:$0x1] %v982
      %v984 = vld [vmem:[%s887 + $0x9c] sm:$0xf]
      %v985 = vsel %vm890, %v794, %v984
      %986 = vst [vmem:[%s887 + $0x9c] sm:$0xf] %v985
      %987 = vst [vmem:[%s887 + $0xa0] sm:$0xf] %v803
      %v988 = vld [vmem:[%s887 + $0xa4] sm:$0x1]
      %v989 = vsel %vm896, %v804, %v988
      %990 = vst [vmem:[%s887 + $0xa4] sm:$0x1] %v989
      %v991 = vld [vmem:[%s887 + $0xa8] sm:$0xf]
      %v992 = vsel %vm890, %v811, %v991
      %993 = vst [vmem:[%s887 + $0xa8] sm:$0xf] %v992
      %994 = vst [vmem:[%s887 + $0xac] sm:$0xf] %v820
      %v995 = vld [vmem:[%s887 + $0xb0] sm:$0x1]
      %v996 = vsel %vm896, %v821, %v995
      %997 = vst [vmem:[%s887 + $0xb0] sm:$0x1] %v996
      %v998 = vld [vmem:[%s887 + $0xb4] sm:$0xf]
      %v999 = vsel %vm890, %v828, %v998
      %1000 = vst [vmem:[%s887 + $0xb4] sm:$0xf] %v999
      %1001 = vst [vmem:[%s887 + $0xb8] sm:$0xf] %v837
      %v1002 = vld [vmem:[%s887 + $0xbc] sm:$0x1]
      %v1003 = vsel %vm896, %v838, %v1002
      %1004 = vst [vmem:[%s887 + $0xbc] sm:$0x1] %v1003
      %v1005 = vld [vmem:[#allocation2] sm:$0xf]
      %v1006 = vld [vmem:[#allocation2 + $0x4] sm:$0xf]
      %v1007 = vld [vmem:[#allocation2 + $0xc] sm:$0xf]
      %v1008 = vld [vmem:[#allocation2 + $0x10] sm:$0xf]
      %v1009 = vld [vmem:[#allocation2 + $0x18] sm:$0xf]
      %v1010 = vld [vmem:[#allocation2 + $0x1c] sm:$0xf]
      %v1011 = vld [vmem:[#allocation2 + $0x24] sm:$0xf]
      %v1012 = vld [vmem:[#allocation2 + $0x28] sm:$0xf]
      %v1013 = vld [vmem:[#allocation2 + $0x30] sm:$0xf]
      %v1014 = vld [vmem:[#allocation2 + $0x34] sm:$0xf]
      %v1015 = vld [vmem:[#allocation2 + $0x3c] sm:$0xf]
      %v1016 = vld [vmem:[#allocation2 + $0x40] sm:$0xf]
      %v1017 = vld [vmem:[#allocation2 + $0x48] sm:$0xf]
      %v1018 = vld [vmem:[#allocation2 + $0x4c] sm:$0xf]
      %v1019 = vld [vmem:[#allocation2 + $0x54] sm:$0xf]
      %v1020 = vld [vmem:[#allocation2 + $0x58] sm:$0xf]
      %v1021 = vld [vmem:[#allocation2 + $0x60] sm:$0xf]
      %v1022 = vld [vmem:[#allocation2 + $0x64] sm:$0xf]
      %v1023 = vld [vmem:[#allocation2 + $0x6c] sm:$0xf]
      %v1024 = vld [vmem:[#allocation2 + $0x70] sm:$0xf]
      %v1025 = vld [vmem:[#allocation2 + $0x78] sm:$0xf]
      %v1026 = vld [vmem:[#allocation2 + $0x7c] sm:$0xf]
      %v1027 = vld [vmem:[#allocation2 + $0x84] sm:$0xf]
      %v1028 = vld [vmem:[#allocation2 + $0x88] sm:$0xf]
      %v1029 = vld [vmem:[#allocation2 + $0x90] sm:$0xf]
      %v1030 = vld [vmem:[#allocation2 + $0x94] sm:$0xf]
      %v1031 = vld [vmem:[#allocation2 + $0x9c] sm:$0xf]
      %v1032 = vld [vmem:[#allocation2 + $0xa0] sm:$0xf]
      %v1033 = vld [vmem:[#allocation2 + $0xa8] sm:$0xf]
      %v1034 = vld [vmem:[#allocation2 + $0xac] sm:$0xf]
      %v1035 = vld [vmem:[#allocation2 + $0xb4] sm:$0xf]
      %v1036 = vld [vmem:[#allocation2 + $0xb8] sm:$0xf]
      %v1037 = vld [vmem:[#allocation2 + $0xc0] sm:$0xf]
      %v1038 = vld [vmem:[#allocation2 + $0xc4] sm:$0xf]
      %v1039 = vld [vmem:[#allocation2 + $0xcc] sm:$0xf]
      %v1040 = vld [vmem:[#allocation2 + $0xd0] sm:$0xf]
      %v1041 = vld [vmem:[#allocation2 + $0x8] sm:$0x1]
      %v1042 = vld [vmem:[#allocation2 + $0x14] sm:$0x1]
      %v1043 = vld [vmem:[#allocation2 + $0x20] sm:$0x1]
      %v1044 = vld [vmem:[#allocation2 + $0x2c] sm:$0x1]
      %v1045 = vld [vmem:[#allocation2 + $0x38] sm:$0x1]
      %v1046 = vld [vmem:[#allocation2 + $0x44] sm:$0x1]
      %v1047 = vld [vmem:[#allocation2 + $0x50] sm:$0x1]
      %v1048 = vld [vmem:[#allocation2 + $0x5c] sm:$0x1]
      %v1049 = vld [vmem:[#allocation2 + $0x68] sm:$0x1]
      %v1050 = vld [vmem:[#allocation2 + $0x74] sm:$0x1]
      %v1051 = vld [vmem:[#allocation2 + $0x80] sm:$0x1]
      %v1052 = vld [vmem:[#allocation2 + $0x8c] sm:$0x1]
      %v1053 = vld [vmem:[#allocation2 + $0x98] sm:$0x1]
      %v1054 = vld [vmem:[#allocation2 + $0xa4] sm:$0x1]
      %v1055 = vld [vmem:[#allocation2 + $0xb0] sm:$0x1]
      %v1056 = vld [vmem:[#allocation2 + $0xbc] sm:$0x1]
      %v1057 = vld [vmem:[#allocation2 + $0xc8] sm:$0x1]
      %v1058 = vld [vmem:[#allocation2 + $0xd4] sm:$0x1]
      %vm1059 = vsmask.f32 3328
      %vm1060 = vsmask.f32 7440
      %vm1061 = vmor %vm1059, %vm1060
      %v1063 = vshrl.u32 %v1005, 16
      %v1065 = vrot.slane %v1063, 4
      %v1066 = vshll.u32 %v1005, 16
      %v1068 = vrot.slane %v1066, 5
      %v1069 = vor.u32 %v1065, %v1068
      %v1070 = vrot.slane %v1069, 4
      %v1072 = vshll.u32 %v1006, 16
      %v1074 = vrot.slane %v1072, 5
      %v1075 = vsel %vm1061, %v1070, %v1074
      %v1076 = vshrl.u32 %v1006, 16
      %v1078 = vrot.slane %v1076, 4
      %v1079 = vor.u32 %v1078, %v1074
      %v1080 = vrot.slane %v1079, 4
      %v1082 = vshll.u32 %v1041, 16
      %v1084 = vrot.slane %v1082, 5
      %v1085 = vsel %vm1061, %v1080, %v1084
      %v1087 = vshrl.u32 %v1007, 16
      %v1089 = vrot.slane %v1087, 4
      %v1090 = vshll.u32 %v1007, 16
      %v1092 = vrot.slane %v1090, 5
      %v1093 = vor.u32 %v1089, %v1092
      %v1094 = vrot.slane %v1093, 4
      %v1096 = vshll.u32 %v1008, 16
      %v1098 = vrot.slane %v1096, 5
      %v1099 = vsel %vm1061, %v1094, %v1098
      %v1100 = vshrl.u32 %v1008, 16
      %v1102 = vrot.slane %v1100, 4
      %v1103 = vor.u32 %v1102, %v1098
      %v1104 = vrot.slane %v1103, 4
      %v1106 = vshll.u32 %v1042, 16
      %v1108 = vrot.slane %v1106, 5
      %v1109 = vsel %vm1061, %v1104, %v1108
      %v1111 = vshrl.u32 %v1009, 16
      %v1113 = vrot.slane %v1111, 4
      %v1114 = vshll.u32 %v1009, 16
      %v1116 = vrot.slane %v1114, 5
      %v1117 = vor.u32 %v1113, %v1116
      %v1118 = vrot.slane %v1117, 4
      %v1120 = vshll.u32 %v1010, 16
      %v1122 = vrot.slane %v1120, 5
      %v1123 = vsel %vm1061, %v1118, %v1122
      %v1124 = vshrl.u32 %v1010, 16
      %v1126 = vrot.slane %v1124, 4
      %v1127 = vor.u32 %v1126, %v1122
      %v1128 = vrot.slane %v1127, 4
      %v1130 = vshll.u32 %v1043, 16
      %v1132 = vrot.slane %v1130, 5
      %v1133 = vsel %vm1061, %v1128, %v1132
      %v1135 = vshrl.u32 %v1011, 16
      %v1137 = vrot.slane %v1135, 4
      %v1138 = vshll.u32 %v1011, 16
      %v1140 = vrot.slane %v1138, 5
      %v1141 = vor.u32 %v1137, %v1140
      %v1142 = vrot.slane %v1141, 4
      %v1144 = vshll.u32 %v1012, 16
      %v1146 = vrot.slane %v1144, 5
      %v1147 = vsel %vm1061, %v1142, %v1146
      %v1148 = vshrl.u32 %v1012, 16
      %v1150 = vrot.slane %v1148, 4
      %v1151 = vor.u32 %v1150, %v1146
      %v1152 = vrot.slane %v1151, 4
      %v1154 = vshll.u32 %v1044, 16
      %v1156 = vrot.slane %v1154, 5
      %v1157 = vsel %vm1061, %v1152, %v1156
      %v1159 = vshrl.u32 %v1013, 16
      %v1161 = vrot.slane %v1159, 4
      %v1162 = vshll.u32 %v1013, 16
      %v1164 = vrot.slane %v1162, 5
      %v1165 = vor.u32 %v1161, %v1164
      %v1166 = vrot.slane %v1165, 4
      %v1168 = vshll.u32 %v1014, 16
      %v1170 = vrot.slane %v1168, 5
      %v1171 = vsel %vm1061, %v1166, %v1170
      %v1172 = vshrl.u32 %v1014, 16
      %v1174 = vrot.slane %v1172, 4
      %v1175 = vor.u32 %v1174, %v1170
      %v1176 = vrot.slane %v1175, 4
      %v1178 = vshll.u32 %v1045, 16
      %v1180 = vrot.slane %v1178, 5
      %v1181 = vsel %vm1061, %v1176, %v1180
      %v1183 = vshrl.u32 %v1015, 16
      %v1185 = vrot.slane %v1183, 4
      %v1186 = vshll.u32 %v1015, 16
      %v1188 = vrot.slane %v1186, 5
      %v1189 = vor.u32 %v1185, %v1188
      %v1190 = vrot.slane %v1189, 4
      %v1192 = vshll.u32 %v1016, 16
      %v1194 = vrot.slane %v1192, 5
      %v1195 = vsel %vm1061, %v1190, %v1194
      %v1196 = vshrl.u32 %v1016, 16
      %v1198 = vrot.slane %v1196, 4
      %v1199 = vor.u32 %v1198, %v1194
      %v1200 = vrot.slane %v1199, 4
      %v1202 = vshll.u32 %v1046, 16
      %v1204 = vrot.slane %v1202, 5
      %v1205 = vsel %vm1061, %v1200, %v1204
      %v1207 = vshrl.u32 %v1017, 16
      %v1209 = vrot.slane %v1207, 4
      %v1210 = vshll.u32 %v1017, 16
      %v1212 = vrot.slane %v1210, 5
      %v1213 = vor.u32 %v1209, %v1212
      %v1214 = vrot.slane %v1213, 4
      %v1216 = vshll.u32 %v1018, 16
      %v1218 = vrot.slane %v1216, 5
      %v1219 = vsel %vm1061, %v1214, %v1218
      %v1220 = vshrl.u32 %v1018, 16
      %v1222 = vrot.slane %v1220, 4
      %v1223 = vor.u32 %v1222, %v1218
      %v1224 = vrot.slane %v1223, 4
      %v1226 = vshll.u32 %v1047, 16
      %v1228 = vrot.slane %v1226, 5
      %v1229 = vsel %vm1061, %v1224, %v1228
      %v1231 = vshrl.u32 %v1019, 16
      %v1233 = vrot.slane %v1231, 4
      %v1234 = vshll.u32 %v1019, 16
      %v1236 = vrot.slane %v1234, 5
      %v1237 = vor.u32 %v1233, %v1236
      %v1238 = vrot.slane %v1237, 4
      %v1240 = vshll.u32 %v1020, 16
      %v1242 = vrot.slane %v1240, 5
      %v1243 = vsel %vm1061, %v1238, %v1242
      %v1244 = vshrl.u32 %v1020, 16
      %v1246 = vrot.slane %v1244, 4
      %v1247 = vor.u32 %v1246, %v1242
      %v1248 = vrot.slane %v1247, 4
      %v1250 = vshll.u32 %v1048, 16
      %v1252 = vrot.slane %v1250, 5
      %v1253 = vsel %vm1061, %v1248, %v1252
      %v1255 = vshrl.u32 %v1021, 16
      %v1257 = vrot.slane %v1255, 4
      %v1258 = vshll.u32 %v1021, 16
      %v1260 = vrot.slane %v1258, 5
      %v1261 = vor.u32 %v1257, %v1260
      %v1262 = vrot.slane %v1261, 4
      %v1264 = vshll.u32 %v1022, 16
      %v1266 = vrot.slane %v1264, 5
      %v1267 = vsel %vm1061, %v1262, %v1266
      %v1268 = vshrl.u32 %v1022, 16
      %v1270 = vrot.slane %v1268, 4
      %v1271 = vor.u32 %v1270, %v1266
      %v1272 = vrot.slane %v1271, 4
      %v1274 = vshll.u32 %v1049, 16
      %v1276 = vrot.slane %v1274, 5
      %v1277 = vsel %vm1061, %v1272, %v1276
      %v1279 = vshrl.u32 %v1023, 16
      %v1281 = vrot.slane %v1279, 4
      %v1282 = vshll.u32 %v1023, 16
      %v1284 = vrot.slane %v1282, 5
      %v1285 = vor.u32 %v1281, %v1284
      %v1286 = vrot.slane %v1285, 4
      %v1288 = vshll.u32 %v1024, 16
      %v1290 = vrot.slane %v1288, 5
      %v1291 = vsel %vm1061, %v1286, %v1290
      %v1292 = vshrl.u32 %v1024, 16
      %v1294 = vrot.slane %v1292, 4
      %v1295 = vor.u32 %v1294, %v1290
      %v1296 = vrot.slane %v1295, 4
      %v1298 = vshll.u32 %v1050, 16
      %v1300 = vrot.slane %v1298, 5
      %v1301 = vsel %vm1061, %v1296, %v1300
      %v1303 = vshrl.u32 %v1025, 16
      %v1305 = vrot.slane %v1303, 4
      %v1306 = vshll.u32 %v1025, 16
      %v1308 = vrot.slane %v1306, 5
      %v1309 = vor.u32 %v1305, %v1308
      %v1310 = vrot.slane %v1309, 4
      %v1312 = vshll.u32 %v1026, 16
      %v1314 = vrot.slane %v1312, 5
      %v1315 = vsel %vm1061, %v1310, %v1314
      %v1316 = vshrl.u32 %v1026, 16
      %v1318 = vrot.slane %v1316, 4
      %v1319 = vor.u32 %v1318, %v1314
      %v1320 = vrot.slane %v1319, 4
      %v1322 = vshll.u32 %v1051, 16
      %v1324 = vrot.slane %v1322, 5
      %v1325 = vsel %vm1061, %v1320, %v1324
      %v1327 = vshrl.u32 %v1027, 16
      %v1329 = vrot.slane %v1327, 4
      %v1330 = vshll.u32 %v1027, 16
      %v1332 = vrot.slane %v1330, 5
      %v1333 = vor.u32 %v1329, %v1332
      %v1334 = vrot.slane %v1333, 4
      %v1336 = vshll.u32 %v1028, 16
      %v1338 = vrot.slane %v1336, 5
      %v1339 = vsel %vm1061, %v1334, %v1338
      %v1340 = vshrl.u32 %v1028, 16
      %v1342 = vrot.slane %v1340, 4
      %v1343 = vor.u32 %v1342, %v1338
      %v1344 = vrot.slane %v1343, 4
      %v1346 = vshll.u32 %v1052, 16
      %v1348 = vrot.slane %v1346, 5
      %v1349 = vsel %vm1061, %v1344, %v1348
      %v1351 = vshrl.u32 %v1029, 16
      %v1353 = vrot.slane %v1351, 4
      %v1354 = vshll.u32 %v1029, 16
      %v1356 = vrot.slane %v1354, 5
      %v1357 = vor.u32 %v1353, %v1356
      %v1358 = vrot.slane %v1357, 4
      %v1360 = vshll.u32 %v1030, 16
      %v1362 = vrot.slane %v1360, 5
      %v1363 = vsel %vm1061, %v1358, %v1362
      %v1364 = vshrl.u32 %v1030, 16
      %v1366 = vrot.slane %v1364, 4
      %v1367 = vor.u32 %v1366, %v1362
      %v1368 = vrot.slane %v1367, 4
      %v1370 = vshll.u32 %v1053, 16
      %v1372 = vrot.slane %v1370, 5
      %v1373 = vsel %vm1061, %v1368, %v1372
      %v1375 = vshrl.u32 %v1031, 16
      %v1377 = vrot.slane %v1375, 4
      %v1378 = vshll.u32 %v1031, 16
      %v1380 = vrot.slane %v1378, 5
      %v1381 = vor.u32 %v1377, %v1380
      %v1382 = vrot.slane %v1381, 4
      %v1384 = vshll.u32 %v1032, 16
      %v1386 = vrot.slane %v1384, 5
      %v1387 = vsel %vm1061, %v1382, %v1386
      %v1388 = vshrl.u32 %v1032, 16
      %v1390 = vrot.slane %v1388, 4
      %v1391 = vor.u32 %v1390, %v1386
      %v1392 = vrot.slane %v1391, 4
      %v1394 = vshll.u32 %v1054, 16
      %v1396 = vrot.slane %v1394, 5
      %v1397 = vsel %vm1061, %v1392, %v1396
      %v1399 = vshrl.u32 %v1033, 16
      %v1401 = vrot.slane %v1399, 4
      %v1402 = vshll.u32 %v1033, 16
      %v1404 = vrot.slane %v1402, 5
      %v1405 = vor.u32 %v1401, %v1404
      %v1406 = vrot.slane %v1405, 4
      %v1408 = vshll.u32 %v1034, 16
      %v1410 = vrot.slane %v1408, 5
      %v1411 = vsel %vm1061, %v1406, %v1410
      %v1412 = vshrl.u32 %v1034, 16
      %v1414 = vrot.slane %v1412, 4
      %v1415 = vor.u32 %v1414, %v1410
      %v1416 = vrot.slane %v1415, 4
      %v1418 = vshll.u32 %v1055, 16
      %v1420 = vrot.slane %v1418, 5
      %v1421 = vsel %vm1061, %v1416, %v1420
      %v1423 = vshrl.u32 %v1035, 16
      %v1425 = vrot.slane %v1423, 4
      %v1426 = vshll.u32 %v1035, 16
      %v1428 = vrot.slane %v1426, 5
      %v1429 = vor.u32 %v1425, %v1428
      %v1430 = vrot.slane %v1429, 4
      %v1432 = vshll.u32 %v1036, 16
      %v1434 = vrot.slane %v1432, 5
      %v1435 = vsel %vm1061, %v1430, %v1434
      %v1436 = vshrl.u32 %v1036, 16
      %v1438 = vrot.slane %v1436, 4
      %v1439 = vor.u32 %v1438, %v1434
      %v1440 = vrot.slane %v1439, 4
      %v1442 = vshll.u32 %v1056, 16
      %v1444 = vrot.slane %v1442, 5
      %v1445 = vsel %vm1061, %v1440, %v1444
      %v1447 = vshrl.u32 %v1037, 16
      %v1449 = vrot.slane %v1447, 4
      %v1450 = vshll.u32 %v1037, 16
      %v1452 = vrot.slane %v1450, 5
      %v1453 = vor.u32 %v1449, %v1452
      %v1454 = vrot.slane %v1453, 4
      %v1456 = vshll.u32 %v1038, 16
      %v1458 = vrot.slane %v1456, 5
      %v1459 = vsel %vm1061, %v1454, %v1458
      %v1460 = vshrl.u32 %v1038, 16
      %v1462 = vrot.slane %v1460, 4
      %v1463 = vor.u32 %v1462, %v1458
      %v1464 = vrot.slane %v1463, 4
      %v1466 = vshll.u32 %v1057, 16
      %v1468 = vrot.slane %v1466, 5
      %v1469 = vsel %vm1061, %v1464, %v1468
      %v1471 = vshrl.u32 %v1039, 16
      %v1473 = vrot.slane %v1471, 4
      %v1474 = vshll.u32 %v1039, 16
      %v1476 = vrot.slane %v1474, 5
      %v1477 = vor.u32 %v1473, %v1476
      %v1478 = vrot.slane %v1477, 4
      %v1480 = vshll.u32 %v1040, 16
      %v1482 = vrot.slane %v1480, 5
      %v1483 = vsel %vm1061, %v1478, %v1482
      %v1484 = vshrl.u32 %v1040, 16
      %v1486 = vrot.slane %v1484, 4
      %v1487 = vor.u32 %v1486, %v1482
      %v1488 = vrot.slane %v1487, 4
      %v1490 = vshll.u32 %v1058, 16
      %v1492 = vrot.slane %v1490, 5
      %v1493 = vsel %vm1061, %v1488, %v1492
      %v1494 = vld [vmem:[#allocation2] sm:$0xe]
      %v1495 = vld [vmem:[#allocation2 + $0xc] sm:$0xe]
      %v1496 = vld [vmem:[#allocation2 + $0x18] sm:$0xe]
      %v1497 = vld [vmem:[#allocation2 + $0x24] sm:$0xe]
      %v1498 = vld [vmem:[#allocation2 + $0x30] sm:$0xe]
      %v1499 = vld [vmem:[#allocation2 + $0x3c] sm:$0xe]
      %v1500 = vld [vmem:[#allocation2 + $0x48] sm:$0xe]
      %v1501 = vld [vmem:[#allocation2 + $0x54] sm:$0xe]
      %v1502 = vld [vmem:[#allocation2 + $0x60] sm:$0xe]
      %v1503 = vld [vmem:[#allocation2 + $0x6c] sm:$0xe]
      %v1504 = vld [vmem:[#allocation2 + $0x78] sm:$0xe]
      %v1505 = vld [vmem:[#allocation2 + $0x84] sm:$0xe]
      %v1506 = vld [vmem:[#allocation2 + $0x90] sm:$0xe]
      %v1507 = vld [vmem:[#allocation2 + $0x9c] sm:$0xe]
      %v1508 = vld [vmem:[#allocation2 + $0xa8] sm:$0xe]
      %v1509 = vld [vmem:[#allocation2 + $0xb4] sm:$0xe]
      %v1510 = vld [vmem:[#allocation2 + $0xc0] sm:$0xe]
      %v1511 = vld [vmem:[#allocation2 + $0xcc] sm:$0xe]
      %vm1560 = vcmask 1042432
      %vm1561 = vcmask 1046532
      %vm1562 = vmor %vm1560, %vm1561
      %v1563 = vrot.slane %v1494, 5
      %v1564 = vrot.slane %v1563, 4
      %v1565 = vrot.slane %v1006, 5
      %v1566 = vsel %vm1562, %v1564, %v1565
      %v1567 = vrot.slane %v1565, 4
      %v1568 = vrot.slane %v1041, 5
      %v1569 = vsel %vm1562, %v1567, %v1568
      %v1570 = vrot.slane %v1495, 5
      %v1571 = vrot.slane %v1570, 4
      %v1572 = vrot.slane %v1008, 5
      %v1573 = vsel %vm1562, %v1571, %v1572
      %v1574 = vrot.slane %v1572, 4
      %v1575 = vrot.slane %v1042, 5
      %v1576 = vsel %vm1562, %v1574, %v1575
      %v1577 = vrot.slane %v1496, 5
      %v1578 = vrot.slane %v1577, 4
      %v1579 = vrot.slane %v1010, 5
      %v1580 = vsel %vm1562, %v1578, %v1579
      %v1581 = vrot.slane %v1579, 4
      %v1582 = vrot.slane %v1043, 5
      %v1583 = vsel %vm1562, %v1581, %v1582
      %v1584 = vrot.slane %v1497, 5
      %v1585 = vrot.slane %v1584, 4
      %v1586 = vrot.slane %v1012, 5
      %v1587 = vsel %vm1562, %v1585, %v1586
      %v1588 = vrot.slane %v1586, 4
      %v1589 = vrot.slane %v1044, 5
      %v1590 = vsel %vm1562, %v1588, %v1589
      %v1591 = vrot.slane %v1498, 5
      %v1592 = vrot.slane %v1591, 4
      %v1593 = vrot.slane %v1014, 5
      %v1594 = vsel %vm1562, %v1592, %v1593
      %v1595 = vrot.slane %v1593, 4
      %v1596 = vrot.slane %v1045, 5
      %v1597 = vsel %vm1562, %v1595, %v1596
      %v1598 = vrot.slane %v1499, 5
      %v1599 = vrot.slane %v1598, 4
      %v1600 = vrot.slane %v1016, 5
      %v1601 = vsel %vm1562, %v1599, %v1600
      %v1602 = vrot.slane %v1600, 4
      %v1603 = vrot.slane %v1046, 5
      %v1604 = vsel %vm1562, %v1602, %v1603
      %v1605 = vrot.slane %v1500, 5
      %v1606 = vrot.slane %v1605, 4
      %v1607 = vrot.slane %v1018, 5
      %v1608 = vsel %vm1562, %v1606, %v1607
      %v1609 = vrot.slane %v1607, 4
      %v1610 = vrot.slane %v1047, 5
      %v1611 = vsel %vm1562, %v1609, %v1610
      %v1612 = vrot.slane %v1501, 5
      %v1613 = vrot.slane %v1612, 4
      %v1614 = vrot.slane %v1020, 5
      %v1615 = vsel %vm1562, %v1613, %v1614
      %v1616 = vrot.slane %v1614, 4
      %v1617 = vrot.slane %v1048, 5
      %v1618 = vsel %vm1562, %v1616, %v1617
      %v1619 = vrot.slane %v1502, 5
      %v1620 = vrot.slane %v1619, 4
      %v1621 = vrot.slane %v1022, 5
      %v1622 = vsel %vm1562, %v1620, %v1621
      %v1623 = vrot.slane %v1621, 4
      %v1624 = vrot.slane %v1049, 5
      %v1625 = vsel %vm1562, %v1623, %v1624
      %v1626 = vrot.slane %v1503, 5
      %v1627 = vrot.slane %v1626, 4
      %v1628 = vrot.slane %v1024, 5
      %v1629 = vsel %vm1562, %v1627, %v1628
      %v1630 = vrot.slane %v1628, 4
      %v1631 = vrot.slane %v1050, 5
      %v1632 = vsel %vm1562, %v1630, %v1631
      %v1633 = vrot.slane %v1504, 5
      %v1634 = vrot.slane %v1633, 4
      %v1635 = vrot.slane %v1026, 5
      %v1636 = vsel %vm1562, %v1634, %v1635
      %v1637 = vrot.slane %v1635, 4
      %v1638 = vrot.slane %v1051, 5
      %v1639 = vsel %vm1562, %v1637, %v1638
      %v1640 = vrot.slane %v1505, 5
      %v1641 = vrot.slane %v1640, 4
      %v1642 = vrot.slane %v1028, 5
      %v1643 = vsel %vm1562, %v1641, %v1642
      %v1644 = vrot.slane %v1642, 4
      %v1645 = vrot.slane %v1052, 5
      %v1646 = vsel %vm1562, %v1644, %v1645
      %v1647 = vrot.slane %v1506, 5
      %v1648 = vrot.slane %v1647, 4
      %v1649 = vrot.slane %v1030, 5
      %v1650 = vsel %vm1562, %v1648, %v1649
      %v1651 = vrot.slane %v1649, 4
      %v1652 = vrot.slane %v1053, 5
      %v1653 = vsel %vm1562, %v1651, %v1652
      %v1654 = vrot.slane %v1507, 5
      %v1655 = vrot.slane %v1654, 4
      %v1656 = vrot.slane %v1032, 5
      %v1657 = vsel %vm1562, %v1655, %v1656
      %v1658 = vrot.slane %v1656, 4
      %v1659 = vrot.slane %v1054, 5
      %v1660 = vsel %vm1562, %v1658, %v1659
      %v1661 = vrot.slane %v1508, 5
      %v1662 = vrot.slane %v1661, 4
      %v1663 = vrot.slane %v1034, 5
      %v1664 = vsel %vm1562, %v1662, %v1663
      %v1665 = vrot.slane %v1663, 4
      %v1666 = vrot.slane %v1055, 5
      %v1667 = vsel %vm1562, %v1665, %v1666
      %v1668 = vrot.slane %v1509, 5
      %v1669 = vrot.slane %v1668, 4
      %v1670 = vrot.slane %v1036, 5
      %v1671 = vsel %vm1562, %v1669, %v1670
      %v1672 = vrot.slane %v1670, 4
      %v1673 = vrot.slane %v1056, 5
      %v1674 = vsel %vm1562, %v1672, %v1673
      %v1678 = vrot.slane %v1510, 5
      %v1679 = vrot.slane %v1678, 4
      %v1680 = vrot.slane %v1038, 5
      %v1681 = vsel %vm1562, %v1679, %v1680
      %v1682 = vrot.slane %v1680, 4
      %v1683 = vrot.slane %v1057, 5
      %v1684 = vsel %vm1562, %v1682, %v1683
      %v1688 = vrot.slane %v1511, 5
      %v1689 = vrot.slane %v1688, 4
      %v1690 = vrot.slane %v1040, 5
      %v1691 = vsel %vm1562, %v1689, %v1690
      %v1692 = vrot.slane %v1690, 4
      %v1693 = vrot.slane %v1058, 5
      %v1694 = vsel %vm1562, %v1692, %v1693
      %v1711 = vunpack.c.l.b16 %v1005
      %v1712 = vunpack.c.l.b16 %v1006
      %v1713 = vunpack.c.l.b16 %v1007
      %v1714 = vunpack.c.l.b16 %v1008
      %v1715 = vunpack.c.l.b16 %v1009
      %v1716 = vunpack.c.l.b16 %v1010
      %v1717 = vunpack.c.l.b16 %v1011
      %v1718 = vunpack.c.l.b16 %v1012
      %v1719 = vunpack.c.l.b16 %v1013
      %v1720 = vunpack.c.l.b16 %v1014
      %v1721 = vunpack.c.l.b16 %v1015
      %v1722 = vunpack.c.l.b16 %v1016
      %v1723 = vunpack.c.l.b16 %v1017
      %v1724 = vunpack.c.l.b16 %v1018
      %v1725 = vunpack.c.l.b16 %v1019
      %v1726 = vunpack.c.l.b16 %v1020
      %v1727 = vunpack.c.l.b16 %v1021
      %v1728 = vunpack.c.l.b16 %v1022
      %v1729 = vunpack.c.l.b16 %v1023
      %v1730 = vunpack.c.l.b16 %v1024
      %v1731 = vunpack.c.l.b16 %v1025
      %v1732 = vunpack.c.l.b16 %v1026
      %v1733 = vunpack.c.l.b16 %v1027
      %v1734 = vunpack.c.l.b16 %v1028
      %v1735 = vunpack.c.l.b16 %v1029
      %v1736 = vunpack.c.l.b16 %v1030
      %v1737 = vunpack.c.l.b16 %v1031
      %v1738 = vunpack.c.l.b16 %v1032
      %v1739 = vunpack.c.l.b16 %v1033
      %v1740 = vunpack.c.l.b16 %v1034
      %v1741 = vunpack.c.l.b16 %v1035
      %v1742 = vunpack.c.l.b16 %v1036
      %v1743 = vpack.c.b16 %v1712, %v1711
      %v1744 = vpack.c.b16 %v1714, %v1713
      %v1745 = vpack.c.b16 %v1716, %v1715
      %v1746 = vpack.c.b16 %v1718, %v1717
      %v1747 = vpack.c.b16 %v1720, %v1719
      %v1748 = vpack.c.b16 %v1722, %v1721
      %v1749 = vpack.c.b16 %v1724, %v1723
      %v1750 = vpack.c.b16 %v1726, %v1725
      %v1751 = vpack.c.b16 %v1728, %v1727
      %v1752 = vpack.c.b16 %v1730, %v1729
      %v1753 = vpack.c.b16 %v1732, %v1731
      %v1754 = vpack.c.b16 %v1734, %v1733
      %v1755 = vpack.c.b16 %v1736, %v1735
      %v1756 = vpack.c.b16 %v1738, %v1737
      %v1757 = vpack.c.b16 %v1740, %v1739
      %v1758 = vpack.c.b16 %v1742, %v1741
      %v1776 = vunpack.c.l.b16 %v1037
      %v1777 = vunpack.c.l.b16 %v1038
      %v1778 = vpack.c.b16 %v1777, %v1776
      %v1781 = vunpack.c.l.b16 %v1039
      %v1782 = vunpack.c.l.b16 %v1040
      %v1783 = vpack.c.b16 %v1782, %v1781
      %v1785 = vunpack.c.l.b16 %v1075
      %v1786 = vunpack.c.l.b16 %v1085
      %v1787 = vunpack.c.l.b16 %v1099
      %v1788 = vunpack.c.l.b16 %v1109
      %v1789 = vunpack.c.l.b16 %v1123
      %v1790 = vunpack.c.l.b16 %v1133
      %v1791 = vunpack.c.l.b16 %v1147
      %v1792 = vunpack.c.l.b16 %v1157
      %v1793 = vunpack.c.l.b16 %v1171
      %v1794 = vunpack.c.l.b16 %v1181
      %v1795 = vunpack.c.l.b16 %v1195
      %v1796 = vunpack.c.l.b16 %v1205
      %v1797 = vunpack.c.l.b16 %v1219
      %v1798 = vunpack.c.l.b16 %v1229
      %v1799 = vunpack.c.l.b16 %v1243
      %v1800 = vunpack.c.l.b16 %v1253
      %v1801 = vunpack.c.l.b16 %v1267
      %v1802 = vunpack.c.l.b16 %v1277
      %v1803 = vunpack.c.l.b16 %v1291
      %v1804 = vunpack.c.l.b16 %v1301
      %v1805 = vunpack.c.l.b16 %v1315
      %v1806 = vunpack.c.l.b16 %v1325
      %v1807 = vunpack.c.l.b16 %v1339
      %v1808 = vunpack.c.l.b16 %v1349
      %v1809 = vunpack.c.l.b16 %v1363
      %v1810 = vunpack.c.l.b16 %v1373
      %v1811 = vunpack.c.l.b16 %v1387
      %v1812 = vunpack.c.l.b16 %v1397
      %v1813 = vunpack.c.l.b16 %v1411
      %v1814 = vunpack.c.l.b16 %v1421
      %v1815 = vunpack.c.l.b16 %v1435
      %v1816 = vunpack.c.l.b16 %v1445
      %v1817 = vpack.c.b16 %v1786, %v1785
      %v1818 = vpack.c.b16 %v1788, %v1787
      %v1819 = vpack.c.b16 %v1790, %v1789
      %v1820 = vpack.c.b16 %v1792, %v1791
      %v1821 = vpack.c.b16 %v1794, %v1793
      %v1822 = vpack.c.b16 %v1796, %v1795
      %v1823 = vpack.c.b16 %v1798, %v1797
      %v1824 = vpack.c.b16 %v1800, %v1799
      %v1825 = vpack.c.b16 %v1802, %v1801
      %v1826 = vpack.c.b16 %v1804, %v1803
      %v1827 = vpack.c.b16 %v1806, %v1805
      %v1828 = vpack.c.b16 %v1808, %v1807
      %v1829 = vpack.c.b16 %v1810, %v1809
      %v1830 = vpack.c.b16 %v1812, %v1811
      %v1831 = vpack.c.b16 %v1814, %v1813
      %v1832 = vpack.c.b16 %v1816, %v1815
      %v1849 = vunpack.c.l.b16 %v1459
      %v1850 = vunpack.c.l.b16 %v1469
      %v1851 = vpack.c.b16 %v1850, %v1849
      %v1853 = vunpack.c.l.b16 %v1483
      %v1854 = vunpack.c.l.b16 %v1493
      %v1855 = vpack.c.b16 %v1854, %v1853
      %v1857 = vunpack.c.l.b16 %v1566
      %v1858 = vunpack.c.l.b16 %v1569
      %v1859 = vunpack.c.l.b16 %v1573
      %v1860 = vunpack.c.l.b16 %v1576
      %v1861 = vunpack.c.l.b16 %v1580
      %v1862 = vunpack.c.l.b16 %v1583
      %v1863 = vunpack.c.l.b16 %v1587
      %v1864 = vunpack.c.l.b16 %v1590
      %v1865 = vunpack.c.l.b16 %v1594
      %v1866 = vunpack.c.l.b16 %v1597
      %v1867 = vunpack.c.l.b16 %v1601
      %v1868 = vunpack.c.l.b16 %v1604
      %v1869 = vunpack.c.l.b16 %v1608
      %v1870 = vunpack.c.l.b16 %v1611
      %v1871 = vunpack.c.l.b16 %v1615
      %v1872 = vunpack.c.l.b16 %v1618
      %v1873 = vunpack.c.l.b16 %v1622
      %v1874 = vunpack.c.l.b16 %v1625
      %v1875 = vunpack.c.l.b16 %v1629
      %v1876 = vunpack.c.l.b16 %v1632
      %v1877 = vunpack.c.l.b16 %v1636
      %v1878 = vunpack.c.l.b16 %v1639
      %v1879 = vunpack.c.l.b16 %v1643
      %v1880 = vunpack.c.l.b16 %v1646
      %v1881 = vunpack.c.l.b16 %v1650
      %v1882 = vunpack.c.l.b16 %v1653
      %v1883 = vunpack.c.l.b16 %v1657
      %v1884 = vunpack.c.l.b16 %v1660
      %v1885 = vunpack.c.l.b16 %v1664
      %v1886 = vunpack.c.l.b16 %v1667
      %v1887 = vunpack.c.l.b16 %v1671
      %v1888 = vunpack.c.l.b16 %v1674
      %v1889 = vpack.c.b16 %v1858, %v1857
      %v1890 = vpack.c.b16 %v1860, %v1859
      %v1891 = vpack.c.b16 %v1862, %v1861
      %v1892 = vpack.c.b16 %v1864, %v1863
      %v1893 = vpack.c.b16 %v1866, %v1865
      %v1894 = vpack.c.b16 %v1868, %v1867
      %v1895 = vpack.c.b16 %v1870, %v1869
      %v1896 = vpack.c.b16 %v1872, %v1871
      %v1897 = vpack.c.b16 %v1874, %v1873
      %v1898 = vpack.c.b16 %v1876, %v1875
      %v1899 = vpack.c.b16 %v1878, %v1877
      %v1900 = vpack.c.b16 %v1880, %v1879
      %v1901 = vpack.c.b16 %v1882, %v1881
      %v1902 = vpack.c.b16 %v1884, %v1883
      %v1903 = vpack.c.b16 %v1886, %v1885
      %v1904 = vpack.c.b16 %v1888, %v1887
      %v1921 = vunpack.c.l.b16 %v1681
      %v1922 = vunpack.c.l.b16 %v1684
      %v1923 = vpack.c.b16 %v1922, %v1921
      %v1925 = vunpack.c.l.b16 %v1691
      %v1926 = vunpack.c.l.b16 %v1694
      %v1927 = vpack.c.b16 %v1926, %v1925
      %v1929 = vld [vmem:[%s3] sm:$0xf]
      %v1930 = vld [vmem:[%s3 + $0x4] sm:$0xf]
      %v1931 = vld [vmem:[%s3 + $0x8] sm:$0xf]
      %v1932 = vld [vmem:[%s3 + $0xc] sm:$0xf]
      %v1933 = vld [vmem:[%s3 + $0x10] sm:$0xf]
      %v1934 = vld [vmem:[%s3 + $0x14] sm:$0xf]
      %v1935 = vld [vmem:[%s3 + $0x18] sm:$0xf]
      %v1936 = vld [vmem:[%s3 + $0x1c] sm:$0xf]
      %v1937 = vld [vmem:[%s3 + $0x20] sm:$0xf]
      %v1938 = vld [vmem:[%s3 + $0x24] sm:$0xf]
      %v1939 = vld [vmem:[%s3 + $0x28] sm:$0xf]
      %v1940 = vld [vmem:[%s3 + $0x2c] sm:$0xf]
      %v1941 = vld [vmem:[%s3 + $0x30] sm:$0xf]
      %v1942 = vld [vmem:[%s3 + $0x34] sm:$0xf]
      %v1943 = vld [vmem:[%s3 + $0x38] sm:$0xf]
      %v1944 = vld [vmem:[%s3 + $0x3c] sm:$0xf]
      %v1945 = vld [vmem:[%s3 + $0x40] sm:$0xf]
      %v1946 = vld [vmem:[%s3 + $0x44] sm:$0xf]
      %v1947 = vld [vmem:[%s3 + $0x48] sm:$0xf]
      %v1948 = vld [vmem:[%s3 + $0x4c] sm:$0xf]
      %v1949 = vld [vmem:[%s3 + $0x50] sm:$0xf]
      %v1950 = vld [vmem:[%s3 + $0x54] sm:$0xf]
      %v1951 = vld [vmem:[%s3 + $0x58] sm:$0xf]
      %v1952 = vld [vmem:[%s3 + $0x5c] sm:$0xf]
      %v1953 = vld [vmem:[%s3 + $0x60] sm:$0xf]
      %v1954 = vld [vmem:[%s3 + $0x64] sm:$0xf]
      %v1955 = vld [vmem:[%s3 + $0x68] sm:$0xf]
      %v1956 = vld [vmem:[%s3 + $0x6c] sm:$0xf]
      %v1957 = vld [vmem:[%s3 + $0x70] sm:$0xf]
      %v1958 = vld [vmem:[%s3 + $0x74] sm:$0xf]
      %v1959 = vld [vmem:[%s3 + $0x78] sm:$0xf]
      %v1960 = vld [vmem:[%s3 + $0x7c] sm:$0xf]
      %v1961 = vld [vmem:[%s3 + $0x80] sm:$0xf]
      %v1962 = vld [vmem:[%s3 + $0x84] sm:$0xf]
      %v1963 = vld [vmem:[%s3 + $0x88] sm:$0xf]
      %v1964 = vld [vmem:[%s3 + $0x8c] sm:$0xf]
      %v1965 = vld [vmem:[%s3 + $0x90] sm:$0xf]
      %v1966 = vld [vmem:[%s3 + $0x94] sm:$0xf]
      %v1967 = vld [vmem:[%s3 + $0x98] sm:$0xf]
      %v1968 = vld [vmem:[%s3 + $0x9c] sm:$0xf]
      %v1969 = vld [vmem:[%s3 + $0xa0] sm:$0xf]
      %v1970 = vld [vmem:[%s3 + $0xa4] sm:$0xf]
      %v1971 = vld [vmem:[%s3 + $0xa8] sm:$0xf]
      %v1972 = vld [vmem:[%s3 + $0xac] sm:$0xf]
      %v1973 = vld [vmem:[%s3 + $0xb0] sm:$0xf]
      %v1974 = vld [vmem:[%s3 + $0xb4] sm:$0xf]
      %v1975 = vld [vmem:[%s3 + $0xb8] sm:$0xf]
      %v1976 = vld [vmem:[%s3 + $0xbc] sm:$0xf]
      %v1977 = vld [vmem:[%s3 + $0xc0] sm:$0xf]
      %v1978 = vld [vmem:[%s3 + $0xc4] sm:$0xf]
      %v1979 = vld [vmem:[%s3 + $0xc8] sm:$0xf]
      %v1980 = vld [vmem:[%s3 + $0xcc] sm:$0xf]
      %v1981 = vld [vmem:[%s3 + $0xd0] sm:$0xf]
      %v1982 = vld [vmem:[%s3 + $0xd4] sm:$0xf]
      %v1983 = vld [vmem:[%s3 + $0xd8] sm:$0xf]
      %v1984 = vld [vmem:[%s3 + $0xdc] sm:$0xf]
      %v1985 = vld [vmem:[%s3 + $0xe0] sm:$0xf]
      %v1986 = vld [vmem:[%s3 + $0xe4] sm:$0xf]
      %v1987 = vld [vmem:[%s3 + $0xe8] sm:$0xf]
      %v1988 = vld [vmem:[%s3 + $0xec] sm:$0xf]
      %v1989 = vld [vmem:[%s3 + $0xf0] sm:$0xf]
      %v1990 = vld [vmem:[%s3 + $0xf4] sm:$0xf]
      %v1991 = vld [vmem:[%s3 + $0xf8] sm:$0xf]
      %v1992 = vld [vmem:[%s3 + $0xfc] sm:$0xf]
      %v1993 = vld [vmem:[%s3 + $0x100] sm:$0xf]
      %v1994 = vld [vmem:[%s3 + $0x104] sm:$0xf]
      %v1995 = vld [vmem:[%s3 + $0x108] sm:$0xf]
      %v1996 = vld [vmem:[%s3 + $0x10c] sm:$0xf]
      %v1997 = vld [vmem:[%s3 + $0x110] sm:$0xf]
      %v1998 = vld [vmem:[%s3 + $0x114] sm:$0xf]
      %v1999 = vld [vmem:[%s3 + $0x118] sm:$0xf]
      %v2000 = vld [vmem:[%s3 + $0x11c] sm:$0xf]
      %v2001 = vld [vmem:[%s3 + $0x120] sm:$0xf]
      %v2002 = vld [vmem:[%s3 + $0x124] sm:$0xf]
      %v2003 = vld [vmem:[%s3 + $0x128] sm:$0xf]
      %v2004 = vld [vmem:[%s3 + $0x12c] sm:$0xf]
      %v2005 = vld [vmem:[%s3 + $0x130] sm:$0xf]
      %v2006 = vld [vmem:[%s3 + $0x134] sm:$0xf]
      %v2007 = vld [vmem:[%s3 + $0x138] sm:$0xf]
      %v2008 = vld [vmem:[%s3 + $0x13c] sm:$0xf]
      %v2009 = vld [vmem:[%s3 + $0x140] sm:$0xf]
      %v2010 = vld [vmem:[%s3 + $0x144] sm:$0xf]
      %v2011 = vld [vmem:[%s3 + $0x148] sm:$0xf]
      %v2012 = vld [vmem:[%s3 + $0x14c] sm:$0xf]
      %v2013 = vld [vmem:[%s3 + $0x150] sm:$0xf]
      %v2014 = vld [vmem:[%s3 + $0x154] sm:$0xf]
      %v2015 = vld [vmem:[%s3 + $0x158] sm:$0xf]
      %v2016 = vld [vmem:[%s3 + $0x15c] sm:$0xf]
      %v2017 = vld [vmem:[%s3 + $0x160] sm:$0xf]
      %v2018 = vld [vmem:[%s3 + $0x164] sm:$0xf]
      %v2019 = vld [vmem:[%s3 + $0x168] sm:$0xf]
      %v2020 = vld [vmem:[%s3 + $0x16c] sm:$0xf]
      %v2021 = vld [vmem:[%s3 + $0x170] sm:$0xf]
      %v2022 = vld [vmem:[%s3 + $0x174] sm:$0xf]
      %v2023 = vld [vmem:[%s3 + $0x178] sm:$0xf]
      %v2024 = vld [vmem:[%s3 + $0x17c] sm:$0xf]
      %v2025 = vld [vmem:[%s3 + $0x180] sm:$0xf]
      %v2026 = vld [vmem:[%s3 + $0x184] sm:$0xf]
      %v2027 = vld [vmem:[%s3 + $0x188] sm:$0xf]
      %v2028 = vld [vmem:[%s3 + $0x18c] sm:$0xf]
      %v2029 = vld [vmem:[%s3 + $0x190] sm:$0xf]
      %v2030 = vld [vmem:[%s3 + $0x194] sm:$0xf]
      %v2031 = vld [vmem:[%s3 + $0x198] sm:$0xf]
      %v2032 = vld [vmem:[%s3 + $0x19c] sm:$0xf]
      %v2033 = vld [vmem:[%s3 + $0x1a0] sm:$0xf]
      %v2034 = vld [vmem:[%s3 + $0x1a4] sm:$0xf]
      %v2035 = vld [vmem:[%s3 + $0x1a8] sm:$0xf]
      %v2036 = vld [vmem:[%s3 + $0x1ac] sm:$0xf]
      %v2037 = vld [vmem:[%s3 + $0x1b0] sm:$0xf]
      %v2038 = vld [vmem:[%s3 + $0x1b4] sm:$0xf]
      %v2039 = vld [vmem:[%s3 + $0x1b8] sm:$0xf]
      %v2040 = vld [vmem:[%s3 + $0x1bc] sm:$0xf]
      %v2041 = vld [vmem:[%s3 + $0x1c0] sm:$0xf]
      %v2042 = vld [vmem:[%s3 + $0x1c4] sm:$0xf]
      %v2043 = vld [vmem:[%s3 + $0x1c8] sm:$0xf]
      %v2044 = vld [vmem:[%s3 + $0x1cc] sm:$0xf]
      %v2045 = vld [vmem:[%s3 + $0x1d0] sm:$0xf]
      %v2046 = vld [vmem:[%s3 + $0x1d4] sm:$0xf]
      %v2047 = vld [vmem:[%s3 + $0x1d8] sm:$0xf]
      %v2048 = vld [vmem:[%s3 + $0x1dc] sm:$0xf]
      %v2049 = vld [vmem:[%s3 + $0x1e0] sm:$0xf]
      %v2050 = vld [vmem:[%s3 + $0x1e4] sm:$0xf]
      %v2051 = vld [vmem:[%s3 + $0x1e8] sm:$0xf]
      %v2052 = vld [vmem:[%s3 + $0x1ec] sm:$0xf]
      %v2053 = vld [vmem:[%s3 + $0x1f0] sm:$0xf]
      %v2054 = vld [vmem:[%s3 + $0x1f4] sm:$0xf]
      %v2055 = vld [vmem:[%s3 + $0x1f8] sm:$0xf]
      %v2056 = vld [vmem:[%s3 + $0x1fc] sm:$0xf]
      %v2057 = vld [vmem:[%s3 + $0x200] sm:$0xf]
      %v2058 = vld [vmem:[%s3 + $0x204] sm:$0xf]
      %v2059 = vld [vmem:[%s3 + $0x208] sm:$0xf]
      %v2060 = vld [vmem:[%s3 + $0x20c] sm:$0xf]
      %v2061 = vld [vmem:[%s3 + $0x210] sm:$0xf]
      %v2062 = vld [vmem:[%s3 + $0x214] sm:$0xf]
      %v2063 = vld [vmem:[%s3 + $0x218] sm:$0xf]
      %v2064 = vld [vmem:[%s3 + $0x21c] sm:$0xf]
      %v2065 = vld [vmem:[%s3 + $0x220] sm:$0xf]
      %v2066 = vld [vmem:[%s3 + $0x224] sm:$0xf]
      %v2067 = vld [vmem:[%s3 + $0x228] sm:$0xf]
      %v2068 = vld [vmem:[%s3 + $0x22c] sm:$0xf]
      %v2069 = vld [vmem:[%s3 + $0x230] sm:$0xf]
      %v2070 = vld [vmem:[%s3 + $0x234] sm:$0xf]
      %v2071 = vld [vmem:[%s3 + $0x238] sm:$0xf]
      %v2072 = vld [vmem:[%s3 + $0x23c] sm:$0xf]
      %v2217 = vunpack.c.l.b16 %v1929
      %v2218 = vunpack.c.l.b16 %v1930
      %v2219 = vunpack.c.l.b16 %v1931
      %v2220 = vunpack.c.l.b16 %v1932
      %v2221 = vunpack.c.l.b16 %v1933
      %v2222 = vunpack.c.l.b16 %v1934
      %v2223 = vunpack.c.l.b16 %v1935
      %v2224 = vunpack.c.l.b16 %v1936
      %v2225 = vunpack.c.l.b16 %v1937
      %v2226 = vunpack.c.l.b16 %v1938
      %v2227 = vunpack.c.l.b16 %v1939
      %v2228 = vunpack.c.l.b16 %v1940
      %v2229 = vunpack.c.l.b16 %v1941
      %v2230 = vunpack.c.l.b16 %v1942
      %v2231 = vunpack.c.l.b16 %v1943
      %v2232 = vunpack.c.l.b16 %v1944
      %v2233 = vunpack.c.l.b16 %v1945
      %v2234 = vunpack.c.l.b16 %v1946
      %v2235 = vunpack.c.l.b16 %v1947
      %v2236 = vunpack.c.l.b16 %v1948
      %v2237 = vunpack.c.l.b16 %v1949
      %v2238 = vunpack.c.l.b16 %v1950
      %v2239 = vunpack.c.l.b16 %v1951
      %v2240 = vunpack.c.l.b16 %v1952
      %v2241 = vunpack.c.l.b16 %v1953
      %v2242 = vunpack.c.l.b16 %v1954
      %v2243 = vunpack.c.l.b16 %v1955
      %v2244 = vunpack.c.l.b16 %v1956
      %v2245 = vunpack.c.l.b16 %v1957
      %v2246 = vunpack.c.l.b16 %v1958
      %v2247 = vunpack.c.l.b16 %v1959
      %v2248 = vunpack.c.l.b16 %v1960
      %v2249 = vunpack.c.l.b16 %v1961
      %v2250 = vunpack.c.l.b16 %v1962
      %v2251 = vunpack.c.l.b16 %v1963
      %v2252 = vunpack.c.l.b16 %v1964
      %v2253 = vunpack.c.l.b16 %v1965
      %v2254 = vunpack.c.l.b16 %v1966
      %v2255 = vunpack.c.l.b16 %v1967
      %v2256 = vunpack.c.l.b16 %v1968
      %v2257 = vunpack.c.l.b16 %v1969
      %v2258 = vunpack.c.l.b16 %v1970
      %v2259 = vunpack.c.l.b16 %v1971
      %v2260 = vunpack.c.l.b16 %v1972
      %v2261 = vunpack.c.l.b16 %v1973
      %v2262 = vunpack.c.l.b16 %v1974
      %v2263 = vunpack.c.l.b16 %v1975
      %v2264 = vunpack.c.l.b16 %v1976
      %v2265 = vunpack.c.l.b16 %v1977
      %v2266 = vunpack.c.l.b16 %v1978
      %v2267 = vunpack.c.l.b16 %v1979
      %v2268 = vunpack.c.l.b16 %v1980
      %v2269 = vunpack.c.l.b16 %v1981
      %v2270 = vunpack.c.l.b16 %v1982
      %v2271 = vunpack.c.l.b16 %v1983
      %v2272 = vunpack.c.l.b16 %v1984
      %v2273 = vunpack.c.l.b16 %v1985
      %v2274 = vunpack.c.l.b16 %v1986
      %v2275 = vunpack.c.l.b16 %v1987
      %v2276 = vunpack.c.l.b16 %v1988
      %v2277 = vunpack.c.l.b16 %v1989
      %v2278 = vunpack.c.l.b16 %v1990
      %v2279 = vunpack.c.l.b16 %v1991
      %v2280 = vunpack.c.l.b16 %v1992
      %v2281 = vunpack.c.l.b16 %v1993
      %v2282 = vunpack.c.l.b16 %v1994
      %v2283 = vunpack.c.l.b16 %v1995
      %v2284 = vunpack.c.l.b16 %v1996
      %v2285 = vunpack.c.l.b16 %v1997
      %v2286 = vunpack.c.l.b16 %v1998
      %v2287 = vunpack.c.l.b16 %v1999
      %v2288 = vunpack.c.l.b16 %v2000
      %v2289 = vunpack.c.l.b16 %v2001
      %v2290 = vunpack.c.l.b16 %v2002
      %v2291 = vunpack.c.l.b16 %v2003
      %v2292 = vunpack.c.l.b16 %v2004
      %v2293 = vunpack.c.l.b16 %v2005
      %v2294 = vunpack.c.l.b16 %v2006
      %v2295 = vunpack.c.l.b16 %v2007
      %v2296 = vunpack.c.l.b16 %v2008
      %v2297 = vunpack.c.l.b16 %v2009
      %v2298 = vunpack.c.l.b16 %v2010
      %v2299 = vunpack.c.l.b16 %v2011
      %v2300 = vunpack.c.l.b16 %v2012
      %v2301 = vunpack.c.l.b16 %v2013
      %v2302 = vunpack.c.l.b16 %v2014
      %v2303 = vunpack.c.l.b16 %v2015
      %v2304 = vunpack.c.l.b16 %v2016
      %v2305 = vunpack.c.l.b16 %v2017
      %v2306 = vunpack.c.l.b16 %v2018
      %v2307 = vunpack.c.l.b16 %v2019
      %v2308 = vunpack.c.l.b16 %v2020
      %v2309 = vunpack.c.l.b16 %v2021
      %v2310 = vunpack.c.l.b16 %v2022
      %v2311 = vunpack.c.l.b16 %v2023
      %v2312 = vunpack.c.l.b16 %v2024
      %v2313 = vunpack.c.l.b16 %v2025
      %v2314 = vunpack.c.l.b16 %v2026
      %v2315 = vunpack.c.l.b16 %v2027
      %v2316 = vunpack.c.l.b16 %v2028
      %v2317 = vunpack.c.l.b16 %v2029
      %v2318 = vunpack.c.l.b16 %v2030
      %v2319 = vunpack.c.l.b16 %v2031
      %v2320 = vunpack.c.l.b16 %v2032
      %v2321 = vunpack.c.l.b16 %v2033
      %v2322 = vunpack.c.l.b16 %v2034
      %v2323 = vunpack.c.l.b16 %v2035
      %v2324 = vunpack.c.l.b16 %v2036
      %v2325 = vunpack.c.l.b16 %v2037
      %v2326 = vunpack.c.l.b16 %v2038
      %v2327 = vunpack.c.l.b16 %v2039
      %v2328 = vunpack.c.l.b16 %v2040
      %v2329 = vunpack.c.l.b16 %v2041
      %v2330 = vunpack.c.l.b16 %v2042
      %v2331 = vunpack.c.l.b16 %v2043
      %v2332 = vunpack.c.l.b16 %v2044
      %v2333 = vunpack.c.l.b16 %v2045
      %v2334 = vunpack.c.l.b16 %v2046
      %v2335 = vunpack.c.l.b16 %v2047
      %v2336 = vunpack.c.l.b16 %v2048
      %v2337 = vunpack.c.l.b16 %v2049
      %v2338 = vunpack.c.l.b16 %v2050
      %v2339 = vunpack.c.l.b16 %v2051
      %v2340 = vunpack.c.l.b16 %v2052
      %v2341 = vunpack.c.l.b16 %v2053
      %v2342 = vunpack.c.l.b16 %v2054
      %v2343 = vunpack.c.l.b16 %v2055
      %v2344 = vunpack.c.l.b16 %v2056
      %v2345 = vunpack.c.l.b16 %v2057
      %v2346 = vunpack.c.l.b16 %v2058
      %v2347 = vunpack.c.l.b16 %v2059
      %v2348 = vunpack.c.l.b16 %v2060
      %v2349 = vunpack.c.l.b16 %v2061
      %v2350 = vunpack.c.l.b16 %v2062
      %v2351 = vunpack.c.l.b16 %v2063
      %v2352 = vunpack.c.l.b16 %v2064
      %v2353 = vunpack.c.l.b16 %v2065
      %v2354 = vunpack.c.l.b16 %v2066
      %v2355 = vunpack.c.l.b16 %v2067
      %v2356 = vunpack.c.l.b16 %v2068
      %v2357 = vunpack.c.l.b16 %v2069
      %v2358 = vunpack.c.l.b16 %v2070
      %v2359 = vunpack.c.l.b16 %v2071
      %v2360 = vunpack.c.l.b16 %v2072
      %v2361 = vpack.c.b16 %v2218, %v2217
      %v2362 = vpack.c.b16 %v2220, %v2219
      %v2363 = vpack.c.b16 %v2222, %v2221
      %v2364 = vpack.c.b16 %v2224, %v2223
      %v2365 = vpack.c.b16 %v2226, %v2225
      %v2366 = vpack.c.b16 %v2228, %v2227
      %v2367 = vpack.c.b16 %v2230, %v2229
      %v2368 = vpack.c.b16 %v2232, %v2231
      %v2369 = vpack.c.b16 %v2234, %v2233
      %v2370 = vpack.c.b16 %v2236, %v2235
      %v2371 = vpack.c.b16 %v2238, %v2237
      %v2372 = vpack.c.b16 %v2240, %v2239
      %v2373 = vpack.c.b16 %v2242, %v2241
      %v2374 = vpack.c.b16 %v2244, %v2243
      %v2375 = vpack.c.b16 %v2246, %v2245
      %v2376 = vpack.c.b16 %v2248, %v2247
      %v2377 = vpack.c.b16 %v2250, %v2249
      %v2378 = vpack.c.b16 %v2252, %v2251
      %v2379 = vpack.c.b16 %v2254, %v2253
      %v2380 = vpack.c.b16 %v2256, %v2255
      %v2381 = vpack.c.b16 %v2258, %v2257
      %v2382 = vpack.c.b16 %v2260, %v2259
      %v2383 = vpack.c.b16 %v2262, %v2261
      %v2384 = vpack.c.b16 %v2264, %v2263
      %v2385 = vpack.c.b16 %v2266, %v2265
      %v2386 = vpack.c.b16 %v2268, %v2267
      %v2387 = vpack.c.b16 %v2270, %v2269
      %v2388 = vpack.c.b16 %v2272, %v2271
      %v2389 = vpack.c.b16 %v2274, %v2273
      %v2390 = vpack.c.b16 %v2276, %v2275
      %v2391 = vpack.c.b16 %v2278, %v2277
      %v2392 = vpack.c.b16 %v2280, %v2279
      %v2393 = vpack.c.b16 %v2282, %v2281
      %v2394 = vpack.c.b16 %v2284, %v2283
      %v2395 = vpack.c.b16 %v2286, %v2285
      %v2396 = vpack.c.b16 %v2288, %v2287
      %v2397 = vpack.c.b16 %v2290, %v2289
      %v2398 = vpack.c.b16 %v2292, %v2291
      %v2399 = vpack.c.b16 %v2294, %v2293
      %v2400 = vpack.c.b16 %v2296, %v2295
      %v2401 = vpack.c.b16 %v2298, %v2297
      %v2402 = vpack.c.b16 %v2300, %v2299
      %v2403 = vpack.c.b16 %v2302, %v2301
      %v2404 = vpack.c.b16 %v2304, %v2303
      %v2405 = vpack.c.b16 %v2306, %v2305
      %v2406 = vpack.c.b16 %v2308, %v2307
      %v2407 = vpack.c.b16 %v2310, %v2309
      %v2408 = vpack.c.b16 %v2312, %v2311
      %v2409 = vpack.c.b16 %v2314, %v2313
      %v2410 = vpack.c.b16 %v2316, %v2315
      %v2411 = vpack.c.b16 %v2318, %v2317
      %v2412 = vpack.c.b16 %v2320, %v2319
      %v2413 = vpack.c.b16 %v2322, %v2321
      %v2414 = vpack.c.b16 %v2324, %v2323
      %v2415 = vpack.c.b16 %v2326, %v2325
      %v2416 = vpack.c.b16 %v2328, %v2327
      %v2417 = vpack.c.b16 %v2330, %v2329
      %v2418 = vpack.c.b16 %v2332, %v2331
      %v2419 = vpack.c.b16 %v2334, %v2333
      %v2420 = vpack.c.b16 %v2336, %v2335
      %v2421 = vpack.c.b16 %v2338, %v2337
      %v2422 = vpack.c.b16 %v2340, %v2339
      %v2423 = vpack.c.b16 %v2342, %v2341
      %v2424 = vpack.c.b16 %v2344, %v2343
      %v2425 = vpack.c.b16 %v2346, %v2345
      %v2426 = vpack.c.b16 %v2348, %v2347
      %v2427 = vpack.c.b16 %v2350, %v2349
      %v2428 = vpack.c.b16 %v2352, %v2351
      %v2429 = vpack.c.b16 %v2354, %v2353
      %v2430 = vpack.c.b16 %v2356, %v2355
      %v2431 = vpack.c.b16 %v2358, %v2357
      %v2432 = vpack.c.b16 %v2360, %v2359
      %2505 = vmatprep.subr.bf16.mxu0 0
      %2506 = vmatpush1.bf16.msra.mxu0 %v2361
      %2507 = vmatprep.subr.bf16.mxu0 0
      %2508 = vmatpush1.bf16.msra.mxu0 %v2362
      %2509 = vmatprep.subr.bf16.mxu0 0
      %2510 = vmatpush1.bf16.msra.mxu0 %v2363
      %2511 = vmatprep.subr.bf16.mxu0 0
      %2512 = vmatpush1.bf16.msra.mxu0 %v2364
      %2513 = vmatprep.subr.bf16.mxu0 0
      %2514 = vmatpush1.bf16.msra.mxu0 %v2365
      %2515 = vmatprep.subr.bf16.mxu0 0
      %2516 = vmatpush1.bf16.msra.mxu0 %v2366
      %2517 = vmatprep.subr.bf16.mxu0 0
      %2518 = vmatpush1.bf16.msra.mxu0 %v2367
      %2519 = vmatprep.subr.bf16.mxu0 0
      %2520 = vmatpush1.bf16.msra.mxu0 %v2368
      %2521 = vmatprep.subr.bf16.mxu0 0
      %2522 = vmatpush1.bf16.msra.mxu0 %v2369
      %2523 = vmatprep.subr.bf16.mxu0 0
      %2524 = vmatpush1.bf16.msra.mxu0 %v2370
      %2525 = vmatprep.subr.bf16.mxu0 0
      %2526 = vmatpush1.bf16.msra.mxu0 %v2371
      %2527 = vmatprep.subr.bf16.mxu0 0
      %2528 = vmatpush1.bf16.msra.mxu0 %v2372
      %2529 = vmatprep.subr.bf16.mxu0 0
      %2530 = vmatpush1.bf16.msra.mxu0 %v2373
      %2531 = vmatprep.subr.bf16.mxu0 0
      %2532 = vmatpush1.bf16.msra.mxu0 %v2374
      %2533 = vmatprep.subr.bf16.mxu0 0
      %2534 = vmatpush1.bf16.msra.mxu0 %v2375
      %2535 = vmatprep.subr.bf16.mxu0 0
      %2536 = vmatpush1.bf16.msra.mxu0 %v2376
      %2537 = vmatprep.mubr.bf16.mxu0 %v1744
      %2538 = vmatmul.mubr.bf16.gmra.mrb[0].mxu0 %v1743
      %v2539 = vpop.f32.mrb[0].mxu0
      %v2540 = vadd.f32 0.0, %v2539
      %v2541 = vpop.f32.mrb[0].mxu0
      %v2542 = vpop.f32.mrb[0].mxu0
      %v2543 = vadd.f32 0.0, %v2542
      %v2544 = vpop.f32.mrb[0].mxu0
      %2545 = vmatprep.mubr.bf16.mxu0 %v1745
      %2546 = vmatmul.mubr.bf16.gmra.mrb[0].mxu0 %v1744
      %v2547 = vpop.f32.mrb[0].mxu0
      %v2548 = vadd.f32 0.0, %v2547
      %v2549 = vpop.f32.mrb[0].mxu0
      %v2550 = vpop.f32.mrb[0].mxu0
      %v2551 = vadd.f32 0.0, %v2550
      %v2552 = vpop.f32.mrb[0].mxu0
      %2553 = vmatprep.mubr.bf16.mxu0 %v1746
      %2554 = vmatmul.mubr.bf16.gmra.mrb[0].mxu0 %v1745
      %v2555 = vpop.f32.mrb[0].mxu0
      %v2556 = vadd.f32 0.0, %v2555
      %v2557 = vpop.f32.mrb[0].mxu0
      %v2558 = vpop.f32.mrb[0].mxu0
      %v2559 = vadd.f32 0.0, %v2558
      %v2560 = vpop.f32.mrb[0].mxu0
      %2561 = vmatprep.mubr.bf16.mxu0 %v1747
      %2562 = vmatmul.mubr.bf16.gmra.mrb[0].mxu0 %v1746
      %v2563 = vpop.f32.mrb[0].mxu0
      %v2564 = vadd.f32 0.0, %v2563
      %v2565 = vpop.f32.mrb[0].mxu0
      %v2566 = vpop.f32.mrb[0].mxu0
      %v2567 = vadd.f32 0.0, %v2566
      %v2568 = vpop.f32.mrb[0].mxu0
      %2569 = vmatprep.mubr.bf16.mxu0 %v1748
      %2570 = vmatmul.mubr.bf16.gmra.mrb[0].mxu0 %v1747
      %v2571 = vpop.f32.mrb[0].mxu0
      %v2572 = vadd.f32 0.0, %v2571
      %v2573 = vpop.f32.mrb[0].mxu0
      %v2574 = vpop.f32.mrb[0].mxu0
      %v2575 = vadd.f32 0.0, %v2574
      %v2576 = vpop.f32.mrb[0].mxu0
      %2577 = vmatprep.mubr.bf16.mxu0 %v1749
      %2578 = vmatmul.mubr.bf16.gmra.mrb[0].mxu0 %v1748
      %v2579 = vpop.f32.mrb[0].mxu0
      %v2580 = vadd.f32 0.0, %v2579
      %v2581 = vpop.f32.mrb[0].mxu0
      %v2582 = vpop.f32.mrb[0].mxu0
      %v2583 = vadd.f32 0.0, %v2582
      %v2584 = vpop.f32.mrb[0].mxu0
      %2585 = vmatprep.mubr.bf16.mxu0 %v1750
      %2586 = vmatmul.mubr.bf16.gmra.mrb[0].mxu0 %v1749
      %v2587 = vpop.f32.mrb[0].mxu0
      %v2588 = vadd.f32 0.0, %v2587
      %v2589 = vpop.f32.mrb[0].mxu0
      %v2590 = vpop.f32.mrb[0].mxu0
      %v2591 = vadd.f32 0.0, %v2590
      %v2592 = vpop.f32.mrb[0].mxu0
      %2593 = vmatprep.mubr.bf16.mxu0 %v1751
      %2594 = vmatmul.mubr.bf16.gmra.mrb[0].mxu0 %v1750
      %v2595 = vpop.f32.mrb[0].mxu0
      %v2596 = vadd.f32 0.0, %v2595
      %v2597 = vpop.f32.mrb[0].mxu0
      %v2598 = vpop.f32.mrb[0].mxu0
      %v2599 = vadd.f32 0.0, %v2598
      %v2600 = vpop.f32.mrb[0].mxu0
      %2601 = vmatprep.mubr.bf16.mxu0 %v1752
      %2602 = vmatmul.mubr.bf16.gmra.mrb[0].mxu0 %v1751
      %v2603 = vpop.f32.mrb[0].mxu0
      %v2604 = vadd.f32 0.0, %v2603
      %v2605 = vpop.f32.mrb[0].mxu0
      %v2606 = vpop.f32.mrb[0].mxu0
      %v2607 = vadd.f32 0.0, %v2606
      %v2608 = vpop.f32.mrb[0].mxu0
      %2609 = vmatprep.mubr.bf16.mxu0 %v1753
      %2610 = vmatmul.mubr.bf16.gmra.mrb[0].mxu0 %v1752
      %v2611 = vpop.f32.mrb[0].mxu0
      %v2612 = vadd.f32 0.0, %v2611
      %v2613 = vpop.f32.mrb[0].mxu0
      %v2614 = vpop.f32.mrb[0].mxu0
      %v2615 = vadd.f32 0.0, %v2614
      %v2616 = vpop.f32.mrb[0].mxu0
      %2617 = vmatprep.mubr.bf16.mxu0 %v1754
      %2618 = vmatmul.mubr.bf16.gmra.mrb[0].mxu0 %v1753
      %v2619 = vpop.f32.mrb[0].mxu0
      %v2620 = vadd.f32 0.0, %v2619
      %v2621 = vpop.f32.mrb[0].mxu0
      %v2622 = vpop.f32.mrb[0].mxu0
      %v2623 = vadd.f32 0.0, %v2622
      %v2624 = vpop.f32.mrb[0].mxu0
      %2625 = vmatprep.mubr.bf16.mxu0 %v1755
      %2626 = vmatmul.mubr.bf16.gmra.mrb[0].mxu0 %v1754
      %v2627 = vpop.f32.mrb[0].mxu0
      %v2628 = vadd.f32 0.0, %v2627
      %v2629 = vpop.f32.mrb[0].mxu0
      %v2630 = vpop.f32.mrb[0].mxu0
      %v2631 = vadd.f32 0.0, %v2630
      %v2632 = vpop.f32.mrb[0].mxu0
      %2633 = vmatprep.mubr.bf16.mxu0 %v1756
      %2634 = vmatmul.mubr.bf16.gmra.mrb[0].mxu0 %v1755
      %v2635 = vpop.f32.mrb[0].mxu0
      %v2636 = vadd.f32 0.0, %v2635
      %v2637 = vpop.f32.mrb[0].mxu0
      %v2638 = vpop.f32.mrb[0].mxu0
      %v2639 = vadd.f32 0.0, %v2638
      %v2640 = vpop.f32.mrb[0].mxu0
      %2641 = vmatprep.mubr.bf16.mxu0 %v1757
      %2642 = vmatmul.mubr.bf16.gmra.mrb[0].mxu0 %v1756
      %v2643 = vpop.f32.mrb[0].mxu0
      %v2644 = vadd.f32 0.0, %v2643
      %v2645 = vpop.f32.mrb[0].mxu0
      %v2646 = vpop.f32.mrb[0].mxu0
      %v2647 = vadd.f32 0.0, %v2646
      %v2648 = vpop.f32.mrb[0].mxu0
      %2649 = vmatprep.mubr.bf16.mxu0 %v1758
      %2650 = vmatmul.mubr.bf16.gmra.mrb[0].mxu0 %v1757
      %v2651 = vpop.f32.mrb[0].mxu0
      %v2652 = vadd.f32 0.0, %v2651
      %v2653 = vpop.f32.mrb[0].mxu0
      %v2654 = vpop.f32.mrb[0].mxu0
      %v2655 = vadd.f32 0.0, %v2654
      %v2656 = vpop.f32.mrb[0].mxu0
      %2657 = vmatprep.mubr.bf16.mxu0 %v1778
      %2658 = vmatmul.mubr.bf16.gmra.mrb[0].mxu0 %v1758
      %v2659 = vpop.f32.mrb[0].mxu0
      %v2660 = vadd.f32 0.0, %v2659
      %v2661 = vpop.f32.mrb[0].mxu0
      %v2662 = vpop.f32.mrb[0].mxu0
      %v2663 = vadd.f32 0.0, %v2662
      %v2664 = vpop.f32.mrb[0].mxu0
      %2665 = vdwg.mxu0
      %2666 = vmatprep.subr.bf16.mxu0 0
      %2667 = vmatpush1.bf16.msra.mxu0 %v2377
      %2668 = vmatprep.subr.bf16.mxu0 0
      %2669 = vmatpush1.bf16.msra.mxu0 %v2378
      %2670 = vmatprep.subr.bf16.mxu0 0
      %2671 = vmatpush1.bf16.msra.mxu0 %v2379
      %2672 = vmatprep.subr.bf16.mxu0 0
      %2673 = vmatpush1.bf16.msra.mxu0 %v2380
      %2674 = vmatprep.subr.bf16.mxu0 0
      %2675 = vmatpush1.bf16.msra.mxu0 %v2381
      %2676 = vmatprep.subr.bf16.mxu0 0
      %2677 = vmatpush1.bf16.msra.mxu0 %v2382
      %2678 = vmatprep.subr.bf16.mxu0 0
      %2679 = vmatpush1.bf16.msra.mxu0 %v2383
      %2680 = vmatprep.subr.bf16.mxu0 0
      %2681 = vmatpush1.bf16.msra.mxu0 %v2384
      %2682 = vmatprep.subr.bf16.mxu0 0
      %2683 = vmatpush1.bf16.msra.mxu0 %v2385
      %2684 = vmatprep.subr.bf16.mxu0 0
      %2685 = vmatpush1.bf16.msra.mxu0 %v2386
      %2686 = vmatprep.subr.bf16.mxu0 0
      %2687 = vmatpush1.bf16.msra.mxu0 %v2387
      %2688 = vmatprep.subr.bf16.mxu0 0
      %2689 = vmatpush1.bf16.msra.mxu0 %v2388
      %2690 = vmatprep.subr.bf16.mxu0 0
      %2691 = vmatpush1.bf16.msra.mxu0 %v2389
      %2692 = vmatprep.subr.bf16.mxu0 0
      %2693 = vmatpush1.bf16.msra.mxu0 %v2390
      %2694 = vmatprep.subr.bf16.mxu0 0
      %2695 = vmatpush1.bf16.msra.mxu0 %v2391
      %2696 = vmatprep.subr.bf16.mxu0 0
      %2697 = vmatpush1.bf16.msra.mxu0 %v2392
      %2698 = vmatprep.mubr.bf16.mxu0 %v1817
      %2699 = vmatmul.mubr.bf16.gmra.mrb[0].mxu0 %v1745
      %v2700 = vpop.f32.mrb[0].mxu0
      %v2701 = vadd.f32 %v2540, %v2700
      %v2702 = vpop.f32.mrb[0].mxu0
      %v2703 = vpop.f32.mrb[0].mxu0
      %v2704 = vadd.f32 %v2543, %v2703
      %v2705 = vpop.f32.mrb[0].mxu0
      %2706 = vmatprep.mubr.bf16.mxu0 %v1818
      %2707 = vmatmul.mubr.bf16.gmra.mrb[0].mxu0 %v1746
      %v2708 = vpop.f32.mrb[0].mxu0
      %v2709 = vadd.f32 %v2548, %v2708
      %v2710 = vpop.f32.mrb[0].mxu0
      %v2711 = vpop.f32.mrb[0].mxu0
      %v2712 = vadd.f32 %v2551, %v2711
      %v2713 = vpop.f32.mrb[0].mxu0
      %2714 = vmatprep.mubr.bf16.mxu0 %v1819
      %2715 = vmatmul.mubr.bf16.gmra.mrb[0].mxu0 %v1747
      %v2716 = vpop.f32.mrb[0].mxu0
      %v2717 = vadd.f32 %v2556, %v2716
      %v2718 = vpop.f32.mrb[0].mxu0
      %v2719 = vpop.f32.mrb[0].mxu0
      %v2720 = vadd.f32 %v2559, %v2719
      %v2721 = vpop.f32.mrb[0].mxu0
      %2722 = vmatprep.mubr.bf16.mxu0 %v1820
      %2723 = vmatmul.mubr.bf16.gmra.mrb[0].mxu0 %v1748
      %v2724 = vpop.f32.mrb[0].mxu0
      %v2725 = vadd.f32 %v2564, %v2724
      %v2726 = vpop.f32.mrb[0].mxu0
      %v2727 = vpop.f32.mrb[0].mxu0
      %v2728 = vadd.f32 %v2567, %v2727
      %v2729 = vpop.f32.mrb[0].mxu0
      %2730 = vmatprep.mubr.bf16.mxu0 %v1821
      %2731 = vmatmul.mubr.bf16.gmra.mrb[0].mxu0 %v1749
      %v2732 = vpop.f32.mrb[0].mxu0
      %v2733 = vadd.f32 %v2572, %v2732
      %v2734 = vpop.f32.mrb[0].mxu0
      %v2735 = vpop.f32.mrb[0].mxu0
      %v2736 = vadd.f32 %v2575, %v2735
      %v2737 = vpop.f32.mrb[0].mxu0
      %2738 = vmatprep.mubr.bf16.mxu0 %v1822
      %2739 = vmatmul.mubr.bf16.gmra.mrb[0].mxu0 %v1750
      %v2740 = vpop.f32.mrb[0].mxu0
      %v2741 = vadd.f32 %v2580, %v2740
      %v2742 = vpop.f32.mrb[0].mxu0
      %v2743 = vpop.f32.mrb[0].mxu0
      %v2744 = vadd.f32 %v2583, %v2743
      %v2745 = vpop.f32.mrb[0].mxu0
      %2746 = vmatprep.mubr.bf16.mxu0 %v1823
      %2747 = vmatmul.mubr.bf16.gmra.mrb[0].mxu0 %v1751
      %v2748 = vpop.f32.mrb[0].mxu0
      %v2749 = vadd.f32 %v2588, %v2748
      %v2750 = vpop.f32.mrb[0].mxu0
      %v2751 = vpop.f32.mrb[0].mxu0
      %v2752 = vadd.f32 %v2591, %v2751
      %v2753 = vpop.f32.mrb[0].mxu0
      %2754 = vmatprep.mubr.bf16.mxu0 %v1824
      %2755 = vmatmul.mubr.bf16.gmra.mrb[0].mxu0 %v1752
      %v2756 = vpop.f32.mrb[0].mxu0
      %v2757 = vadd.f32 %v2596, %v2756
      %v2758 = vpop.f32.mrb[0].mxu0
      %v2759 = vpop.f32.mrb[0].mxu0
      %v2760 = vadd.f32 %v2599, %v2759
      %v2761 = vpop.f32.mrb[0].mxu0
      %2762 = vmatprep.mubr.bf16.mxu0 %v1825
      %2763 = vmatmul.mubr.bf16.gmra.mrb[0].mxu0 %v1753
      %v2764 = vpop.f32.mrb[0].mxu0
      %v2765 = vadd.f32 %v2604, %v2764
      %v2766 = vpop.f32.mrb[0].mxu0
      %v2767 = vpop.f32.mrb[0].mxu0
      %v2768 = vadd.f32 %v2607, %v2767
      %v2769 = vpop.f32.mrb[0].mxu0
      %2770 = vmatprep.mubr.bf16.mxu0 %v1826
      %2771 = vmatmul.mubr.bf16.gmra.mrb[0].mxu0 %v1754
      %v2772 = vpop.f32.mrb[0].mxu0
      %v2773 = vadd.f32 %v2612, %v2772
      %v2774 = vpop.f32.mrb[0].mxu0
      %v2775 = vpop.f32.mrb[0].mxu0
      %v2776 = vadd.f32 %v2615, %v2775
      %v2777 = vpop.f32.mrb[0].mxu0
      %2778 = vmatprep.mubr.bf16.mxu0 %v1827
      %2779 = vmatmul.mubr.bf16.gmra.mrb[0].mxu0 %v1755
      %v2780 = vpop.f32.mrb[0].mxu0
      %v2781 = vadd.f32 %v2620, %v2780
      %v2782 = vpop.f32.mrb[0].mxu0
      %v2783 = vpop.f32.mrb[0].mxu0
      %v2784 = vadd.f32 %v2623, %v2783
      %v2785 = vpop.f32.mrb[0].mxu0
      %2786 = vmatprep.mubr.bf16.mxu0 %v1828
      %2787 = vmatmul.mubr.bf16.gmra.mrb[0].mxu0 %v1756
      %v2788 = vpop.f32.mrb[0].mxu0
      %v2789 = vadd.f32 %v2628, %v2788
      %v2790 = vpop.f32.mrb[0].mxu0
      %v2791 = vpop.f32.mrb[0].mxu0
      %v2792 = vadd.f32 %v2631, %v2791
      %v2793 = vpop.f32.mrb[0].mxu0
      %2794 = vmatprep.mubr.bf16.mxu0 %v1829
      %2795 = vmatmul.mubr.bf16.gmra.mrb[0].mxu0 %v1757
      %v2796 = vpop.f32.mrb[0].mxu0
      %v2797 = vadd.f32 %v2636, %v2796
      %v2798 = vpop.f32.mrb[0].mxu0
      %v2799 = vpop.f32.mrb[0].mxu0
      %v2800 = vadd.f32 %v2639, %v2799
      %v2801 = vpop.f32.mrb[0].mxu0
      %2802 = vmatprep.mubr.bf16.mxu0 %v1830
      %2803 = vmatmul.mubr.bf16.gmra.mrb[0].mxu0 %v1758
      %v2804 = vpop.f32.mrb[0].mxu0
      %v2805 = vadd.f32 %v2644, %v2804
      %v2806 = vpop.f32.mrb[0].mxu0
      %v2807 = vpop.f32.mrb[0].mxu0
      %v2808 = vadd.f32 %v2647, %v2807
      %v2809 = vpop.f32.mrb[0].mxu0
      %2810 = vmatprep.mubr.bf16.mxu0 %v1831
      %2811 = vmatmul.mubr.bf16.gmra.mrb[0].mxu0 %v1778
      %v2812 = vpop.f32.mrb[0].mxu0
      %v2813 = vadd.f32 %v2652, %v2812
      %v2814 = vpop.f32.mrb[0].mxu0
      %v2815 = vpop.f32.mrb[0].mxu0
      %v2816 = vadd.f32 %v2655, %v2815
      %v2817 = vpop.f32.mrb[0].mxu0
      %2818 = vmatprep.mubr.bf16.mxu0 %v1832
      %2819 = vmatmul.mubr.bf16.gmra.mrb[0].mxu0 %v1783
      %v2820 = vpop.f32.mrb[0].mxu0
      %v2821 = vadd.f32 %v2660, %v2820
      %v2822 = vpop.f32.mrb[0].mxu0
      %v2823 = vpop.f32.mrb[0].mxu0
      %v2824 = vadd.f32 %v2663, %v2823
      %v2825 = vpop.f32.mrb[0].mxu0
      %2826 = vdwg.mxu0
      %2827 = vmatprep.subr.bf16.mxu0 0
      %2828 = vmatpush1.bf16.msra.mxu0 %v2393
      %2829 = vmatprep.subr.bf16.mxu0 0
      %2830 = vmatpush1.bf16.msra.mxu0 %v2394
      %2831 = vmatprep.subr.bf16.mxu0 0
      %2832 = vmatpush1.bf16.msra.mxu0 %v2395
      %2833 = vmatprep.subr.bf16.mxu0 0
      %2834 = vmatpush1.bf16.msra.mxu0 %v2396
      %2835 = vmatprep.subr.bf16.mxu0 0
      %2836 = vmatpush1.bf16.msra.mxu0 %v2397
      %2837 = vmatprep.subr.bf16.mxu0 0
      %2838 = vmatpush1.bf16.msra.mxu0 %v2398
      %2839 = vmatprep.subr.bf16.mxu0 0
      %2840 = vmatpush1.bf16.msra.mxu0 %v2399
      %2841 = vmatprep.subr.bf16.mxu0 0
      %2842 = vmatpush1.bf16.msra.mxu0 %v2400
      %2843 = vmatprep.subr.bf16.mxu0 0
      %2844 = vmatpush1.bf16.msra.mxu0 %v2401
      %2845 = vmatprep.subr.bf16.mxu0 0
      %2846 = vmatpush1.bf16.msra.mxu0 %v2402
      %2847 = vmatprep.subr.bf16.mxu0 0
      %2848 = vmatpush1.bf16.msra.mxu0 %v2403
      %2849 = vmatprep.subr.bf16.mxu0 0
      %2850 = vmatpush1.bf16.msra.mxu0 %v2404
      %2851 = vmatprep.subr.bf16.mxu0 0
      %2852 = vmatpush1.bf16.msra.mxu0 %v2405
      %2853 = vmatprep.subr.bf16.mxu0 0
      %2854 = vmatpush1.bf16.msra.mxu0 %v2406
      %2855 = vmatprep.subr.bf16.mxu0 0
      %2856 = vmatpush1.bf16.msra.mxu0 %v2407
      %2857 = vmatprep.subr.bf16.mxu0 0
      %2858 = vmatpush1.bf16.msra.mxu0 %v2408
      %2859 = vmatprep.mubr.bf16.mxu0 %v1819
      %2860 = vmatmul.mubr.bf16.gmra.mrb[0].mxu0 %v1818
      %v2861 = vpop.f32.mrb[0].mxu0
      %v2862 = vadd.f32 %v2701, %v2861
      %v2863 = vpop.f32.mrb[0].mxu0
      %v2864 = vpop.f32.mrb[0].mxu0
      %v2865 = vadd.f32 %v2704, %v2864
      %v2866 = vpop.f32.mrb[0].mxu0
      %2867 = vmatprep.mubr.bf16.mxu0 %v1820
      %2868 = vmatmul.mubr.bf16.gmra.mrb[0].mxu0 %v1819
      %v2869 = vpop.f32.mrb[0].mxu0
      %v2870 = vadd.f32 %v2709, %v2869
      %v2871 = vpop.f32.mrb[0].mxu0
      %v2872 = vpop.f32.mrb[0].mxu0
      %v2873 = vadd.f32 %v2712, %v2872
      %v2874 = vpop.f32.mrb[0].mxu0
      %2875 = vmatprep.mubr.bf16.mxu0 %v1821
      %2876 = vmatmul.mubr.bf16.gmra.mrb[0].mxu0 %v1820
      %v2877 = vpop.f32.mrb[0].mxu0
      %v2878 = vadd.f32 %v2717, %v2877
      %v2879 = vpop.f32.mrb[0].mxu0
      %v2880 = vpop.f32.mrb[0].mxu0
      %v2881 = vadd.f32 %v2720, %v2880
      %v2882 = vpop.f32.mrb[0].mxu0
      %2883 = vmatprep.mubr.bf16.mxu0 %v1822
      %2884 = vmatmul.mubr.bf16.gmra.mrb[0].mxu0 %v1821
      %v2885 = vpop.f32.mrb[0].mxu0
      %v2886 = vadd.f32 %v2725, %v2885
      %v2887 = vpop.f32.mrb[0].mxu0
      %v2888 = vpop.f32.mrb[0].mxu0
      %v2889 = vadd.f32 %v2728, %v2888
      %v2890 = vpop.f32.mrb[0].mxu0
      %2891 = vmatprep.mubr.bf16.mxu0 %v1823
      %2892 = vmatmul.mubr.bf16.gmra.mrb[0].mxu0 %v1822
      %v2893 = vpop.f32.mrb[0].mxu0
      %v2894 = vadd.f32 %v2733, %v2893
      %v2895 = vpop.f32.mrb[0].mxu0
      %v2896 = vpop.f32.mrb[0].mxu0
      %v2897 = vadd.f32 %v2736, %v2896
      %v2898 = vpop.f32.mrb[0].mxu0
      %2899 = vmatprep.mubr.bf16.mxu0 %v1824
      %2900 = vmatmul.mubr.bf16.gmra.mrb[0].mxu0 %v1823
      %v2901 = vpop.f32.mrb[0].mxu0
      %v2902 = vadd.f32 %v2741, %v2901
      %v2903 = vpop.f32.mrb[0].mxu0
      %v2904 = vpop.f32.mrb[0].mxu0
      %v2905 = vadd.f32 %v2744, %v2904
      %v2906 = vpop.f32.mrb[0].mxu0
      %2907 = vmatprep.mubr.bf16.mxu0 %v1825
      %2908 = vmatmul.mubr.bf16.gmra.mrb[0].mxu0 %v1824
      %v2909 = vpop.f32.mrb[0].mxu0
      %v2910 = vadd.f32 %v2749, %v2909
      %v2911 = vpop.f32.mrb[0].mxu0
      %v2912 = vpop.f32.mrb[0].mxu0
      %v2913 = vadd.f32 %v2752, %v2912
      %v2914 = vpop.f32.mrb[0].mxu0
      %2915 = vmatprep.mubr.bf16.mxu0 %v1826
      %2916 = vmatmul.mubr.bf16.gmra.mrb[0].mxu0 %v1825
      %v2917 = vpop.f32.mrb[0].mxu0
      %v2918 = vadd.f32 %v2757, %v2917
      %v2919 = vpop.f32.mrb[0].mxu0
      %v2920 = vpop.f32.mrb[0].mxu0
      %v2921 = vadd.f32 %v2760, %v2920
      %v2922 = vpop.f32.mrb[0].mxu0
      %2923 = vmatprep.mubr.bf16.mxu0 %v1827
      %2924 = vmatmul.mubr.bf16.gmra.mrb[0].mxu0 %v1826
      %v2925 = vpop.f32.mrb[0].mxu0
      %v2926 = vadd.f32 %v2765, %v2925
      %v2927 = vpop.f32.mrb[0].mxu0
      %v2928 = vpop.f32.mrb[0].mxu0
      %v2929 = vadd.f32 %v2768, %v2928
      %v2930 = vpop.f32.mrb[0].mxu0
      %2931 = vmatprep.mubr.bf16.mxu0 %v1828
      %2932 = vmatmul.mubr.bf16.gmra.mrb[0].mxu0 %v1827
      %v2933 = vpop.f32.mrb[0].mxu0
      %v2934 = vadd.f32 %v2773, %v2933
      %v2935 = vpop.f32.mrb[0].mxu0
      %v2936 = vpop.f32.mrb[0].mxu0
      %v2937 = vadd.f32 %v2776, %v2936
      %v2938 = vpop.f32.mrb[0].mxu0
      %2939 = vmatprep.mubr.bf16.mxu0 %v1829
      %2940 = vmatmul.mubr.bf16.gmra.mrb[0].mxu0 %v1828
      %v2941 = vpop.f32.mrb[0].mxu0
      %v2942 = vadd.f32 %v2781, %v2941
      %v2943 = vpop.f32.mrb[0].mxu0
      %v2944 = vpop.f32.mrb[0].mxu0
      %v2945 = vadd.f32 %v2784, %v2944
      %v2946 = vpop.f32.mrb[0].mxu0
      %2947 = vmatprep.mubr.bf16.mxu0 %v1830
      %2948 = vmatmul.mubr.bf16.gmra.mrb[0].mxu0 %v1829
      %v2949 = vpop.f32.mrb[0].mxu0
      %v2950 = vadd.f32 %v2789, %v2949
      %v2951 = vpop.f32.mrb[0].mxu0
      %v2952 = vpop.f32.mrb[0].mxu0
      %v2953 = vadd.f32 %v2792, %v2952
      %v2954 = vpop.f32.mrb[0].mxu0
      %2955 = vmatprep.mubr.bf16.mxu0 %v1831
      %2956 = vmatmul.mubr.bf16.gmra.mrb[0].mxu0 %v1830
      %v2957 = vpop.f32.mrb[0].mxu0
      %v2958 = vadd.f32 %v2797, %v2957
      %v2959 = vpop.f32.mrb[0].mxu0
      %v2960 = vpop.f32.mrb[0].mxu0
      %v2961 = vadd.f32 %v2800, %v2960
      %v2962 = vpop.f32.mrb[0].mxu0
      %2963 = vmatprep.mubr.bf16.mxu0 %v1832
      %2964 = vmatmul.mubr.bf16.gmra.mrb[0].mxu0 %v1831
      %v2965 = vpop.f32.mrb[0].mxu0
      %v2966 = vadd.f32 %v2805, %v2965
      %v2967 = vpop.f32.mrb[0].mxu0
      %v2968 = vpop.f32.mrb[0].mxu0
      %v2969 = vadd.f32 %v2808, %v2968
      %v2970 = vpop.f32.mrb[0].mxu0
      %2971 = vmatprep.mubr.bf16.mxu0 %v1851
      %2972 = vmatmul.mubr.bf16.gmra.mrb[0].mxu0 %v1832
      %v2973 = vpop.f32.mrb[0].mxu0
      %v2974 = vadd.f32 %v2813, %v2973
      %v2975 = vpop.f32.mrb[0].mxu0
      %v2976 = vpop.f32.mrb[0].mxu0
      %v2977 = vadd.f32 %v2816, %v2976
      %v2978 = vpop.f32.mrb[0].mxu0
      %2979 = vmatprep.mubr.bf16.mxu0 %v1855
      %2980 = vmatmul.mubr.bf16.gmra.mrb[0].mxu0 %v1851
      %v2981 = vpop.f32.mrb[0].mxu0
      %v2982 = vadd.f32 %v2821, %v2981
      %v2983 = vpop.f32.mrb[0].mxu0
      %v2984 = vpop.f32.mrb[0].mxu0
      %v2985 = vadd.f32 %v2824, %v2984
      %v2986 = vpop.f32.mrb[0].mxu0
      %2987 = vdwg.mxu0
      %2988 = vmatprep.subr.bf16.mxu0 0
      %2989 = vmatpush1.bf16.msra.mxu0 %v2409
      %2990 = vmatprep.subr.bf16.mxu0 0
      %2991 = vmatpush1.bf16.msra.mxu0 %v2410
      %2992 = vmatprep.subr.bf16.mxu0 0
      %2993 = vmatpush1.bf16.msra.mxu0 %v2411
      %2994 = vmatprep.subr.bf16.mxu0 0
      %2995 = vmatpush1.bf16.msra.mxu0 %v2412
      %2996 = vmatprep.subr.bf16.mxu0 0
      %2997 = vmatpush1.bf16.msra.mxu0 %v2413
      %2998 = vmatprep.subr.bf16.mxu0 0
      %2999 = vmatpush1.bf16.msra.mxu0 %v2414
      %3000 = vmatprep.subr.bf16.mxu0 0
      %3001 = vmatpush1.bf16.msra.mxu0 %v2415
      %3002 = vmatprep.subr.bf16.mxu0 0
      %3003 = vmatpush1.bf16.msra.mxu0 %v2416
      %3004 = vmatprep.subr.bf16.mxu0 0
      %3005 = vmatpush1.bf16.msra.mxu0 %v2417
      %3006 = vmatprep.subr.bf16.mxu0 0
      %3007 = vmatpush1.bf16.msra.mxu0 %v2418
      %3008 = vmatprep.subr.bf16.mxu0 0
      %3009 = vmatpush1.bf16.msra.mxu0 %v2419
      %3010 = vmatprep.subr.bf16.mxu0 0
      %3011 = vmatpush1.bf16.msra.mxu0 %v2420
      %3012 = vmatprep.subr.bf16.mxu0 0
      %3013 = vmatpush1.bf16.msra.mxu0 %v2421
      %3014 = vmatprep.subr.bf16.mxu0 0
      %3015 = vmatpush1.bf16.msra.mxu0 %v2422
      %3016 = vmatprep.subr.bf16.mxu0 0
      %3017 = vmatpush1.bf16.msra.mxu0 %v2423
      %3018 = vmatprep.subr.bf16.mxu0 0
      %3019 = vmatpush1.bf16.msra.mxu0 %v2424
      %3020 = vmatprep.mubr.bf16.mxu0 %v1890
      %3021 = vmatmul.mubr.bf16.gmra.mrb[0].mxu0 %v1889
      %v3022 = vpop.f32.mrb[0].mxu0
      %v3023 = vadd.f32 %v2862, %v3022
      %v3024 = vpop.f32.mrb[0].mxu0
      %v3025 = vpop.f32.mrb[0].mxu0
      %v3026 = vadd.f32 %v2865, %v3025
      %v3027 = vpop.f32.mrb[0].mxu0
      %3028 = vmatprep.mubr.bf16.mxu0 %v1891
      %3029 = vmatmul.mubr.bf16.gmra.mrb[0].mxu0 %v1890
      %v3030 = vpop.f32.mrb[0].mxu0
      %v3031 = vadd.f32 %v2870, %v3030
      %v3032 = vpop.f32.mrb[0].mxu0
      %v3033 = vpop.f32.mrb[0].mxu0
      %v3034 = vadd.f32 %v2873, %v3033
      %v3035 = vpop.f32.mrb[0].mxu0
      %3036 = vmatprep.mubr.bf16.mxu0 %v1892
      %3037 = vmatmul.mubr.bf16.gmra.mrb[0].mxu0 %v1891
      %v3038 = vpop.f32.mrb[0].mxu0
      %v3039 = vadd.f32 %v2878, %v3038
      %v3040 = vpop.f32.mrb[0].mxu0
      %v3041 = vpop.f32.mrb[0].mxu0
      %v3042 = vadd.f32 %v2881, %v3041
      %v3043 = vpop.f32.mrb[0].mxu0
      %3044 = vmatprep.mubr.bf16.mxu0 %v1893
      %3045 = vmatmul.mubr.bf16.gmra.mrb[0].mxu0 %v1892
      %v3046 = vpop.f32.mrb[0].mxu0
      %v3047 = vadd.f32 %v2886, %v3046
      %v3048 = vpop.f32.mrb[0].mxu0
      %v3049 = vpop.f32.mrb[0].mxu0
      %v3050 = vadd.f32 %v2889, %v3049
      %v3051 = vpop.f32.mrb[0].mxu0
      %3052 = vmatprep.mubr.bf16.mxu0 %v1894
      %3053 = vmatmul.mubr.bf16.gmra.mrb[0].mxu0 %v1893
      %v3054 = vpop.f32.mrb[0].mxu0
      %v3055 = vadd.f32 %v2894, %v3054
      %v3056 = vpop.f32.mrb[0].mxu0
      %v3057 = vpop.f32.mrb[0].mxu0
      %v3058 = vadd.f32 %v2897, %v3057
      %v3059 = vpop.f32.mrb[0].mxu0
      %3060 = vmatprep.mubr.bf16.mxu0 %v1895
      %3061 = vmatmul.mubr.bf16.gmra.mrb[0].mxu0 %v1894
      %v3062 = vpop.f32.mrb[0].mxu0
      %v3063 = vadd.f32 %v2902, %v3062
      %v3064 = vpop.f32.mrb[0].mxu0
      %v3065 = vpop.f32.mrb[0].mxu0
      %v3066 = vadd.f32 %v2905, %v3065
      %v3067 = vpop.f32.mrb[0].mxu0
      %3068 = vmatprep.mubr.bf16.mxu0 %v1896
      %3069 = vmatmul.mubr.bf16.gmra.mrb[0].mxu0 %v1895
      %v3070 = vpop.f32.mrb[0].mxu0
      %v3071 = vadd.f32 %v2910, %v3070
      %v3072 = vpop.f32.mrb[0].mxu0
      %v3073 = vpop.f32.mrb[0].mxu0
      %v3074 = vadd.f32 %v2913, %v3073
      %v3075 = vpop.f32.mrb[0].mxu0
      %3076 = vmatprep.mubr.bf16.mxu0 %v1897
      %3077 = vmatmul.mubr.bf16.gmra.mrb[0].mxu0 %v1896
      %v3078 = vpop.f32.mrb[0].mxu0
      %v3079 = vadd.f32 %v2918, %v3078
      %v3080 = vpop.f32.mrb[0].mxu0
      %v3081 = vpop.f32.mrb[0].mxu0
      %v3082 = vadd.f32 %v2921, %v3081
      %v3083 = vpop.f32.mrb[0].mxu0
      %3084 = vmatprep.mubr.bf16.mxu0 %v1898
      %3085 = vmatmul.mubr.bf16.gmra.mrb[0].mxu0 %v1897
      %v3086 = vpop.f32.mrb[0].mxu0
      %v3087 = vadd.f32 %v2926, %v3086
      %v3088 = vpop.f32.mrb[0].mxu0
      %v3089 = vpop.f32.mrb[0].mxu0
      %v3090 = vadd.f32 %v2929, %v3089
      %v3091 = vpop.f32.mrb[0].mxu0
      %3092 = vmatprep.mubr.bf16.mxu0 %v1899
      %3093 = vmatmul.mubr.bf16.gmra.mrb[0].mxu0 %v1898
      %v3094 = vpop.f32.mrb[0].mxu0
      %v3095 = vadd.f32 %v2934, %v3094
      %v3096 = vpop.f32.mrb[0].mxu0
      %v3097 = vpop.f32.mrb[0].mxu0
      %v3098 = vadd.f32 %v2937, %v3097
      %v3099 = vpop.f32.mrb[0].mxu0
      %3100 = vmatprep.mubr.bf16.mxu0 %v1900
      %3101 = vmatmul.mubr.bf16.gmra.mrb[0].mxu0 %v1899
      %v3102 = vpop.f32.mrb[0].mxu0
      %v3103 = vadd.f32 %v2942, %v3102
      %v3104 = vpop.f32.mrb[0].mxu0
      %v3105 = vpop.f32.mrb[0].mxu0
      %v3106 = vadd.f32 %v2945, %v3105
      %v3107 = vpop.f32.mrb[0].mxu0
      %3108 = vmatprep.mubr.bf16.mxu0 %v1901
      %3109 = vmatmul.mubr.bf16.gmra.mrb[0].mxu0 %v1900
      %v3110 = vpop.f32.mrb[0].mxu0
      %v3111 = vadd.f32 %v2950, %v3110
      %v3112 = vpop.f32.mrb[0].mxu0
      %v3113 = vpop.f32.mrb[0].mxu0
      %v3114 = vadd.f32 %v2953, %v3113
      %v3115 = vpop.f32.mrb[0].mxu0
      %3116 = vmatprep.mubr.bf16.mxu0 %v1902
      %3117 = vmatmul.mubr.bf16.gmra.mrb[0].mxu0 %v1901
      %v3118 = vpop.f32.mrb[0].mxu0
      %v3119 = vadd.f32 %v2958, %v3118
      %v3120 = vpop.f32.mrb[0].mxu0
      %v3121 = vpop.f32.mrb[0].mxu0
      %v3122 = vadd.f32 %v2961, %v3121
      %v3123 = vpop.f32.mrb[0].mxu0
      %3124 = vmatprep.mubr.bf16.mxu0 %v1903
      %3125 = vmatmul.mubr.bf16.gmra.mrb[0].mxu0 %v1902
      %v3126 = vpop.f32.mrb[0].mxu0
      %v3127 = vadd.f32 %v2966, %v3126
      %v3128 = vpop.f32.mrb[0].mxu0
      %v3129 = vpop.f32.mrb[0].mxu0
      %v3130 = vadd.f32 %v2969, %v3129
      %v3131 = vpop.f32.mrb[0].mxu0
      %3132 = vmatprep.mubr.bf16.mxu0 %v1904
      %3133 = vmatmul.mubr.bf16.gmra.mrb[0].mxu0 %v1903
      %v3134 = vpop.f32.mrb[0].mxu0
      %v3135 = vadd.f32 %v2974, %v3134
      %v3136 = vpop.f32.mrb[0].mxu0
      %v3137 = vpop.f32.mrb[0].mxu0
      %v3138 = vadd.f32 %v2977, %v3137
      %v3139 = vpop.f32.mrb[0].mxu0
      %3140 = vmatprep.mubr.bf16.mxu0 %v1923
      %3141 = vmatmul.mubr.bf16.gmra.mrb[0].mxu0 %v1904
      %v3142 = vpop.f32.mrb[0].mxu0
      %v3143 = vadd.f32 %v2982, %v3142
      %v3144 = vpop.f32.mrb[0].mxu0
      %v3145 = vpop.f32.mrb[0].mxu0
      %v3146 = vadd.f32 %v2985, %v3145
      %v3147 = vpop.f32.mrb[0].mxu0
      %3148 = vdwg.mxu0
      %3149 = vmatprep.subr.bf16.mxu0 0
      %3150 = vmatpush1.bf16.msra.mxu0 %v2425
      %3151 = vmatprep.subr.bf16.mxu0 0
      %3152 = vmatpush1.bf16.msra.mxu0 %v2426
      %3153 = vmatprep.subr.bf16.mxu0 0
      %3154 = vmatpush1.bf16.msra.mxu0 %v2427
      %3155 = vmatprep.subr.bf16.mxu0 0
      %3156 = vmatpush1.bf16.msra.mxu0 %v2428
      %3157 = vmatprep.subr.bf16.mxu0 0
      %3158 = vmatpush1.bf16.msra.mxu0 %v2429
      %3159 = vmatprep.subr.bf16.mxu0 0
      %3160 = vmatpush1.bf16.msra.mxu0 %v2430
      %3161 = vmatprep.subr.bf16.mxu0 0
      %3162 = vmatpush1.bf16.msra.mxu0 %v2431
      %3163 = vmatprep.subr.bf16.mxu0 0
      %3164 = vmatpush1.bf16.msra.mxu0 %v2432
      %3165 = vmatprep.subr.bf16.mxu0 0
      %3166 = vmatpush1.bf16.msra.mxu0 0
      %3167 = vmatprep.subr.bf16.mxu0 0
      %3168 = vmatpush1.bf16.msra.mxu0 0
      %3169 = vmatprep.subr.bf16.mxu0 0
      %3170 = vmatpush1.bf16.msra.mxu0 0
      %3171 = vmatprep.subr.bf16.mxu0 0
      %3172 = vmatpush1.bf16.msra.mxu0 0
      %3173 = vmatprep.subr.bf16.mxu0 0
      %3174 = vmatpush1.bf16.msra.mxu0 0
      %3175 = vmatprep.subr.bf16.mxu0 0
      %3176 = vmatpush1.bf16.msra.mxu0 0
      %3177 = vmatprep.subr.bf16.mxu0 0
      %3178 = vmatpush1.bf16.msra.mxu0 0
      %3179 = vmatprep.subr.bf16.mxu0 0
      %3180 = vmatpush1.bf16.msra.mxu0 0
      %3181 = vmatprep.mubr.bf16.mxu0 0
      %3182 = vmatmul.mubr.bf16.gmra.mrb[0].mxu0 %v1891
      %v3183 = vpop.f32.mrb[0].mxu0
      %v3184 = vadd.f32 %v3023, %v3183
      %v3185 = vpop.f32.mrb[0].mxu0
      %v3186 = vpop.f32.mrb[0].mxu0
      %v3187 = vadd.f32 %v3026, %v3186
      %v3188 = vpop.f32.mrb[0].mxu0
      %3189 = vmatprep.mubr.bf16.mxu0 0
      %3190 = vmatmul.mubr.bf16.gmra.mrb[0].mxu0 %v1892
      %v3191 = vpop.f32.mrb[0].mxu0
      %v3192 = vadd.f32 %v3031, %v3191
      %v3193 = vpop.f32.mrb[0].mxu0
      %v3194 = vpop.f32.mrb[0].mxu0
      %v3195 = vadd.f32 %v3034, %v3194
      %v3196 = vpop.f32.mrb[0].mxu0
      %3197 = vmatprep.mubr.bf16.mxu0 0
      %3198 = vmatmul.mubr.bf16.gmra.mrb[0].mxu0 %v1893
      %v3199 = vpop.f32.mrb[0].mxu0
      %v3200 = vadd.f32 %v3039, %v3199
      %v3201 = vpop.f32.mrb[0].mxu0
      %v3202 = vpop.f32.mrb[0].mxu0
      %v3203 = vadd.f32 %v3042, %v3202
      %v3204 = vpop.f32.mrb[0].mxu0
      %3205 = vmatprep.mubr.bf16.mxu0 0
      %3206 = vmatmul.mubr.bf16.gmra.mrb[0].mxu0 %v1894
      %v3207 = vpop.f32.mrb[0].mxu0
      %v3208 = vadd.f32 %v3047, %v3207
      %v3209 = vpop.f32.mrb[0].mxu0
      %v3210 = vpop.f32.mrb[0].mxu0
      %v3211 = vadd.f32 %v3050, %v3210
      %v3212 = vpop.f32.mrb[0].mxu0
      %3213 = vmatprep.mubr.bf16.mxu0 0
      %3214 = vmatmul.mubr.bf16.gmra.mrb[0].mxu0 %v1895
      %v3215 = vpop.f32.mrb[0].mxu0
      %v3216 = vadd.f32 %v3055, %v3215
      %v3217 = vpop.f32.mrb[0].mxu0
      %v3218 = vpop.f32.mrb[0].mxu0
      %v3219 = vadd.f32 %v3058, %v3218
      %v3220 = vpop.f32.mrb[0].mxu0
      %3221 = vmatprep.mubr.bf16.mxu0 0
      %3222 = vmatmul.mubr.bf16.gmra.mrb[0].mxu0 %v1896
      %v3223 = vpop.f32.mrb[0].mxu0
      %v3224 = vadd.f32 %v3063, %v3223
      %v3225 = vpop.f32.mrb[0].mxu0
      %v3226 = vpop.f32.mrb[0].mxu0
      %v3227 = vadd.f32 %v3066, %v3226
      %v3228 = vpop.f32.mrb[0].mxu0
      %3229 = vmatprep.mubr.bf16.mxu0 0
      %3230 = vmatmul.mubr.bf16.gmra.mrb[0].mxu0 %v1897
      %v3231 = vpop.f32.mrb[0].mxu0
      %v3232 = vadd.f32 %v3071, %v3231
      %v3233 = vpop.f32.mrb[0].mxu0
      %v3234 = vpop.f32.mrb[0].mxu0
      %v3235 = vadd.f32 %v3074, %v3234
      %v3236 = vpop.f32.mrb[0].mxu0
      %3237 = vmatprep.mubr.bf16.mxu0 0
      %3238 = vmatmul.mubr.bf16.gmra.mrb[0].mxu0 %v1898
      %v3239 = vpop.f32.mrb[0].mxu0
      %v3240 = vadd.f32 %v3079, %v3239
      %v3241 = vpop.f32.mrb[0].mxu0
      %v3242 = vpop.f32.mrb[0].mxu0
      %v3243 = vadd.f32 %v3082, %v3242
      %v3244 = vpop.f32.mrb[0].mxu0
      %3245 = vmatprep.mubr.bf16.mxu0 0
      %3246 = vmatmul.mubr.bf16.gmra.mrb[0].mxu0 %v1899
      %v3247 = vpop.f32.mrb[0].mxu0
      %v3248 = vadd.f32 %v3087, %v3247
      %v3249 = vpop.f32.mrb[0].mxu0
      %v3250 = vpop.f32.mrb[0].mxu0
      %v3251 = vadd.f32 %v3090, %v3250
      %v3252 = vpop.f32.mrb[0].mxu0
      %3253 = vmatprep.mubr.bf16.mxu0 0
      %3254 = vmatmul.mubr.bf16.gmra.mrb[0].mxu0 %v1900
      %v3255 = vpop.f32.mrb[0].mxu0
      %v3256 = vadd.f32 %v3095, %v3255
      %v3257 = vpop.f32.mrb[0].mxu0
      %v3258 = vpop.f32.mrb[0].mxu0
      %v3259 = vadd.f32 %v3098, %v3258
      %v3260 = vpop.f32.mrb[0].mxu0
      %3261 = vmatprep.mubr.bf16.mxu0 0
      %3262 = vmatmul.mubr.bf16.gmra.mrb[0].mxu0 %v1901
      %v3263 = vpop.f32.mrb[0].mxu0
      %v3264 = vadd.f32 %v3103, %v3263
      %v3265 = vpop.f32.mrb[0].mxu0
      %v3266 = vpop.f32.mrb[0].mxu0
      %v3267 = vadd.f32 %v3106, %v3266
      %v3268 = vpop.f32.mrb[0].mxu0
      %3269 = vmatprep.mubr.bf16.mxu0 0
      %3270 = vmatmul.mubr.bf16.gmra.mrb[0].mxu0 %v1902
      %v3271 = vpop.f32.mrb[0].mxu0
      %v3272 = vadd.f32 %v3111, %v3271
      %v3273 = vpop.f32.mrb[0].mxu0
      %v3274 = vpop.f32.mrb[0].mxu0
      %v3275 = vadd.f32 %v3114, %v3274
      %v3276 = vpop.f32.mrb[0].mxu0
      %3277 = vmatprep.mubr.bf16.mxu0 0
      %3278 = vmatmul.mubr.bf16.gmra.mrb[0].mxu0 %v1903
      %v3279 = vpop.f32.mrb[0].mxu0
      %v3280 = vadd.f32 %v3119, %v3279
      %v3281 = vpop.f32.mrb[0].mxu0
      %v3282 = vpop.f32.mrb[0].mxu0
      %v3283 = vadd.f32 %v3122, %v3282
      %v3284 = vpop.f32.mrb[0].mxu0
      %3285 = vmatprep.mubr.bf16.mxu0 0
      %3286 = vmatmul.mubr.bf16.gmra.mrb[0].mxu0 %v1904
      %v3287 = vpop.f32.mrb[0].mxu0
      %v3288 = vadd.f32 %v3127, %v3287
      %v3289 = vpop.f32.mrb[0].mxu0
      %v3290 = vpop.f32.mrb[0].mxu0
      %v3291 = vadd.f32 %v3130, %v3290
      %v3292 = vpop.f32.mrb[0].mxu0
      %3293 = vmatprep.mubr.bf16.mxu0 0
      %3294 = vmatmul.mubr.bf16.gmra.mrb[0].mxu0 %v1923
      %v3295 = vpop.f32.mrb[0].mxu0
      %v3296 = vadd.f32 %v3135, %v3295
      %v3297 = vpop.f32.mrb[0].mxu0
      %v3298 = vpop.f32.mrb[0].mxu0
      %v3299 = vadd.f32 %v3138, %v3298
      %v3300 = vpop.f32.mrb[0].mxu0
      %3301 = vmatprep.mubr.bf16.mxu0 0
      %3302 = vmatmul.mubr.bf16.gmra.mrb[0].mxu0 %v1927
      %v3303 = vpop.f32.mrb[0].mxu0
      %v3304 = vadd.f32 %v3143, %v3303
      %v3305 = vpop.f32.mrb[0].mxu0
      %v3306 = vpop.f32.mrb[0].mxu0
      %v3307 = vadd.f32 %v3146, %v3306
      %v3308 = vpop.f32.mrb[0].mxu0
      %3309 = vdwg.mxu0
      %v3310 = vpack.c.bf16 %v3187, %v3184
      %v3311 = vpack.c.bf16 %v3195, %v3192
      %v3312 = vpack.c.bf16 %v3203, %v3200
      %v3313 = vpack.c.bf16 %v3211, %v3208
      %v3314 = vpack.c.bf16 %v3219, %v3216
      %v3315 = vpack.c.bf16 %v3227, %v3224
      %v3316 = vpack.c.bf16 %v3235, %v3232
      %v3317 = vpack.c.bf16 %v3243, %v3240
      %v3318 = vpack.c.bf16 %v3251, %v3248
      %v3319 = vpack.c.bf16 %v3259, %v3256
      %v3320 = vpack.c.bf16 %v3267, %v3264
      %v3321 = vpack.c.bf16 %v3275, %v3272
      %v3322 = vpack.c.bf16 %v3283, %v3280
      %v3323 = vpack.c.bf16 %v3291, %v3288
      %v3324 = vpack.c.bf16 %v3299, %v3296
      %v3325 = vpack.c.bf16 %v3307, %v3304
      %v3342 = vunpack.c.l.b16 %v3310
      %v3343 = vunpack.c.h.b16 %v3310
      %v3344 = vunpack.c.l.b16 %v3311
      %v3345 = vunpack.c.h.b16 %v3311
      %v3346 = vunpack.c.l.b16 %v3312
      %v3347 = vunpack.c.h.b16 %v3312
      %v3348 = vunpack.c.l.b16 %v3313
      %v3349 = vunpack.c.h.b16 %v3313
      %v3350 = vunpack.c.l.b16 %v3314
      %v3351 = vunpack.c.h.b16 %v3314
      %v3352 = vunpack.c.l.b16 %v3315
      %v3353 = vunpack.c.h.b16 %v3315
      %v3354 = vunpack.c.l.b16 %v3316
      %v3355 = vunpack.c.h.b16 %v3316
      %v3356 = vunpack.c.l.b16 %v3317
      %v3357 = vunpack.c.h.b16 %v3317
      %v3358 = vunpack.c.l.b16 %v3318
      %v3359 = vunpack.c.h.b16 %v3318
      %v3360 = vunpack.c.l.b16 %v3319
      %v3361 = vunpack.c.h.b16 %v3319
      %v3362 = vunpack.c.l.b16 %v3320
      %v3363 = vunpack.c.h.b16 %v3320
      %v3364 = vunpack.c.l.b16 %v3321
      %v3365 = vunpack.c.h.b16 %v3321
      %v3366 = vunpack.c.l.b16 %v3322
      %v3367 = vunpack.c.h.b16 %v3322
      %v3368 = vunpack.c.l.b16 %v3323
      %v3369 = vunpack.c.h.b16 %v3323
      %v3370 = vunpack.c.l.b16 %v3324
      %v3371 = vunpack.c.h.b16 %v3324
      %v3372 = vunpack.c.l.b16 %v3325
      %v3373 = vunpack.c.h.b16 %v3325
      %v3374 = vpack.c.b16 %v3342, %v3342
      %v3375 = vpack.c.b16 %v3343, %v3343
      %v3376 = vpack.c.b16 %v3344, %v3344
      %v3377 = vpack.c.b16 %v3345, %v3345
      %v3378 = vpack.c.b16 %v3346, %v3346
      %v3379 = vpack.c.b16 %v3347, %v3347
      %v3380 = vpack.c.b16 %v3348, %v3348
      %v3381 = vpack.c.b16 %v3349, %v3349
      %v3382 = vpack.c.b16 %v3350, %v3350
      %v3383 = vpack.c.b16 %v3351, %v3351
      %v3384 = vpack.c.b16 %v3352, %v3352
      %v3385 = vpack.c.b16 %v3353, %v3353
      %v3386 = vpack.c.b16 %v3354, %v3354
      %v3387 = vpack.c.b16 %v3355, %v3355
      %v3388 = vpack.c.b16 %v3356, %v3356
      %v3389 = vpack.c.b16 %v3357, %v3357
      %v3390 = vpack.c.b16 %v3358, %v3358
      %v3391 = vpack.c.b16 %v3359, %v3359
      %v3392 = vpack.c.b16 %v3360, %v3360
      %v3393 = vpack.c.b16 %v3361, %v3361
      %v3394 = vpack.c.b16 %v3362, %v3362
      %v3395 = vpack.c.b16 %v3363, %v3363
      %v3396 = vpack.c.b16 %v3364, %v3364
      %v3397 = vpack.c.b16 %v3365, %v3365
      %v3398 = vpack.c.b16 %v3366, %v3366
      %v3399 = vpack.c.b16 %v3367, %v3367
      %v3400 = vpack.c.b16 %v3368, %v3368
      %v3401 = vpack.c.b16 %v3369, %v3369
      %v3402 = vpack.c.b16 %v3370, %v3370
      %v3403 = vpack.c.b16 %v3371, %v3371
      %v3404 = vpack.c.b16 %v3372, %v3372
      %v3405 = vpack.c.b16 %v3373, %v3373
      %3438 = vst [vmem:[%s233] sm:$0xf] %v3374
      %3439 = vst [vmem:[%s233 + $0x4] sm:$0xf] %v3375
      %3440 = vst [vmem:[%s233 + $0x8] sm:$0xf] %v3376
      %3441 = vst [vmem:[%s233 + $0xc] sm:$0xf] %v3377
      %3442 = vst [vmem:[%s233 + $0x10] sm:$0xf] %v3378
      %3443 = vst [vmem:[%s233 + $0x14] sm:$0xf] %v3379
      %3444 = vst [vmem:[%s233 + $0x18] sm:$0xf] %v3380
      %3445 = vst [vmem:[%s233 + $0x1c] sm:$0xf] %v3381
      %3446 = vst [vmem:[%s233 + $0x20] sm:$0xf] %v3382
      %3447 = vst [vmem:[%s233 + $0x24] sm:$0xf] %v3383
      %3448 = vst [vmem:[%s233 + $0x28] sm:$0xf] %v3384
      %3449 = vst [vmem:[%s233 + $0x2c] sm:$0xf] %v3385
      %3450 = vst [vmem:[%s233 + $0x30] sm:$0xf] %v3386
      %3451 = vst [vmem:[%s233 + $0x34] sm:$0xf] %v3387
      %3452 = vst [vmem:[%s233 + $0x38] sm:$0xf] %v3388
      %3453 = vst [vmem:[%s233 + $0x3c] sm:$0xf] %v3389
      %3454 = vst [vmem:[%s233 + $0x40] sm:$0xf] %v3390
      %3455 = vst [vmem:[%s233 + $0x44] sm:$0xf] %v3391
      %3456 = vst [vmem:[%s233 + $0x48] sm:$0xf] %v3392
      %3457 = vst [vmem:[%s233 + $0x4c] sm:$0xf] %v3393
      %3458 = vst [vmem:[%s233 + $0x50] sm:$0xf] %v3394
      %3459 = vst [vmem:[%s233 + $0x54] sm:$0xf] %v3395
      %3460 = vst [vmem:[%s233 + $0x58] sm:$0xf] %v3396
      %3461 = vst [vmem:[%s233 + $0x5c] sm:$0xf] %v3397
      %3462 = vst [vmem:[%s233 + $0x60] sm:$0xf] %v3398
      %3463 = vst [vmem:[%s233 + $0x64] sm:$0xf] %v3399
      %3464 = vst [vmem:[%s233 + $0x68] sm:$0xf] %v3400
      %3465 = vst [vmem:[%s233 + $0x6c] sm:$0xf] %v3401
      %3466 = vst [vmem:[%s233 + $0x70] sm:$0xf] %v3402
      %3467 = vst [vmem:[%s233 + $0x74] sm:$0xf] %v3403
      %3468 = vst [vmem:[%s233 + $0x78] sm:$0xf] %v3404
      %3469 = vst [vmem:[%s233 + $0x7c] sm:$0xf] %v3405
      %v3470 = vadd.f32 %v3184, %v3187
      %v3471 = vadd.f32 %v3470, %v3192
      %v3472 = vadd.f32 %v3471, %v3195
      %v3473 = vadd.f32 %v3472, %v3200
      %v3474 = vadd.f32 %v3473, %v3203
      %v3475 = vadd.f32 %v3474, %v3208
      %v3476 = vadd.f32 %v3475, %v3211
      %v3477 = vadd.f32 %v3476, %v3216
      %v3478 = vadd.f32 %v3477, %v3219
      %v3479 = vadd.f32 %v3478, %v3224
      %v3480 = vadd.f32 %v3479, %v3227
      %v3481 = vadd.f32 %v3480, %v3232
      %v3482 = vadd.f32 %v3481, %v3235
      %v3483 = vadd.f32 %v3482, %v3240
      %v3484 = vadd.f32 %v3483, %v3243
      %v3485 = vadd.f32 %v3484, %v3248
      %v3486 = vadd.f32 %v3485, %v3251
      %v3487 = vadd.f32 %v3486, %v3256
      %v3488 = vadd.f32 %v3487, %v3259
      %v3489 = vadd.f32 %v3488, %v3264
      %v3490 = vadd.f32 %v3489, %v3267
      %v3491 = vadd.f32 %v3490, %v3272
      %v3492 = vadd.f32 %v3491, %v3275
      %v3493 = vadd.f32 %v3492, %v3280
      %v3494 = vadd.f32 %v3493, %v3283
      %v3495 = vadd.f32 %v3494, %v3288
      %v3496 = vadd.f32 %v3495, %v3291
      %v3497 = vadd.f32 %v3496, %v3296
      %v3498 = vadd.f32 %v3497, %v3299
      %v3499 = vadd.f32 %v3498, %v3304
      %v3500 = vadd.f32 %v3499, %v3307
      %v3501 = vrot.slane %v3500, 4
      %v3502 = vadd.f32 %v3500, %v3501
      %v3503 = vrot.slane %v3502, 2
      %v3504 = vadd.f32 %v3502, %v3503
      %v3505 = vrot.slane %v3504, 1
      %v3506 = vadd.f32 %v3504, %v3505
      %v3507 = vmul.f32 %v3184, %v3184
      %v3508 = vmul.f32 %v3187, %v3187
      %v3509 = vmul.f32 %v3192, %v3192
      %v3510 = vmul.f32 %v3195, %v3195
      %v3511 = vmul.f32 %v3200, %v3200
      %v3512 = vmul.f32 %v3203, %v3203
      %v3513 = vmul.f32 %v3208, %v3208
      %v3514 = vmul.f32 %v3211, %v3211
      %v3515 = vmul.f32 %v3216, %v3216
      %v3516 = vmul.f32 %v3219, %v3219
      %v3517 = vmul.f32 %v3224, %v3224
      %v3518 = vmul.f32 %v3227, %v3227
      %v3519 = vmul.f32 %v3232, %v3232
      %v3520 = vmul.f32 %v3235, %v3235
      %v3521 = vmul.f32 %v3240, %v3240
      %v3522 = vmul.f32 %v3243, %v3243
      %v3523 = vmul.f32 %v3248, %v3248
      %v3524 = vmul.f32 %v3251, %v3251
      %v3525 = vmul.f32 %v3256, %v3256
      %v3526 = vmul.f32 %v3259, %v3259
      %v3527 = vmul.f32 %v3264, %v3264
      %v3528 = vmul.f32 %v3267, %v3267
      %v3529 = vmul.f32 %v3272, %v3272
      %v3530 = vmul.f32 %v3275, %v3275
      %v3531 = vmul.f32 %v3280, %v3280
      %v3532 = vmul.f32 %v3283, %v3283
      %v3533 = vmul.f32 %v3288, %v3288
      %v3534 = vmul.f32 %v3291, %v3291
      %v3535 = vmul.f32 %v3296, %v3296
      %v3536 = vmul.f32 %v3299, %v3299
      %v3537 = vmul.f32 %v3304, %v3304
      %v3538 = vmul.f32 %v3307, %v3307
      %v3539 = vadd.f32 %v3507, %v3508
      %v3540 = vadd.f32 %v3539, %v3509
      %v3541 = vadd.f32 %v3540, %v3510
      %v3542 = vadd.f32 %v3541, %v3511
      %v3543 = vadd.f32 %v3542, %v3512
      %v3544 = vadd.f32 %v3543, %v3513
      %v3545 = vadd.f32 %v3544, %v3514
      %v3546 = vadd.f32 %v3545, %v3515
      %v3547 = vadd.f32 %v3546, %v3516
      %v3548 = vadd.f32 %v3547, %v3517
      %v3549 = vadd.f32 %v3548, %v3518
      %v3550 = vadd.f32 %v3549, %v3519
      %v3551 = vadd.f32 %v3550, %v3520
      %v3552 = vadd.f32 %v3551, %v3521
      %v3553 = vadd.f32 %v3552, %v3522
      %v3554 = vadd.f32 %v3553, %v3523
      %v3555 = vadd.f32 %v3554, %v3524
      %v3556 = vadd.f32 %v3555, %v3525
      %v3557 = vadd.f32 %v3556, %v3526
      %v3558 = vadd.f32 %v3557, %v3527
      %v3559 = vadd.f32 %v3558, %v3528
      %v3560 = vadd.f32 %v3559, %v3529
      %v3561 = vadd.f32 %v3560, %v3530
      %v3562 = vadd.f32 %v3561, %v3531
      %v3563 = vadd.f32 %v3562, %v3532
      %v3564 = vadd.f32 %v3563, %v3533
      %v3565 = vadd.f32 %v3564, %v3534
      %v3566 = vadd.f32 %v3565, %v3535
      %v3567 = vadd.f32 %v3566, %v3536
      %v3568 = vadd.f32 %v3567, %v3537
      %v3569 = vadd.f32 %v3568, %v3538
      %v3570 = vrot.slane %v3569, 4
      %v3571 = vadd.f32 %v3569, %v3570
      %v3572 = vrot.slane %v3571, 2
      %v3573 = vadd.f32 %v3571, %v3572
      %v3574 = vrot.slane %v3573, 1
      %v3575 = vadd.f32 %v3573, %v3574
      %vm3576 = vcmask 1040384
      %v3577 = vsel %vm3576, %v3506, %v3575
      %vm3578 = vcmask 1041408
      %v3579 = vsel %vm3578, %v3577, 0.0
      %3580 = vst [vmem:[%s238] sm:$0xff] %v3579
      %s3581 = smul.u32 32, %s17
      %p3582 = scmp.lt.s32.totalorder %s3581, 63
      %s3583 = scalar_select %p3582, %s3581, 63
      %s3584 = smul.addr %s3583, 4
      %s3585 = scalar_lea.vmem %s4, %s3584
      %p3586 = scmp.lt.s32.totalorder %s17, 1
      %s3587 = scalar_select %p3586, %s17, 1
      %s3588 = smul.addr %s3587, 8
      %s3589 = scalar_lea.vmem %s5, %s3588
      // Predicated region
      $region37: #{conv_block_forward.4} parent=35 // pred_check
        %p3590 = pneg %p124
      $region38: #{conv_block_forward.4} parent=35 // pred_check_branch
        %3592 = sbr.rel (%p3590) target = $region40
      $region39: #{conv_block_forward.4} parent=35 // pred_region
        %s3593 = smul.u32 32, %s17
      $region40: #{conv_block_forward.4} parent=35 // pred_fallthru
        _
      // Predicated region
      $region41: #{conv_block_forward.4} parent=35 // pred_check
        %p3594 = pneg %p150
      $region42: #{conv_block_forward.4} parent=35 // pred_check_branch
        %3596 = sbr.rel (%p3594) target = $region44
      $region43: #{conv_block_forward.4} parent=35 // pred_region
        _
      $region44: #{conv_block_forward.4} parent=35 // pred_fallthru
        _
    $region36: #{conv_block_forward.4} parent=5 // pred_fallthru
      _
    %p3597 = scmp.le.s32.totalorder 2, %s12
    // Predicated region
    $region45: #{conv_block_forward.4} parent=5 // pred_check
      %p3598 = pneg %p3597
    $region46: #{conv_block_forward.4} parent=5 // pred_check_branch
      %3600 = sbr.rel (%p3598) target = $region48
    $region47: #{conv_block_forward.4} parent=5 // pred_region
      %s3601 = ssub.s32 %s12, 2
      // Predicated region
      $region49: #{conv_block_forward.4} parent=47 // pred_check
        %p3602 = pneg %p130
      $region50: #{conv_block_forward.4} parent=47 // pred_check_branch
        %3604 = sbr.rel (%p3602) target = $region52
      $region51: #{conv_block_forward.4} parent=47 // pred_region
        %s3605 = smul.u32 32, %s18
        %p3606 = scmp.lt.s32.totalorder %s3605, 63
        %s3607 = scalar_select %p3606, %s3605, 63
        %s3608 = smul.addr %s3607, 4
        %s3609 = scalar_lea.vmem %s4, %s3608
      $region52: #{conv_block_forward.4} parent=47 // pred_fallthru
        _
      // Predicated region
      $region53: #{conv_block_forward.4} parent=47 // pred_check
        %p3610 = pneg %p156
      $region54: #{conv_block_forward.4} parent=47 // pred_check_branch
        %3612 = sbr.rel (%p3610) target = $region56
      $region55: #{conv_block_forward.4} parent=47 // pred_region
        %p3613 = scmp.lt.s32.totalorder %s18, 1
        %s3614 = scalar_select %p3613, %s18, 1
        %s3615 = smul.addr %s3614, 8
        %s3616 = scalar_lea.vmem %s5, %s3615
      $region56: #{conv_block_forward.4} parent=47 // pred_fallthru
        _
    $region48: #{conv_block_forward.4} parent=5 // pred_fallthru
      _
  $region6: #{conv_block_forward.4} parent=0 // loop_footer
    %s16 = sadd.s32 1, %s12
  $region7: #{conv_block_forward.4} parent=0 // loop_footer_branch
    %11 = sbr.rel target = $region3
  $region8: #{conv_block_forward.4} parent=0 // loop_exit
    _

</llo_original>
